<compile_context>
chip_gen: v7x
topology: tpu7x:2x2x1
jax: 0.10.0
libtpu: 0.0.40
codegen_flags: <defaults>
</compile_context>

<pallas_src>
import functools

import jax
import jax.numpy as jnp
from jax.experimental import pallas as pl
from jax.experimental.pallas import tpu as pltpu


def _round_up(x, m):
    return (x + m - 1) // m * m


# -----------------------------------------------------------------------------
# im2col (XLA glue; tiny: [B, H*W, 27] f32).
# TODO(synk): could be folded into the kernel with shifted loads if it ever
# matters; at ~220 KB it is noise.
# -----------------------------------------------------------------------------
def _im2col_3x3(x_nchw):
    B, C, H, W = x_nchw.shape
    x = jnp.pad(x_nchw, ((0, 0), (0, 0), (1, 1), (1, 1)))
    patches = []
    for c in range(C):
        for dy in range(3):
            for dx in range(3):
                patches.append(x[:, c, dy:dy + H, dx:dx + W])
    p = jnp.stack(patches, axis=-1)                # [B, H, W, C*9]
    return p.reshape(B, H * W, C * 9)


# -----------------------------------------------------------------------------
# Fully fused RIG kernel (one grid step per batch element):
#   conv stem -> ROI box mean pooling -> ROI FC -> GRRN (GRU message passing)
#   -> pairwise edge classifier.
# All weights use a constant block index, so they stay resident in VMEM;
# every intermediate (conv features, box mask, pooled ROIs, GRU hidden state)
# stays in VMEM and never round-trips to HBM.
# -----------------------------------------------------------------------------
def _rig_kernel(time_step, hidden_dim,
                cols_ref, x1_ref, y1_ref, x2_ref, y2_ref, yy_ref, xx_ref,
                mask_ref, wconv_ref, bconv_ref, wfc_ref, bfc_ref,
                whs_ref, wms_ref, uh_ref, bzr_ref, bh_ref,
                wcls_ref, bcls_ref, out_ref):
    H = hidden_dim
    Np = mask_ref.shape[-1]

    # --- conv stem: relu(im2col_rows @ W + b); stays in VMEM (no HBM store) --
    feat = jnp.maximum(
        jnp.dot(cols_ref[...], wconv_ref[...],
                preferred_element_type=jnp.float32) + bconv_ref[...],
        0.0)                                                     # [HW, Cc]

    # --- ROI mean pooling: box mask built in-kernel from box bounds ----------
    yy = yy_ref[...]                                             # [1, HW] row coords
    xx = xx_ref[...]                                             # [1, HW] col coords
    in_box = ((yy >= y1_ref[...]) & (yy <= y2_ref[...]) &
              (xx >= x1_ref[...]) & (xx <= x2_ref[...]))         # [Np, HW]
    box_mask = in_box.astype(jnp.float32)
    pooled_sum = jnp.dot(box_mask, feat, preferred_element_type=jnp.float32)
    count = jnp.maximum(jnp.sum(box_mask, axis=-1, keepdims=True), 1.0)
    pooled = pooled_sum / count                                  # [Np, Cc]

    # --- ROI feature FC -------------------------------------------------------
    h = jnp.maximum(
        jnp.dot(pooled, wfc_ref[...], preferred_element_type=jnp.float32)
        + bfc_ref[...], 0.0)                                     # [Np, H]

    # --- GRRN: GRU-gated message passing over full_mask ----------------------
    mask = mask_ref[...].astype(jnp.float32)                     # [Np, Np]
    whs = whs_ref[...]                                           # [H, 3H] = concat(w_msg, u_zr)
    wms = wms_ref[...]                                           # [H, 3H] = concat(w_zr, w_h)
    uh = uh_ref[...]                                             # [H, H]
    # Hoisted bias broadcasts (JAX does not CSE broadcast_in_dim across the
    # static unroll below).
    bzr = jnp.broadcast_to(bzr_ref[...], (Np, 2 * H))
    bh = jnp.broadcast_to(bh_ref[...], (Np, H))

    for _ in range(time_step):  # static unroll (time_step = 3)
        # One wide matmul gives both h@w_msg and h@u_zr.
        a = jnp.dot(h, whs, preferred_element_type=jnp.float32)     # [Np, 3H]
        hm = a[:, :H]                                                # h @ w_msg
        h_uzr = a[:, H:]                                             # h @ u_zr
        # Message passing: m_i = sum_j mask[i,j] * (h_j @ w_msg)
        m = jnp.dot(mask, hm, preferred_element_type=jnp.float32)   # [Np, H]
        # One wide matmul gives both m@w_zr and m@w_h.
        bm = jnp.dot(m, wms, preferred_element_type=jnp.float32)    # [Np, 3H]
        gates = bm[:, :2 * H] + h_uzr + bzr
        z = jax.nn.sigmoid(gates[:, :H])
        r = jax.nn.sigmoid(gates[:, H:])
        hc = jnp.tanh(bm[:, 2 * H:]
                      + jnp.dot(r * h, uh, preferred_element_type=jnp.float32)
                      + bh)
        h = (1.0 - z) * h + z * hc

    # --- pairwise edge classifier (output kept 128-lane-dense) ---------------
    Cp = bcls_ref.shape[-1]
    s = jnp.dot(h, wcls_ref[...], preferred_element_type=jnp.float32)  # [Np, 2Cp]
    s1 = s[:, :Cp]                                               # subject part
    s2b = s[:, Cp:] + bcls_ref[...]                              # object part + bias (folded once)
    scores = s1[:, None, :] + s2b[None, :, :]                    # [Np, Np, Cp]
    out_ref[...] = scores.astype(out_ref.dtype)


def rig_fused_pallas(cols, x1, y1, x2, y2, yy, xx, mask, params,
                     time_step, hidden_dim):
    B, HW, Kp = cols.shape
    Np = mask.shape[-1]
    Cc = params['w_conv'].shape[-1]
    H = hidden_dim
    Cp = params['b_cls_pad'].shape[-1]
    kernel = functools.partial(_rig_kernel, time_step, H)

    def w2(r, c):   # resident weight: constant block index across the grid
        return pl.BlockSpec((r, c), lambda b: (0, 0))

    return pl.pallas_call(
        kernel,
        out_shape=jax.ShapeDtypeStruct((B, Np, Np, Cp), jnp.float32),
        grid=(B,),
        in_specs=[
            pl.BlockSpec((None, HW, Kp), lambda b: (b, 0, 0)),   # im2col rows
            pl.BlockSpec((None, Np, 1), lambda b: (b, 0, 0)),    # x1
            pl.BlockSpec((None, Np, 1), lambda b: (b, 0, 0)),    # y1
            pl.BlockSpec((None, Np, 1), lambda b: (b, 0, 0)),    # x2
            pl.BlockSpec((None, Np, 1), lambda b: (b, 0, 0)),    # y2
            w2(1, HW),                                           # yy coords
            w2(1, HW),                                           # xx coords
            pl.BlockSpec((None, Np, Np), lambda b: (b, 0, 0)),   # full_mask
            w2(Kp, Cc),                                          # w_conv
            w2(1, Cc),                                           # b_conv
            w2(Cc, H),                                           # w_fc
            w2(1, H),                                            # b_fc
            w2(H, 3 * H),                                        # w_hside
            w2(H, 3 * H),                                        # w_mside
            w2(H, H),                                            # u_h
            w2(1, 2 * H),                                        # b_zr
            w2(1, H),                                            # b_h
            w2(H, 2 * Cp),                                       # w_cls_cat
            w2(1, Cp),                                           # b_cls_pad
        ],
        out_specs=pl.BlockSpec((None, Np, Np, Cp), lambda b: (b, 0, 0, 0)),
        compiler_params=pltpu.CompilerParams(
            dimension_semantics=("parallel",)),
        # TODO(synk): if node_num / num_class are ever scaled up, tile the
        # (i, j) node-pair output axes over extra grid dims and set
        # vmem_limit_bytes; the (Np, Np, Cp) block grows quadratically and
        # would hit v7x's 64 MiB VMEM first.
    )(cols, x1, y1, x2, y2, yy, xx, mask,
      params['w_conv'], params['b_conv'], params['w_fc'], params['b_fc'],
      params['w_hside'], params['w_mside'], params['u_h'],
      params['b_zr'], params['b_h'], params['w_cls_cat'], params['b_cls_pad'])


# -----------------------------------------------------------------------------
# RIG model (thin JAX glue around the single fused Pallas kernel).
# -----------------------------------------------------------------------------
class RIGPallas:
    def __init__(self, num_class=5, hidden_dim=128, time_step=3, node_num=5,
                 conv_ch=16, in_ch=3, key=jax.random.PRNGKey(0)):
        self.num_class = num_class
        self.hidden_dim = hidden_dim
        self.time_step = time_step
        self.node_num = node_num
        self.node_pad = _round_up(node_num, 8)
        self.conv_ch = conv_ch
        self.in_ch = in_ch
        self.k_conv = _round_up(in_ch * 9, 8)
        H, C = hidden_dim, num_class
        Cp = _round_up(num_class, 128)
        self.class_pad = Cp
        ks = jax.random.split(key, 9)

        def init(k, shape, fan_in):
            return (jax.random.normal(k, shape, jnp.float32)
                    * (1.0 / jnp.sqrt(jnp.float32(fan_in))))

        # conv stem (stand-in for resnet101_roi)
        w_conv = init(ks[0], (in_ch * 9, conv_ch), in_ch * 9)
        # ROI feature FC
        w_fc = init(ks[1], (conv_ch, H), conv_ch)
        # GRRN parameters
        w_msg = init(ks[2], (H, H), H)
        w_zr = init(ks[3], (H, 2 * H), H)
        u_zr = init(ks[4], (H, 2 * H), H)
        w_h = init(ks[5], (H, H), H)
        u_h = init(ks[6], (H, H), H)
        # pairwise edge classifier
        w_cls1 = init(ks[7], (H, C), H)
        w_cls2 = init(ks[8], (H, C), H)

        # Pre-concatenate / pad weights once (outside the kernel & time loop).
        # TODO(synk): at a real hidden_dim, store these in bf16 (f32 MXU accum)
        # to halve weight DMA on v6e/v7x.
        self.params = {
            'w_conv': jnp.pad(w_conv, ((0, self.k_conv - in_ch * 9), (0, 0))),
            'b_conv': jnp.zeros((1, conv_ch), jnp.float32),
            'w_fc': w_fc,
            'b_fc': jnp.zeros((1, H), jnp.float32),
            'w_hside': jnp.concatenate([w_msg, u_zr], axis=1),      # [H, 3H]
            'w_mside': jnp.concatenate([w_zr, w_h], axis=1),        # [H, 3H]
            'u_h': u_h,
            'b_zr': jnp.zeros((1, 2 * H), jnp.float32),
            'b_h': jnp.zeros((1, H), jnp.float32),
            'w_cls_cat': jnp.concatenate(
                [jnp.pad(w_cls1, ((0, 0), (0, Cp - C))),
                 jnp.pad(w_cls2, ((0, 0), (0, Cp - C)))], axis=1),  # [H, 2Cp]
            'b_cls_pad': jnp.zeros((1, Cp), jnp.float32),            # [1, Cp]
        }

    def __call__(self, imgs, batch_bboxes, full_mask):
        B, Cin, Hs, Ws = imgs.shape
        assert Cin == self.in_ch
        Np = self.node_pad
        HW = Hs * Ws

        # im2col rows (XLA glue), K padded to a multiple of 8.
        cols = _im2col_3x3(imgs)                                   # [B, HW, Cin*9]
        cols = jnp.pad(cols, ((0, 0), (0, 0), (0, self.k_conv - Cin * 9)))

        # Per-node box bounds; padded nodes get an empty box so their pooled
        # feature is exactly zero (same as the previous zero-padded pooled).
        bb = batch_bboxes.astype(jnp.float32)                      # [B, node, 4]
        pad_box = jnp.broadcast_to(
            jnp.array([2.0 * Ws, 2.0 * Hs, -1.0, -1.0], jnp.float32),
            (B, Np - self.node_num, 4))
        bb = jnp.concatenate([bb, pad_box], axis=1)                # [B, Np, 4]
        x1 = bb[:, :, 0:1]
        y1 = bb[:, :, 1:2]
        x2 = bb[:, :, 2:3]
        y2 = bb[:, :, 3:4]

        # Flat pixel coordinate vectors (shared across the batch grid).
        hw = jnp.arange(HW, dtype=jnp.int32)
        yy = (hw // Ws).astype(jnp.float32).reshape(1, HW)
        xx = (hw % Ws).astype(jnp.float32).reshape(1, HW)

        mask_p = jnp.pad(full_mask.astype(jnp.float32),
                         ((0, 0), (0, Np - self.node_num),
                          (0, Np - self.node_num)))

        scores = rig_fused_pallas(cols, x1, y1, x2, y2, yy, xx, mask_p,
                                  self.params, self.time_step, self.hidden_dim)
        return scores[:, :self.node_num, :self.node_num, :self.num_class]


if __name__ == "__main__":
    key = jax.random.PRNGKey(0)
    k_img, k_mask, k_model = jax.random.split(key, 3)

    B, node_num, num_class, hidden_dim, time_step = 2, 5, 5, 128, 3
    Cin, Hs, Ws = 3, 32, 32

    imgs = jax.random.normal(k_img, (B, Cin, Hs, Ws), jnp.float32)
    batch_bboxes = jnp.tile(jnp.array(
        [[0.0, 0.0, 15.0, 15.0],
         [8.0, 8.0, 31.0, 31.0],
         [4.0, 0.0, 20.0, 12.0],
         [0.0, 10.0, 12.0, 30.0],
         [16.0, 2.0, 30.0, 28.0]], jnp.float32)[None], (B, 1, 1))
    full_mask = (jax.random.uniform(k_mask, (B, node_num, node_num))
                 > 0.5).astype(jnp.float32)

    model = RIGPallas(num_class=num_class, hidden_dim=hidden_dim,
                      time_step=time_step, node_num=node_num, key=k_model)

    all_scores = model(imgs, batch_bboxes, full_mask)
    jax.block_until_ready(all_scores)
    assert all_scores.shape == (B, node_num, node_num, num_class)
    assert bool(jnp.all(jnp.isfinite(all_scores)))
    print("KERNEL_OK")
</pallas_src>

<mosaic_0001>
module attributes {stable_mosaic.version = 11 : i64} {
  func.func @_rig_kernel(%arg0: i32, %arg1: memref<1x1024x32xf32, #tpu.memory_space<vmem>>, %arg2: memref<1x8x1xf32, #tpu.memory_space<vmem>>, %arg3: memref<1x8x1xf32, #tpu.memory_space<vmem>>, %arg4: memref<1x8x1xf32, #tpu.memory_space<vmem>>, %arg5: memref<1x8x1xf32, #tpu.memory_space<vmem>>, %arg6: memref<1x1024xf32, #tpu.memory_space<vmem>>, %arg7: memref<1x1024xf32, #tpu.memory_space<vmem>>, %arg8: memref<1x8x8xf32, #tpu.memory_space<vmem>>, %arg9: memref<32x16xf32, #tpu.memory_space<vmem>>, %arg10: memref<1x16xf32, #tpu.memory_space<vmem>>, %arg11: memref<16x128xf32, #tpu.memory_space<vmem>>, %arg12: memref<1x128xf32, #tpu.memory_space<vmem>>, %arg13: memref<128x384xf32, #tpu.memory_space<vmem>>, %arg14: memref<128x384xf32, #tpu.memory_space<vmem>>, %arg15: memref<128x128xf32, #tpu.memory_space<vmem>>, %arg16: memref<1x256xf32, #tpu.memory_space<vmem>>, %arg17: memref<1x128xf32, #tpu.memory_space<vmem>>, %arg18: memref<128x256xf32, #tpu.memory_space<vmem>>, %arg19: memref<1x128xf32, #tpu.memory_space<vmem>>, %arg20: memref<1x8x8x128xf32, #tpu.memory_space<vmem>>) attributes {dimension_semantics = [#tpu.dimension_semantics<parallel>], iteration_bounds = array<i64: 2>, scalar_prefetch = 0 : i64, scratch_operands = 0 : i64, tpu.core_type = #tpu.core_type<tc>, window_params = [{transform_indices = @transform_0, window_bounds = array<i64: 1, 1024, 32>}, {transform_indices = @transform_1, window_bounds = array<i64: 1, 8, 1>}, {transform_indices = @transform_2, window_bounds = array<i64: 1, 8, 1>}, {transform_indices = @transform_3, window_bounds = array<i64: 1, 8, 1>}, {transform_indices = @transform_4, window_bounds = array<i64: 1, 8, 1>}, {pipeline_mode = #tpu.pipeline_mode<synchronous>, transform_indices = @transform_5, window_bounds = array<i64: 1, 1024>}, {pipeline_mode = #tpu.pipeline_mode<synchronous>, transform_indices = @transform_6, window_bounds = array<i64: 1, 1024>}, {transform_indices = @transform_7, window_bounds = array<i64: 1, 8, 8>}, {pipeline_mode = #tpu.pipeline_mode<synchronous>, transform_indices = @transform_8, window_bounds = array<i64: 32, 16>}, {pipeline_mode = #tpu.pipeline_mode<synchronous>, transform_indices = @transform_9, window_bounds = array<i64: 1, 16>}, {pipeline_mode = #tpu.pipeline_mode<synchronous>, transform_indices = @transform_10, window_bounds = array<i64: 16, 128>}, {pipeline_mode = #tpu.pipeline_mode<synchronous>, transform_indices = @transform_11, window_bounds = array<i64: 1, 128>}, {pipeline_mode = #tpu.pipeline_mode<synchronous>, transform_indices = @transform_12, window_bounds = array<i64: 128, 384>}, {pipeline_mode = #tpu.pipeline_mode<synchronous>, transform_indices = @transform_13, window_bounds = array<i64: 128, 384>}, {pipeline_mode = #tpu.pipeline_mode<synchronous>, transform_indices = @transform_14, window_bounds = array<i64: 128, 128>}, {pipeline_mode = #tpu.pipeline_mode<synchronous>, transform_indices = @transform_15, window_bounds = array<i64: 1, 256>}, {pipeline_mode = #tpu.pipeline_mode<synchronous>, transform_indices = @transform_16, window_bounds = array<i64: 1, 128>}, {pipeline_mode = #tpu.pipeline_mode<synchronous>, transform_indices = @transform_17, window_bounds = array<i64: 128, 256>}, {pipeline_mode = #tpu.pipeline_mode<synchronous>, transform_indices = @transform_18, window_bounds = array<i64: 1, 128>}, {transform_indices = @transform_19, window_bounds = array<i64: 1, 8, 8, 128>}]} {
    %c0 = arith.constant 0 : index
    %c0_0 = arith.constant 0 : index
    %c0_1 = arith.constant 0 : index
    %0 = vector.load %arg1[%c0, %c0_0, %c0_1] : memref<1x1024x32xf32, #tpu.memory_space<vmem>>, vector<1x1024x32xf32>
    %1 = vector.shape_cast %0 : vector<1x1024x32xf32> to vector<1024x32xf32>
    %c0_2 = arith.constant 0 : index
    %c0_3 = arith.constant 0 : index
    %2 = vector.load %arg9[%c0_2, %c0_3] : memref<32x16xf32, #tpu.memory_space<vmem>>, vector<32x16xf32>
    %cst = arith.constant dense<0.000000e+00> : vector<1024x16xf32>
    %3 = tpu.matmul %1, %2, %cst {dimension_numbers = #tpu.dot_dimension_numbers<[1], [0], [0], [1], [0, 0, 1, 1], [], []>} : vector<1024x32xf32>, vector<32x16xf32>, vector<1024x16xf32> -> vector<1024x16xf32>
    %c0_4 = arith.constant 0 : index
    %c0_5 = arith.constant 0 : index
    %4 = vector.load %arg10[%c0_4, %c0_5] : memref<1x16xf32, #tpu.memory_space<vmem>>, vector<1x16xf32>
    %5 = vector.broadcast %4 : vector<1x16xf32> to vector<1024x16xf32>
    %6 = arith.addf %3, %5 : vector<1024x16xf32>
    %cst_6 = arith.constant 0.000000e+00 : f32
    %7 = vector.broadcast %cst_6 : f32 to vector<1024x16xf32>
    %8 = arith.maximumf %6, %7 : vector<1024x16xf32>
    %c0_7 = arith.constant 0 : index
    %c0_8 = arith.constant 0 : index
    %9 = vector.load %arg6[%c0_7, %c0_8] : memref<1x1024xf32, #tpu.memory_space<vmem>>, vector<1x1024xf32>
    %c0_9 = arith.constant 0 : index
    %c0_10 = arith.constant 0 : index
    %10 = vector.load %arg7[%c0_9, %c0_10] : memref<1x1024xf32, #tpu.memory_space<vmem>>, vector<1x1024xf32>
    %c0_11 = arith.constant 0 : index
    %c0_12 = arith.constant 0 : index
    %c0_13 = arith.constant 0 : index
    %11 = vector.load %arg3[%c0_11, %c0_12, %c0_13] : memref<1x8x1xf32, #tpu.memory_space<vmem>>, vector<1x8x1xf32>
    %12 = vector.shape_cast %11 : vector<1x8x1xf32> to vector<8x1xf32>
    %13 = vector.broadcast %9 : vector<1x1024xf32> to vector<8x1024xf32>
    %14 = vector.broadcast %12 : vector<8x1xf32> to vector<8x1024xf32>
    %15 = arith.cmpf oge, %13, %14 : vector<8x1024xf32>
    %c0_14 = arith.constant 0 : index
    %c0_15 = arith.constant 0 : index
    %c0_16 = arith.constant 0 : index
    %16 = vector.load %arg5[%c0_14, %c0_15, %c0_16] : memref<1x8x1xf32, #tpu.memory_space<vmem>>, vector<1x8x1xf32>
    %17 = vector.shape_cast %16 : vector<1x8x1xf32> to vector<8x1xf32>
    %18 = vector.broadcast %9 : vector<1x1024xf32> to vector<8x1024xf32>
    %19 = vector.broadcast %17 : vector<8x1xf32> to vector<8x1024xf32>
    %20 = arith.cmpf ole, %18, %19 : vector<8x1024xf32>
    %21 = arith.andi %15, %20 : vector<8x1024xi1>
    %c0_17 = arith.constant 0 : index
    %c0_18 = arith.constant 0 : index
    %c0_19 = arith.constant 0 : index
    %22 = vector.load %arg2[%c0_17, %c0_18, %c0_19] : memref<1x8x1xf32, #tpu.memory_space<vmem>>, vector<1x8x1xf32>
    %23 = vector.shape_cast %22 : vector<1x8x1xf32> to vector<8x1xf32>
    %24 = vector.broadcast %10 : vector<1x1024xf32> to vector<8x1024xf32>
    %25 = vector.broadcast %23 : vector<8x1xf32> to vector<8x1024xf32>
    %26 = arith.cmpf oge, %24, %25 : vector<8x1024xf32>
    %27 = arith.andi %21, %26 : vector<8x1024xi1>
    %c0_20 = arith.constant 0 : index
    %c0_21 = arith.constant 0 : index
    %c0_22 = arith.constant 0 : index
    %28 = vector.load %arg4[%c0_20, %c0_21, %c0_22] : memref<1x8x1xf32, #tpu.memory_space<vmem>>, vector<1x8x1xf32>
    %29 = vector.shape_cast %28 : vector<1x8x1xf32> to vector<8x1xf32>
    %30 = vector.broadcast %10 : vector<1x1024xf32> to vector<8x1024xf32>
    %31 = vector.broadcast %29 : vector<8x1xf32> to vector<8x1024xf32>
    %32 = arith.cmpf ole, %30, %31 : vector<8x1024xf32>
    %33 = arith.andi %27, %32 : vector<8x1024xi1>
    %34 = arith.extui %33 : vector<8x1024xi1> to vector<8x1024xi32>
    %35 = arith.sitofp %34 : vector<8x1024xi32> to vector<8x1024xf32>
    %cst_23 = arith.constant dense<0.000000e+00> : vector<8x16xf32>
    %36 = tpu.matmul %35, %8, %cst_23 {dimension_numbers = #tpu.dot_dimension_numbers<[1], [0], [0], [1], [0, 0, 1, 1], [], []>} : vector<8x1024xf32>, vector<1024x16xf32>, vector<8x16xf32> -> vector<8x16xf32>
    %cst_24 = arith.constant dense<0.000000e+00> : vector<8xf32>
    %37 = vector.multi_reduction <add>, %35, %cst_24 [1] : vector<8x1024xf32> to vector<8xf32>
    %38 = vector.shape_cast %37 : vector<8xf32> to vector<8x1xf32>
    %cst_25 = arith.constant 1.000000e+00 : f32
    %39 = vector.broadcast %cst_25 : f32 to vector<8x1xf32>
    %40 = arith.maximumf %38, %39 : vector<8x1xf32>
    %41 = vector.broadcast %40 : vector<8x1xf32> to vector<8x16xf32>
    %42 = arith.divf %36, %41 : vector<8x16xf32>
    %c0_26 = arith.constant 0 : index
    %c0_27 = arith.constant 0 : index
    %43 = vector.load %arg11[%c0_26, %c0_27] : memref<16x128xf32, #tpu.memory_space<vmem>>, vector<16x128xf32>
    %cst_28 = arith.constant dense<0.000000e+00> : vector<8x128xf32>
    %44 = tpu.matmul %42, %43, %cst_28 {dimension_numbers = #tpu.dot_dimension_numbers<[1], [0], [0], [1], [0, 0, 1, 1], [], []>} : vector<8x16xf32>, vector<16x128xf32>, vector<8x128xf32> -> vector<8x128xf32>
    %c0_29 = arith.constant 0 : index
    %c0_30 = arith.constant 0 : index
    %45 = vector.load %arg12[%c0_29, %c0_30] : memref<1x128xf32, #tpu.memory_space<vmem>>, vector<1x128xf32>
    %46 = vector.broadcast %45 : vector<1x128xf32> to vector<8x128xf32>
    %47 = arith.addf %44, %46 : vector<8x128xf32>
    %cst_31 = arith.constant 0.000000e+00 : f32
    %48 = vector.broadcast %cst_31 : f32 to vector<8x128xf32>
    %49 = arith.maximumf %47, %48 : vector<8x128xf32>
    %c0_32 = arith.constant 0 : index
    %c0_33 = arith.constant 0 : index
    %c0_34 = arith.constant 0 : index
    %50 = vector.load %arg8[%c0_32, %c0_33, %c0_34] : memref<1x8x8xf32, #tpu.memory_space<vmem>>, vector<1x8x8xf32>
    %51 = vector.shape_cast %50 : vector<1x8x8xf32> to vector<8x8xf32>
    %c0_35 = arith.constant 0 : index
    %c0_36 = arith.constant 0 : index
    %52 = vector.load %arg13[%c0_35, %c0_36] : memref<128x384xf32, #tpu.memory_space<vmem>>, vector<128x384xf32>
    %c0_37 = arith.constant 0 : index
    %c0_38 = arith.constant 0 : index
    %53 = vector.load %arg14[%c0_37, %c0_38] : memref<128x384xf32, #tpu.memory_space<vmem>>, vector<128x384xf32>
    %c0_39 = arith.constant 0 : index
    %c0_40 = arith.constant 0 : index
    %54 = vector.load %arg15[%c0_39, %c0_40] : memref<128x128xf32, #tpu.memory_space<vmem>>, vector<128x128xf32>
    %c0_41 = arith.constant 0 : index
    %c0_42 = arith.constant 0 : index
    %55 = vector.load %arg16[%c0_41, %c0_42] : memref<1x256xf32, #tpu.memory_space<vmem>>, vector<1x256xf32>
    %56 = vector.shape_cast %55 : vector<1x256xf32> to vector<1x256xf32>
    %57 = vector.broadcast %56 : vector<1x256xf32> to vector<8x256xf32>
    %c0_43 = arith.constant 0 : index
    %c0_44 = arith.constant 0 : index
    %58 = vector.load %arg17[%c0_43, %c0_44] : memref<1x128xf32, #tpu.memory_space<vmem>>, vector<1x128xf32>
    %59 = vector.shape_cast %58 : vector<1x128xf32> to vector<1x128xf32>
    %60 = vector.broadcast %59 : vector<1x128xf32> to vector<8x128xf32>
    %cst_45 = arith.constant dense<0.000000e+00> : vector<8x384xf32>
    %61 = tpu.matmul %49, %52, %cst_45 {dimension_numbers = #tpu.dot_dimension_numbers<[1], [0], [0], [1], [0, 0, 1, 1], [], []>} : vector<8x128xf32>, vector<128x384xf32>, vector<8x384xf32> -> vector<8x384xf32>
    %62 = vector.extract_strided_slice %61 {offsets = [0, 0], sizes = [8, 128], strides = [1, 1]} : vector<8x384xf32> to vector<8x128xf32>
    %63 = vector.extract_strided_slice %61 {offsets = [0, 128], sizes = [8, 256], strides = [1, 1]} : vector<8x384xf32> to vector<8x256xf32>
    %cst_46 = arith.constant dense<0.000000e+00> : vector<8x128xf32>
    %64 = tpu.matmul %51, %62, %cst_46 {dimension_numbers = #tpu.dot_dimension_numbers<[1], [0], [0], [1], [0, 0, 1, 1], [], []>} : vector<8x8xf32>, vector<8x128xf32>, vector<8x128xf32> -> vector<8x128xf32>
    %cst_47 = arith.constant dense<0.000000e+00> : vector<8x384xf32>
    %65 = tpu.matmul %64, %53, %cst_47 {dimension_numbers = #tpu.dot_dimension_numbers<[1], [0], [0], [1], [0, 0, 1, 1], [], []>} : vector<8x128xf32>, vector<128x384xf32>, vector<8x384xf32> -> vector<8x384xf32>
    %66 = vector.extract_strided_slice %65 {offsets = [0, 0], sizes = [8, 256], strides = [1, 1]} : vector<8x384xf32> to vector<8x256xf32>
    %67 = arith.addf %66, %63 : vector<8x256xf32>
    %68 = arith.addf %67, %57 : vector<8x256xf32>
    %69 = vector.extract_strided_slice %68 {offsets = [0, 0], sizes = [8, 128], strides = [1, 1]} : vector<8x256xf32> to vector<8x128xf32>
    %70 = arith.negf %69 : vector<8x128xf32>
    %71 = math.exp %70 : vector<8x128xf32>
    %cst_48 = arith.constant 1.000000e+00 : f32
    %72 = vector.broadcast %cst_48 : f32 to vector<8x128xf32>
    %73 = arith.addf %72, %71 : vector<8x128xf32>
    %74 = arith.divf %72, %73 : vector<8x128xf32>
    %75 = vector.extract_strided_slice %68 {offsets = [0, 128], sizes = [8, 128], strides = [1, 1]} : vector<8x256xf32> to vector<8x128xf32>
    %76 = arith.negf %75 : vector<8x128xf32>
    %77 = math.exp %76 : vector<8x128xf32>
    %cst_49 = arith.constant 1.000000e+00 : f32
    %78 = vector.broadcast %cst_49 : f32 to vector<8x128xf32>
    %79 = arith.addf %78, %77 : vector<8x128xf32>
    %80 = arith.divf %78, %79 : vector<8x128xf32>
    %81 = vector.extract_strided_slice %65 {offsets = [0, 256], sizes = [8, 128], strides = [1, 1]} : vector<8x384xf32> to vector<8x128xf32>
    %82 = arith.mulf %80, %49 : vector<8x128xf32>
    %cst_50 = arith.constant dense<0.000000e+00> : vector<8x128xf32>
    %83 = tpu.matmul %82, %54, %cst_50 {dimension_numbers = #tpu.dot_dimension_numbers<[1], [0], [0], [1], [0, 0, 1, 1], [], []>} : vector<8x128xf32>, vector<128x128xf32>, vector<8x128xf32> -> vector<8x128xf32>
    %84 = arith.addf %81, %83 : vector<8x128xf32>
    %85 = arith.addf %84, %60 : vector<8x128xf32>
    %86 = math.tanh %85 : vector<8x128xf32>
    %cst_51 = arith.constant 1.000000e+00 : f32
    %87 = vector.broadcast %cst_51 : f32 to vector<8x128xf32>
    %88 = arith.subf %87, %74 : vector<8x128xf32>
    %89 = arith.mulf %88, %49 : vector<8x128xf32>
    %90 = arith.mulf %74, %86 : vector<8x128xf32>
    %91 = arith.addf %89, %90 : vector<8x128xf32>
    %cst_52 = arith.constant dense<0.000000e+00> : vector<8x384xf32>
    %92 = tpu.matmul %91, %52, %cst_52 {dimension_numbers = #tpu.dot_dimension_numbers<[1], [0], [0], [1], [0, 0, 1, 1], [], []>} : vector<8x128xf32>, vector<128x384xf32>, vector<8x384xf32> -> vector<8x384xf32>
    %93 = vector.extract_strided_slice %92 {offsets = [0, 0], sizes = [8, 128], strides = [1, 1]} : vector<8x384xf32> to vector<8x128xf32>
    %94 = vector.extract_strided_slice %92 {offsets = [0, 128], sizes = [8, 256], strides = [1, 1]} : vector<8x384xf32> to vector<8x256xf32>
    %cst_53 = arith.constant dense<0.000000e+00> : vector<8x128xf32>
    %95 = tpu.matmul %51, %93, %cst_53 {dimension_numbers = #tpu.dot_dimension_numbers<[1], [0], [0], [1], [0, 0, 1, 1], [], []>} : vector<8x8xf32>, vector<8x128xf32>, vector<8x128xf32> -> vector<8x128xf32>
    %cst_54 = arith.constant dense<0.000000e+00> : vector<8x384xf32>
    %96 = tpu.matmul %95, %53, %cst_54 {dimension_numbers = #tpu.dot_dimension_numbers<[1], [0], [0], [1], [0, 0, 1, 1], [], []>} : vector<8x128xf32>, vector<128x384xf32>, vector<8x384xf32> -> vector<8x384xf32>
    %97 = vector.extract_strided_slice %96 {offsets = [0, 0], sizes = [8, 256], strides = [1, 1]} : vector<8x384xf32> to vector<8x256xf32>
    %98 = arith.addf %97, %94 : vector<8x256xf32>
    %99 = arith.addf %98, %57 : vector<8x256xf32>
    %100 = vector.extract_strided_slice %99 {offsets = [0, 0], sizes = [8, 128], strides = [1, 1]} : vector<8x256xf32> to vector<8x128xf32>
    %101 = arith.negf %100 : vector<8x128xf32>
    %102 = math.exp %101 : vector<8x128xf32>
    %cst_55 = arith.constant 1.000000e+00 : f32
    %103 = vector.broadcast %cst_55 : f32 to vector<8x128xf32>
    %104 = arith.addf %103, %102 : vector<8x128xf32>
    %105 = arith.divf %103, %104 : vector<8x128xf32>
    %106 = vector.extract_strided_slice %99 {offsets = [0, 128], sizes = [8, 128], strides = [1, 1]} : vector<8x256xf32> to vector<8x128xf32>
    %107 = arith.negf %106 : vector<8x128xf32>
    %108 = math.exp %107 : vector<8x128xf32>
    %cst_56 = arith.constant 1.000000e+00 : f32
    %109 = vector.broadcast %cst_56 : f32 to vector<8x128xf32>
    %110 = arith.addf %109, %108 : vector<8x128xf32>
    %111 = arith.divf %109, %110 : vector<8x128xf32>
    %112 = vector.extract_strided_slice %96 {offsets = [0, 256], sizes = [8, 128], strides = [1, 1]} : vector<8x384xf32> to vector<8x128xf32>
    %113 = arith.mulf %111, %91 : vector<8x128xf32>
    %cst_57 = arith.constant dense<0.000000e+00> : vector<8x128xf32>
    %114 = tpu.matmul %113, %54, %cst_57 {dimension_numbers = #tpu.dot_dimension_numbers<[1], [0], [0], [1], [0, 0, 1, 1], [], []>} : vector<8x128xf32>, vector<128x128xf32>, vector<8x128xf32> -> vector<8x128xf32>
    %115 = arith.addf %112, %114 : vector<8x128xf32>
    %116 = arith.addf %115, %60 : vector<8x128xf32>
    %117 = math.tanh %116 : vector<8x128xf32>
    %cst_58 = arith.constant 1.000000e+00 : f32
    %118 = vector.broadcast %cst_58 : f32 to vector<8x128xf32>
    %119 = arith.subf %118, %105 : vector<8x128xf32>
    %120 = arith.mulf %119, %91 : vector<8x128xf32>
    %121 = arith.mulf %105, %117 : vector<8x128xf32>
    %122 = arith.addf %120, %121 : vector<8x128xf32>
    %cst_59 = arith.constant dense<0.000000e+00> : vector<8x384xf32>
    %123 = tpu.matmul %122, %52, %cst_59 {dimension_numbers = #tpu.dot_dimension_numbers<[1], [0], [0], [1], [0, 0, 1, 1], [], []>} : vector<8x128xf32>, vector<128x384xf32>, vector<8x384xf32> -> vector<8x384xf32>
    %124 = vector.extract_strided_slice %123 {offsets = [0, 0], sizes = [8, 128], strides = [1, 1]} : vector<8x384xf32> to vector<8x128xf32>
    %125 = vector.extract_strided_slice %123 {offsets = [0, 128], sizes = [8, 256], strides = [1, 1]} : vector<8x384xf32> to vector<8x256xf32>
    %cst_60 = arith.constant dense<0.000000e+00> : vector<8x128xf32>
    %126 = tpu.matmul %51, %124, %cst_60 {dimension_numbers = #tpu.dot_dimension_numbers<[1], [0], [0], [1], [0, 0, 1, 1], [], []>} : vector<8x8xf32>, vector<8x128xf32>, vector<8x128xf32> -> vector<8x128xf32>
    %cst_61 = arith.constant dense<0.000000e+00> : vector<8x384xf32>
    %127 = tpu.matmul %126, %53, %cst_61 {dimension_numbers = #tpu.dot_dimension_numbers<[1], [0], [0], [1], [0, 0, 1, 1], [], []>} : vector<8x128xf32>, vector<128x384xf32>, vector<8x384xf32> -> vector<8x384xf32>
    %128 = vector.extract_strided_slice %127 {offsets = [0, 0], sizes = [8, 256], strides = [1, 1]} : vector<8x384xf32> to vector<8x256xf32>
    %129 = arith.addf %128, %125 : vector<8x256xf32>
    %130 = arith.addf %129, %57 : vector<8x256xf32>
    %131 = vector.extract_strided_slice %130 {offsets = [0, 0], sizes = [8, 128], strides = [1, 1]} : vector<8x256xf32> to vector<8x128xf32>
    %132 = arith.negf %131 : vector<8x128xf32>
    %133 = math.exp %132 : vector<8x128xf32>
    %cst_62 = arith.constant 1.000000e+00 : f32
    %134 = vector.broadcast %cst_62 : f32 to vector<8x128xf32>
    %135 = arith.addf %134, %133 : vector<8x128xf32>
    %136 = arith.divf %134, %135 : vector<8x128xf32>
    %137 = vector.extract_strided_slice %130 {offsets = [0, 128], sizes = [8, 128], strides = [1, 1]} : vector<8x256xf32> to vector<8x128xf32>
    %138 = arith.negf %137 : vector<8x128xf32>
    %139 = math.exp %138 : vector<8x128xf32>
    %cst_63 = arith.constant 1.000000e+00 : f32
    %140 = vector.broadcast %cst_63 : f32 to vector<8x128xf32>
    %141 = arith.addf %140, %139 : vector<8x128xf32>
    %142 = arith.divf %140, %141 : vector<8x128xf32>
    %143 = vector.extract_strided_slice %127 {offsets = [0, 256], sizes = [8, 128], strides = [1, 1]} : vector<8x384xf32> to vector<8x128xf32>
    %144 = arith.mulf %142, %122 : vector<8x128xf32>
    %cst_64 = arith.constant dense<0.000000e+00> : vector<8x128xf32>
    %145 = tpu.matmul %144, %54, %cst_64 {dimension_numbers = #tpu.dot_dimension_numbers<[1], [0], [0], [1], [0, 0, 1, 1], [], []>} : vector<8x128xf32>, vector<128x128xf32>, vector<8x128xf32> -> vector<8x128xf32>
    %146 = arith.addf %143, %145 : vector<8x128xf32>
    %147 = arith.addf %146, %60 : vector<8x128xf32>
    %148 = math.tanh %147 : vector<8x128xf32>
    %cst_65 = arith.constant 1.000000e+00 : f32
    %149 = vector.broadcast %cst_65 : f32 to vector<8x128xf32>
    %150 = arith.subf %149, %136 : vector<8x128xf32>
    %151 = arith.mulf %150, %122 : vector<8x128xf32>
    %152 = arith.mulf %136, %148 : vector<8x128xf32>
    %153 = arith.addf %151, %152 : vector<8x128xf32>
    %c0_66 = arith.constant 0 : index
    %c0_67 = arith.constant 0 : index
    %154 = vector.load %arg18[%c0_66, %c0_67] : memref<128x256xf32, #tpu.memory_space<vmem>>, vector<128x256xf32>
    %cst_68 = arith.constant dense<0.000000e+00> : vector<8x256xf32>
    %155 = tpu.matmul %153, %154, %cst_68 {dimension_numbers = #tpu.dot_dimension_numbers<[1], [0], [0], [1], [0, 0, 1, 1], [], []>} : vector<8x128xf32>, vector<128x256xf32>, vector<8x256xf32> -> vector<8x256xf32>
    %156 = vector.extract_strided_slice %155 {offsets = [0, 0], sizes = [8, 128], strides = [1, 1]} : vector<8x256xf32> to vector<8x128xf32>
    %157 = vector.extract_strided_slice %155 {offsets = [0, 128], sizes = [8, 128], strides = [1, 1]} : vector<8x256xf32> to vector<8x128xf32>
    %c0_69 = arith.constant 0 : index
    %c0_70 = arith.constant 0 : index
    %158 = vector.load %arg19[%c0_69, %c0_70] : memref<1x128xf32, #tpu.memory_space<vmem>>, vector<1x128xf32>
    %159 = vector.broadcast %158 : vector<1x128xf32> to vector<8x128xf32>
    %160 = arith.addf %157, %159 : vector<8x128xf32>
    %161 = vector.shape_cast %156 : vector<8x128xf32> to vector<8x1x128xf32>
    %162 = vector.shape_cast %160 : vector<8x128xf32> to vector<1x8x128xf32>
    %163 = vector.broadcast %161 : vector<8x1x128xf32> to vector<8x8x128xf32>
    %164 = vector.broadcast %162 : vector<1x8x128xf32> to vector<8x8x128xf32>
    %165 = arith.addf %163, %164 : vector<8x8x128xf32>
    %c0_71 = arith.constant 0 : index
    %c0_72 = arith.constant 0 : index
    %c0_73 = arith.constant 0 : index
    %c0_74 = arith.constant 0 : index
    %166 = vector.load %arg20[%c0_71, %c0_72, %c0_73, %c0_74] : memref<1x8x8x128xf32, #tpu.memory_space<vmem>>, vector<1x8x8x128xf32>
    %167 = vector.shape_cast %166 : vector<1x8x8x128xf32> to vector<8x8x128xf32>
    %168 = vector.shape_cast %165 : vector<8x8x128xf32> to vector<1x8x8x128xf32>
    tpu.vector_store %arg20[%c0_71, %c0_72, %c0_73, %c0_74], %168 {strides = array<i32>} : memref<1x8x8x128xf32, #tpu.memory_space<vmem>>, vector<1x8x8x128xf32>,
    return
  }
  func.func @transform_0(%arg0: i32) -> (i32, i32, i32) {
    %c0_i32 = arith.constant 0 : i32
    %c0_i32_0 = arith.constant 0 : i32
    %c0_i32_1 = arith.constant 0 : i32
    return %arg0, %c0_i32, %c0_i32_0 : i32, i32, i32
  }
  func.func @transform_1(%arg0: i32) -> (i32, i32, i32) {
    %c0_i32 = arith.constant 0 : i32
    %c0_i32_0 = arith.constant 0 : i32
    %c0_i32_1 = arith.constant 0 : i32
    return %arg0, %c0_i32, %c0_i32_0 : i32, i32, i32
  }
  func.func @transform_2(%arg0: i32) -> (i32, i32, i32) {
    %c0_i32 = arith.constant 0 : i32
    %c0_i32_0 = arith.constant 0 : i32
    %c0_i32_1 = arith.constant 0 : i32
    return %arg0, %c0_i32, %c0_i32_0 : i32, i32, i32
  }
  func.func @transform_3(%arg0: i32) -> (i32, i32, i32) {
    %c0_i32 = arith.constant 0 : i32
    %c0_i32_0 = arith.constant 0 : i32
    %c0_i32_1 = arith.constant 0 : i32
    return %arg0, %c0_i32, %c0_i32_0 : i32, i32, i32
  }
  func.func @transform_4(%arg0: i32) -> (i32, i32, i32) {
    %c0_i32 = arith.constant 0 : i32
    %c0_i32_0 = arith.constant 0 : i32
    %c0_i32_1 = arith.constant 0 : i32
    return %arg0, %c0_i32, %c0_i32_0 : i32, i32, i32
  }
  func.func @transform_5(%arg0: i32) -> (i32, i32) {
    %c0_i32 = arith.constant 0 : i32
    %c0_i32_0 = arith.constant 0 : i32
    %c0_i32_1 = arith.constant 0 : i32
    return %c0_i32, %c0_i32_0 : i32, i32
  }
  func.func @transform_6(%arg0: i32) -> (i32, i32) {
    %c0_i32 = arith.constant 0 : i32
    %c0_i32_0 = arith.constant 0 : i32
    %c0_i32_1 = arith.constant 0 : i32
    return %c0_i32, %c0_i32_0 : i32, i32
  }
  func.func @transform_7(%arg0: i32) -> (i32, i32, i32) {
    %c0_i32 = arith.constant 0 : i32
    %c0_i32_0 = arith.constant 0 : i32
    %c0_i32_1 = arith.constant 0 : i32
    return %arg0, %c0_i32, %c0_i32_0 : i32, i32, i32
  }
  func.func @transform_8(%arg0: i32) -> (i32, i32) {
    %c0_i32 = arith.constant 0 : i32
    %c0_i32_0 = arith.constant 0 : i32
    %c0_i32_1 = arith.constant 0 : i32
    return %c0_i32, %c0_i32_0 : i32, i32
  }
  func.func @transform_9(%arg0: i32) -> (i32, i32) {
    %c0_i32 = arith.constant 0 : i32
    %c0_i32_0 = arith.constant 0 : i32
    %c0_i32_1 = arith.constant 0 : i32
    return %c0_i32, %c0_i32_0 : i32, i32
  }
  func.func @transform_10(%arg0: i32) -> (i32, i32) {
    %c0_i32 = arith.constant 0 : i32
    %c0_i32_0 = arith.constant 0 : i32
    %c0_i32_1 = arith.constant 0 : i32
    return %c0_i32, %c0_i32_0 : i32, i32
  }
  func.func @transform_11(%arg0: i32) -> (i32, i32) {
    %c0_i32 = arith.constant 0 : i32
    %c0_i32_0 = arith.constant 0 : i32
    %c0_i32_1 = arith.constant 0 : i32
    return %c0_i32, %c0_i32_0 : i32, i32
  }
  func.func @transform_12(%arg0: i32) -> (i32, i32) {
    %c0_i32 = arith.constant 0 : i32
    %c0_i32_0 = arith.constant 0 : i32
    %c0_i32_1 = arith.constant 0 : i32
    return %c0_i32, %c0_i32_0 : i32, i32
  }
  func.func @transform_13(%arg0: i32) -> (i32, i32) {
    %c0_i32 = arith.constant 0 : i32
    %c0_i32_0 = arith.constant 0 : i32
    %c0_i32_1 = arith.constant 0 : i32
    return %c0_i32, %c0_i32_0 : i32, i32
  }
  func.func @transform_14(%arg0: i32) -> (i32, i32) {
    %c0_i32 = arith.constant 0 : i32
    %c0_i32_0 = arith.constant 0 : i32
    %c0_i32_1 = arith.constant 0 : i32
    return %c0_i32, %c0_i32_0 : i32, i32
  }
  func.func @transform_15(%arg0: i32) -> (i32, i32) {
    %c0_i32 = arith.constant 0 : i32
    %c0_i32_0 = arith.constant 0 : i32
    %c0_i32_1 = arith.constant 0 : i32
    return %c0_i32, %c0_i32_0 : i32, i32
  }
  func.func @transform_16(%arg0: i32) -> (i32, i32) {
    %c0_i32 = arith.constant 0 : i32
    %c0_i32_0 = arith.constant 0 : i32
    %c0_i32_1 = arith.constant 0 : i32
    return %c0_i32, %c0_i32_0 : i32, i32
  }
  func.func @transform_17(%arg0: i32) -> (i32, i32) {
    %c0_i32 = arith.constant 0 : i32
    %c0_i32_0 = arith.constant 0 : i32
    %c0_i32_1 = arith.constant 0 : i32
    return %c0_i32, %c0_i32_0 : i32, i32
  }
  func.func @transform_18(%arg0: i32) -> (i32, i32) {
    %c0_i32 = arith.constant 0 : i32
    %c0_i32_0 = arith.constant 0 : i32
    %c0_i32_1 = arith.constant 0 : i32
    return %c0_i32, %c0_i32_0 : i32, i32
  }
  func.func @transform_19(%arg0: i32) -> (i32, i32, i32, i32) {
    %c0_i32 = arith.constant 0 : i32
    %c0_i32_0 = arith.constant 0 : i32
    %c0_i32_1 = arith.constant 0 : i32
    %c0_i32_2 = arith.constant 0 : i32
    return %arg0, %c0_i32, %c0_i32_0, %c0_i32_1 : i32, i32, i32, i32
  }
}

</mosaic_0001>

<llo_original>
// kernel: tpu_custom_call.1
$region0: #{tpu_custom_call.1}
  #allocation0 [shape = 'u32[]', space=smem, size = 0x4, offset = 0x4, fixed_abs, tag = 'smem constant byte address 0x4 - core index']
  #allocation1 [shape = 'u32[144,128]{1,0:T(1,128)}', space=vmem, size = 0x12000, scoped, tag = 'internal scratch']
  %s0 = inlined_call_operand.vmem [shape: f32[2,1024,32], index: 0, kind: input, shape index: {}]
  %s1 = inlined_call_operand.vmem [shape: f32[2,8,1], index: 1, kind: input, shape index: {}]
  %s2 = inlined_call_operand.vmem [shape: f32[2,8,1], index: 2, kind: input, shape index: {}]
  %s3 = inlined_call_operand.vmem [shape: f32[2,8,1], index: 3, kind: input, shape index: {}]
  %s4 = inlined_call_operand.vmem [shape: f32[2,8,1], index: 4, kind: input, shape index: {}]
  %s5 = inlined_call_operand.vmem [shape: f32[1,1024], index: 5, kind: input, shape index: {}]
  %s6 = inlined_call_operand.vmem [shape: f32[1,1024], index: 6, kind: input, shape index: {}]
  %s7 = inlined_call_operand.vmem [shape: f32[2,8,8], index: 7, kind: input, shape index: {}]
  %s8 = inlined_call_operand.vmem [shape: f32[32,16], index: 8, kind: input, shape index: {}]
  %s9 = inlined_call_operand.vmem [shape: f32[1,16], index: 9, kind: input, shape index: {}]
  %s10 = inlined_call_operand.vmem [shape: f32[16,128], index: 10, kind: input, shape index: {}]
  %s11 = inlined_call_operand.vmem [shape: f32[1,128], index: 11, kind: input, shape index: {}]
  %s12 = inlined_call_operand.vmem [shape: f32[128,384], index: 12, kind: input, shape index: {}]
  %s13 = inlined_call_operand.vmem [shape: f32[128,384], index: 13, kind: input, shape index: {}]
  %s14 = inlined_call_operand.vmem [shape: f32[128,128], index: 14, kind: input, shape index: {}]
  %s15 = inlined_call_operand.vmem [shape: f32[1,256], index: 15, kind: input, shape index: {}]
  %s16 = inlined_call_operand.vmem [shape: f32[1,128], index: 16, kind: input, shape index: {}]
  %s17 = inlined_call_operand.vmem [shape: f32[128,256], index: 17, kind: input, shape index: {}]
  %s18 = inlined_call_operand.vmem [shape: f32[1,128], index: 18, kind: input, shape index: {}]
  %s19 = inlined_call_operand.hbm [shape: f32[2,8,8,128], index: 19, kind: output, shape index: {}]
  %s20 = sld [smem:[#allocation0]]
  $region109: #{tpu_custom_call.1} parent=0
    _
  %s22 = ssub.s32 1, %s20
  %s23 = scalar_select 0, %s22, %s20
  $region1: #{tpu_custom_call.1} parent=0
    #allocation2 [shape = 'u8[65536]{0}', space=vmem, size = 0x10000, scoped, tag = 'output window, operand 0']
    #allocation3 [shape = 's32[2]{0}', space=sflag, size = 0x8, scoped, tag = 'scoped memory for tpu_custom_call.1']
    %24 = vsyncpa [#allocation3], 0
    %s25 = scalar_lea.sflag [#allocation3], 1
    %26 = vsyncpa %s25, 0
    loop: start=0, step=1, limit=4
    $region2: #{tpu_custom_call.1} parent=1 // loop_pre_header
      _
    $region3: #{tpu_custom_call.1} parent=1 // loop_header
      %s28 = sphi 0, %s32
      %p29 = scmp.ge.s32.totalorder %s28, 4
      %s38 = sphi 0, %s40
      %s41 = sphi 0, %s38
      %s42 = sphi 0, %s41
      %s58 = sphi 0, %s42
      %s64 = sphi 0, %s66
      %s67 = sphi 0, %s64
      %s68 = sphi 0, %s67
      %s84 = sphi 0, %s68
      %s90 = sphi 0, %s92
      %s93 = sphi 0, %s90
      %s94 = sphi 0, %s93
      %s110 = sphi 0, %s94
      %s116 = sphi 0, %s118
      %s119 = sphi 0, %s116
      %s120 = sphi 0, %s119
      %s136 = sphi 0, %s120
      %s142 = sphi 0, %s144
      %s145 = sphi 0, %s142
      %s146 = sphi 0, %s145
      %s162 = sphi 0, %s146
      %s166 = sphi 0, %s166
      %s168 = sphi 0, %s166
      %s169 = sphi 0, %s168
      %s183 = sphi 0, %s169
      %s187 = sphi 0, %s187
      %s189 = sphi 0, %s187
      %s190 = sphi 0, %s189
      %s204 = sphi 0, %s190
      %s210 = sphi 0, %s212
      %s213 = sphi 0, %s210
      %s214 = sphi 0, %s213
      %s230 = sphi 0, %s214
      %s234 = sphi 0, %s234
      %s236 = sphi 0, %s234
      %s237 = sphi 0, %s236
      %s251 = sphi 0, %s237
      %s255 = sphi 0, %s255
      %s257 = sphi 0, %s255
      %s258 = sphi 0, %s257
      %s272 = sphi 0, %s258
      %s276 = sphi 0, %s276
      %s278 = sphi 0, %s276
      %s279 = sphi 0, %s278
      %s293 = sphi 0, %s279
      %s297 = sphi 0, %s297
      %s299 = sphi 0, %s297
      %s300 = sphi 0, %s299
      %s314 = sphi 0, %s300
      %s318 = sphi 0, %s318
      %s320 = sphi 0, %s318
      %s321 = sphi 0, %s320
      %s335 = sphi 0, %s321
      %s339 = sphi 0, %s339
      %s341 = sphi 0, %s339
      %s342 = sphi 0, %s341
      %s356 = sphi 0, %s342
      %s360 = sphi 0, %s360
      %s362 = sphi 0, %s360
      %s363 = sphi 0, %s362
      %s377 = sphi 0, %s363
      %s381 = sphi 0, %s381
      %s383 = sphi 0, %s381
      %s384 = sphi 0, %s383
      %s398 = sphi 0, %s384
      %s402 = sphi 0, %s402
      %s404 = sphi 0, %s402
      %s405 = sphi 0, %s404
      %s419 = sphi 0, %s405
      %s423 = sphi 0, %s423
      %s425 = sphi 0, %s423
      %s426 = sphi 0, %s425
      %s440 = sphi 0, %s426
      %s444 = sphi 0, %s444
      %s446 = sphi 0, %s444
      %s447 = sphi 0, %s446
      %s461 = sphi 0, %s447
      %s467 = sphi 0, %s469
      %s470 = sphi 0, %s467
      %s471 = sphi 0, %s470
      %s487 = sphi 0, %s471
    $region4: #{tpu_custom_call.1} parent=1 // loop_header_branch
      %31 = sbr.rel (%p29) target = $region8
    $region5: #{tpu_custom_call.1} parent=1 // loop_body
      %s33 = ssub.s32 %s28, 1
      %s34 = ssub.s32 %s28, 2
      %s35 = sadd.s32 %s28, 1
      %s36 = ssub.s32 %s28, %s35
      %p37 = scmp.eq.s32.totalorder %s36, 0
      %s39 = sadd.s32 %s38, 1
      %s40 = scalar_select %p37, %s38, %s39
      %p43 = pneg %p37
      %p44 = scmp.eq.s32.totalorder %s28, 1
      %p45 = por %p43, %p44
      %p46 = scmp.ne.s32.totalorder %s38, %s41
      %p47 = scmp.eq.s32.totalorder %s28, 0
      %p48 = por %p46, %p47
      %p49 = scmp.ne.s32.totalorder %s38, %s41
      %p50 = scmp.eq.s32.totalorder %s33, 1
      %p51 = por %p49, %p50
      %p52 = scmp.ne.s32.totalorder %s41, %s42
      %p53 = scmp.eq.s32.totalorder %s33, 0
      %p54 = por %p52, %p53
      %p55 = scmp.ne.s32.totalorder %s41, %s42
      %p56 = scmp.eq.s32.totalorder %s34, 1
      %p57 = por %p55, %p56
      %p59 = scmp.ne.s32.totalorder %s42, %s58
      %p60 = scmp.eq.s32.totalorder %s34, 0
      %p61 = por %p59, %p60
      %s62 = ssub.s32 %s28, %s35
      %p63 = scmp.eq.s32.totalorder %s62, 0
      %s65 = sadd.s32 %s64, 1
      %s66 = scalar_select %p63, %s64, %s65
      %p69 = pneg %p63
      %p70 = scmp.eq.s32.totalorder %s28, 1
      %p71 = por %p69, %p70
      %p72 = scmp.ne.s32.totalorder %s64, %s67
      %p73 = scmp.eq.s32.totalorder %s28, 0
      %p74 = por %p72, %p73
      %p75 = scmp.ne.s32.totalorder %s64, %s67
      %p76 = scmp.eq.s32.totalorder %s33, 1
      %p77 = por %p75, %p76
      %p78 = scmp.ne.s32.totalorder %s67, %s68
      %p79 = scmp.eq.s32.totalorder %s33, 0
      %p80 = por %p78, %p79
      %p81 = scmp.ne.s32.totalorder %s67, %s68
      %p82 = scmp.eq.s32.totalorder %s34, 1
      %p83 = por %p81, %p82
      %p85 = scmp.ne.s32.totalorder %s68, %s84
      %p86 = scmp.eq.s32.totalorder %s34, 0
      %p87 = por %p85, %p86
      %s88 = ssub.s32 %s28, %s35
      %p89 = scmp.eq.s32.totalorder %s88, 0
      %s91 = sadd.s32 %s90, 1
      %s92 = scalar_select %p89, %s90, %s91
      %p95 = pneg %p89
      %p96 = scmp.eq.s32.totalorder %s28, 1
      %p97 = por %p95, %p96
      %p98 = scmp.ne.s32.totalorder %s90, %s93
      %p99 = scmp.eq.s32.totalorder %s28, 0
      %p100 = por %p98, %p99
      %p101 = scmp.ne.s32.totalorder %s90, %s93
      %p102 = scmp.eq.s32.totalorder %s33, 1
      %p103 = por %p101, %p102
      %p104 = scmp.ne.s32.totalorder %s93, %s94
      %p105 = scmp.eq.s32.totalorder %s33, 0
      %p106 = por %p104, %p105
      %p107 = scmp.ne.s32.totalorder %s93, %s94
      %p108 = scmp.eq.s32.totalorder %s34, 1
      %p109 = por %p107, %p108
      %p111 = scmp.ne.s32.totalorder %s94, %s110
      %p112 = scmp.eq.s32.totalorder %s34, 0
      %p113 = por %p111, %p112
      %s114 = ssub.s32 %s28, %s35
      %p115 = scmp.eq.s32.totalorder %s114, 0
      %s117 = sadd.s32 %s116, 1
      %s118 = scalar_select %p115, %s116, %s117
      %p121 = pneg %p115
      %p122 = scmp.eq.s32.totalorder %s28, 1
      %p123 = por %p121, %p122
      %p124 = scmp.ne.s32.totalorder %s116, %s119
      %p125 = scmp.eq.s32.totalorder %s28, 0
      %p126 = por %p124, %p125
      %p127 = scmp.ne.s32.totalorder %s116, %s119
      %p128 = scmp.eq.s32.totalorder %s33, 1
      %p129 = por %p127, %p128
      %p130 = scmp.ne.s32.totalorder %s119, %s120
      %p131 = scmp.eq.s32.totalorder %s33, 0
      %p132 = por %p130, %p131
      %p133 = scmp.ne.s32.totalorder %s119, %s120
      %p134 = scmp.eq.s32.totalorder %s34, 1
      %p135 = por %p133, %p134
      %p137 = scmp.ne.s32.totalorder %s120, %s136
      %p138 = scmp.eq.s32.totalorder %s34, 0
      %p139 = por %p137, %p138
      %s140 = ssub.s32 %s28, %s35
      %p141 = scmp.eq.s32.totalorder %s140, 0
      %s143 = sadd.s32 %s142, 1
      %s144 = scalar_select %p141, %s142, %s143
      %p147 = pneg %p141
      %p148 = scmp.eq.s32.totalorder %s28, 1
      %p149 = por %p147, %p148
      %p150 = scmp.ne.s32.totalorder %s142, %s145
      %p151 = scmp.eq.s32.totalorder %s28, 0
      %p152 = por %p150, %p151
      %p153 = scmp.ne.s32.totalorder %s142, %s145
      %p154 = scmp.eq.s32.totalorder %s33, 1
      %p155 = por %p153, %p154
      %p156 = scmp.ne.s32.totalorder %s145, %s146
      %p157 = scmp.eq.s32.totalorder %s33, 0
      %p158 = por %p156, %p157
      %p159 = scmp.ne.s32.totalorder %s145, %s146
      %p160 = scmp.eq.s32.totalorder %s34, 1
      %p161 = por %p159, %p160
      %p163 = scmp.ne.s32.totalorder %s146, %s162
      %p164 = scmp.eq.s32.totalorder %s34, 0
      %p165 = por %p163, %p164
      %s167 = sadd.s32 %s166, 1
      %p170 = scmp.eq.s32.totalorder %s28, 1
      %p171 = scmp.ne.s32.totalorder %s166, %s168
      %p172 = scmp.eq.s32.totalorder %s28, 0
      %p173 = por %p171, %p172
      %p174 = scmp.ne.s32.totalorder %s166, %s168
      %p175 = scmp.eq.s32.totalorder %s33, 1
      %p176 = por %p174, %p175
      %p177 = scmp.ne.s32.totalorder %s168, %s169
      %p178 = scmp.eq.s32.totalorder %s33, 0
      %p179 = por %p177, %p178
      %p180 = scmp.ne.s32.totalorder %s168, %s169
      %p181 = scmp.eq.s32.totalorder %s34, 1
      %p182 = por %p180, %p181
      %p184 = scmp.ne.s32.totalorder %s169, %s183
      %p185 = scmp.eq.s32.totalorder %s34, 0
      %p186 = por %p184, %p185
      %s188 = sadd.s32 %s187, 1
      %p191 = scmp.eq.s32.totalorder %s28, 1
      %p192 = scmp.ne.s32.totalorder %s187, %s189
      %p193 = scmp.eq.s32.totalorder %s28, 0
      %p194 = por %p192, %p193
      %p195 = scmp.ne.s32.totalorder %s187, %s189
      %p196 = scmp.eq.s32.totalorder %s33, 1
      %p197 = por %p195, %p196
      %p198 = scmp.ne.s32.totalorder %s189, %s190
      %p199 = scmp.eq.s32.totalorder %s33, 0
      %p200 = por %p198, %p199
      %p201 = scmp.ne.s32.totalorder %s189, %s190
      %p202 = scmp.eq.s32.totalorder %s34, 1
      %p203 = por %p201, %p202
      %p205 = scmp.ne.s32.totalorder %s190, %s204
      %p206 = scmp.eq.s32.totalorder %s34, 0
      %p207 = por %p205, %p206
      %s208 = ssub.s32 %s28, %s35
      %p209 = scmp.eq.s32.totalorder %s208, 0
      %s211 = sadd.s32 %s210, 1
      %s212 = scalar_select %p209, %s210, %s211
      %p215 = pneg %p209
      %p216 = scmp.eq.s32.totalorder %s28, 1
      %p217 = por %p215, %p216
      %p218 = scmp.ne.s32.totalorder %s210, %s213
      %p219 = scmp.eq.s32.totalorder %s28, 0
      %p220 = por %p218, %p219
      %p221 = scmp.ne.s32.totalorder %s210, %s213
      %p222 = scmp.eq.s32.totalorder %s33, 1
      %p223 = por %p221, %p222
      %p224 = scmp.ne.s32.totalorder %s213, %s214
      %p225 = scmp.eq.s32.totalorder %s33, 0
      %p226 = por %p224, %p225
      %p227 = scmp.ne.s32.totalorder %s213, %s214
      %p228 = scmp.eq.s32.totalorder %s34, 1
      %p229 = por %p227, %p228
      %p231 = scmp.ne.s32.totalorder %s214, %s230
      %p232 = scmp.eq.s32.totalorder %s34, 0
      %p233 = por %p231, %p232
      %s235 = sadd.s32 %s234, 1
      %p238 = scmp.eq.s32.totalorder %s28, 1
      %p239 = scmp.ne.s32.totalorder %s234, %s236
      %p240 = scmp.eq.s32.totalorder %s28, 0
      %p241 = por %p239, %p240
      %p242 = scmp.ne.s32.totalorder %s234, %s236
      %p243 = scmp.eq.s32.totalorder %s33, 1
      %p244 = por %p242, %p243
      %p245 = scmp.ne.s32.totalorder %s236, %s237
      %p246 = scmp.eq.s32.totalorder %s33, 0
      %p247 = por %p245, %p246
      %p248 = scmp.ne.s32.totalorder %s236, %s237
      %p249 = scmp.eq.s32.totalorder %s34, 1
      %p250 = por %p248, %p249
      %p252 = scmp.ne.s32.totalorder %s237, %s251
      %p253 = scmp.eq.s32.totalorder %s34, 0
      %p254 = por %p252, %p253
      %s256 = sadd.s32 %s255, 1
      %p259 = scmp.eq.s32.totalorder %s28, 1
      %p260 = scmp.ne.s32.totalorder %s255, %s257
      %p261 = scmp.eq.s32.totalorder %s28, 0
      %p262 = por %p260, %p261
      %p263 = scmp.ne.s32.totalorder %s255, %s257
      %p264 = scmp.eq.s32.totalorder %s33, 1
      %p265 = por %p263, %p264
      %p266 = scmp.ne.s32.totalorder %s257, %s258
      %p267 = scmp.eq.s32.totalorder %s33, 0
      %p268 = por %p266, %p267
      %p269 = scmp.ne.s32.totalorder %s257, %s258
      %p270 = scmp.eq.s32.totalorder %s34, 1
      %p271 = por %p269, %p270
      %p273 = scmp.ne.s32.totalorder %s258, %s272
      %p274 = scmp.eq.s32.totalorder %s34, 0
      %p275 = por %p273, %p274
      %s277 = sadd.s32 %s276, 1
      %p280 = scmp.eq.s32.totalorder %s28, 1
      %p281 = scmp.ne.s32.totalorder %s276, %s278
      %p282 = scmp.eq.s32.totalorder %s28, 0
      %p283 = por %p281, %p282
      %p284 = scmp.ne.s32.totalorder %s276, %s278
      %p285 = scmp.eq.s32.totalorder %s33, 1
      %p286 = por %p284, %p285
      %p287 = scmp.ne.s32.totalorder %s278, %s279
      %p288 = scmp.eq.s32.totalorder %s33, 0
      %p289 = por %p287, %p288
      %p290 = scmp.ne.s32.totalorder %s278, %s279
      %p291 = scmp.eq.s32.totalorder %s34, 1
      %p292 = por %p290, %p291
      %p294 = scmp.ne.s32.totalorder %s279, %s293
      %p295 = scmp.eq.s32.totalorder %s34, 0
      %p296 = por %p294, %p295
      %s298 = sadd.s32 %s297, 1
      %p301 = scmp.eq.s32.totalorder %s28, 1
      %p302 = scmp.ne.s32.totalorder %s297, %s299
      %p303 = scmp.eq.s32.totalorder %s28, 0
      %p304 = por %p302, %p303
      %p305 = scmp.ne.s32.totalorder %s297, %s299
      %p306 = scmp.eq.s32.totalorder %s33, 1
      %p307 = por %p305, %p306
      %p308 = scmp.ne.s32.totalorder %s299, %s300
      %p309 = scmp.eq.s32.totalorder %s33, 0
      %p310 = por %p308, %p309
      %p311 = scmp.ne.s32.totalorder %s299, %s300
      %p312 = scmp.eq.s32.totalorder %s34, 1
      %p313 = por %p311, %p312
      %p315 = scmp.ne.s32.totalorder %s300, %s314
      %p316 = scmp.eq.s32.totalorder %s34, 0
      %p317 = por %p315, %p316
      %s319 = sadd.s32 %s318, 1
      %p322 = scmp.eq.s32.totalorder %s28, 1
      %p323 = scmp.ne.s32.totalorder %s318, %s320
      %p324 = scmp.eq.s32.totalorder %s28, 0
      %p325 = por %p323, %p324
      %p326 = scmp.ne.s32.totalorder %s318, %s320
      %p327 = scmp.eq.s32.totalorder %s33, 1
      %p328 = por %p326, %p327
      %p329 = scmp.ne.s32.totalorder %s320, %s321
      %p330 = scmp.eq.s32.totalorder %s33, 0
      %p331 = por %p329, %p330
      %p332 = scmp.ne.s32.totalorder %s320, %s321
      %p333 = scmp.eq.s32.totalorder %s34, 1
      %p334 = por %p332, %p333
      %p336 = scmp.ne.s32.totalorder %s321, %s335
      %p337 = scmp.eq.s32.totalorder %s34, 0
      %p338 = por %p336, %p337
      %s340 = sadd.s32 %s339, 1
      %p343 = scmp.eq.s32.totalorder %s28, 1
      %p344 = scmp.ne.s32.totalorder %s339, %s341
      %p345 = scmp.eq.s32.totalorder %s28, 0
      %p346 = por %p344, %p345
      %p347 = scmp.ne.s32.totalorder %s339, %s341
      %p348 = scmp.eq.s32.totalorder %s33, 1
      %p349 = por %p347, %p348
      %p350 = scmp.ne.s32.totalorder %s341, %s342
      %p351 = scmp.eq.s32.totalorder %s33, 0
      %p352 = por %p350, %p351
      %p353 = scmp.ne.s32.totalorder %s341, %s342
      %p354 = scmp.eq.s32.totalorder %s34, 1
      %p355 = por %p353, %p354
      %p357 = scmp.ne.s32.totalorder %s342, %s356
      %p358 = scmp.eq.s32.totalorder %s34, 0
      %p359 = por %p357, %p358
      %s361 = sadd.s32 %s360, 1
      %p364 = scmp.eq.s32.totalorder %s28, 1
      %p365 = scmp.ne.s32.totalorder %s360, %s362
      %p366 = scmp.eq.s32.totalorder %s28, 0
      %p367 = por %p365, %p366
      %p368 = scmp.ne.s32.totalorder %s360, %s362
      %p369 = scmp.eq.s32.totalorder %s33, 1
      %p370 = por %p368, %p369
      %p371 = scmp.ne.s32.totalorder %s362, %s363
      %p372 = scmp.eq.s32.totalorder %s33, 0
      %p373 = por %p371, %p372
      %p374 = scmp.ne.s32.totalorder %s362, %s363
      %p375 = scmp.eq.s32.totalorder %s34, 1
      %p376 = por %p374, %p375
      %p378 = scmp.ne.s32.totalorder %s363, %s377
      %p379 = scmp.eq.s32.totalorder %s34, 0
      %p380 = por %p378, %p379
      %s382 = sadd.s32 %s381, 1
      %p385 = scmp.eq.s32.totalorder %s28, 1
      %p386 = scmp.ne.s32.totalorder %s381, %s383
      %p387 = scmp.eq.s32.totalorder %s28, 0
      %p388 = por %p386, %p387
      %p389 = scmp.ne.s32.totalorder %s381, %s383
      %p390 = scmp.eq.s32.totalorder %s33, 1
      %p391 = por %p389, %p390
      %p392 = scmp.ne.s32.totalorder %s383, %s384
      %p393 = scmp.eq.s32.totalorder %s33, 0
      %p394 = por %p392, %p393
      %p395 = scmp.ne.s32.totalorder %s383, %s384
      %p396 = scmp.eq.s32.totalorder %s34, 1
      %p397 = por %p395, %p396
      %p399 = scmp.ne.s32.totalorder %s384, %s398
      %p400 = scmp.eq.s32.totalorder %s34, 0
      %p401 = por %p399, %p400
      %s403 = sadd.s32 %s402, 1
      %p406 = scmp.eq.s32.totalorder %s28, 1
      %p407 = scmp.ne.s32.totalorder %s402, %s404
      %p408 = scmp.eq.s32.totalorder %s28, 0
      %p409 = por %p407, %p408
      %p410 = scmp.ne.s32.totalorder %s402, %s404
      %p411 = scmp.eq.s32.totalorder %s33, 1
      %p412 = por %p410, %p411
      %p413 = scmp.ne.s32.totalorder %s404, %s405
      %p414 = scmp.eq.s32.totalorder %s33, 0
      %p415 = por %p413, %p414
      %p416 = scmp.ne.s32.totalorder %s404, %s405
      %p417 = scmp.eq.s32.totalorder %s34, 1
      %p418 = por %p416, %p417
      %p420 = scmp.ne.s32.totalorder %s405, %s419
      %p421 = scmp.eq.s32.totalorder %s34, 0
      %p422 = por %p420, %p421
      %s424 = sadd.s32 %s423, 1
      %p427 = scmp.eq.s32.totalorder %s28, 1
      %p428 = scmp.ne.s32.totalorder %s423, %s425
      %p429 = scmp.eq.s32.totalorder %s28, 0
      %p430 = por %p428, %p429
      %p431 = scmp.ne.s32.totalorder %s423, %s425
      %p432 = scmp.eq.s32.totalorder %s33, 1
      %p433 = por %p431, %p432
      %p434 = scmp.ne.s32.totalorder %s425, %s426
      %p435 = scmp.eq.s32.totalorder %s33, 0
      %p436 = por %p434, %p435
      %p437 = scmp.ne.s32.totalorder %s425, %s426
      %p438 = scmp.eq.s32.totalorder %s34, 1
      %p439 = por %p437, %p438
      %p441 = scmp.ne.s32.totalorder %s426, %s440
      %p442 = scmp.eq.s32.totalorder %s34, 0
      %p443 = por %p441, %p442
      %s445 = sadd.s32 %s444, 1
      %p448 = scmp.eq.s32.totalorder %s28, 1
      %p449 = scmp.ne.s32.totalorder %s444, %s446
      %p450 = scmp.eq.s32.totalorder %s28, 0
      %p451 = por %p449, %p450
      %p452 = scmp.ne.s32.totalorder %s444, %s446
      %p453 = scmp.eq.s32.totalorder %s33, 1
      %p454 = por %p452, %p453
      %p455 = scmp.ne.s32.totalorder %s446, %s447
      %p456 = scmp.eq.s32.totalorder %s33, 0
      %p457 = por %p455, %p456
      %p458 = scmp.ne.s32.totalorder %s446, %s447
      %p459 = scmp.eq.s32.totalorder %s34, 1
      %p460 = por %p458, %p459
      %p462 = scmp.ne.s32.totalorder %s447, %s461
      %p463 = scmp.eq.s32.totalorder %s34, 0
      %p464 = por %p462, %p463
      %s465 = ssub.s32 %s28, %s35
      %p466 = scmp.eq.s32.totalorder %s465, 0
      %s468 = sadd.s32 %s467, 1
      %s469 = scalar_select %p466, %s467, %s468
      %p472 = pneg %p466
      %p473 = scmp.eq.s32.totalorder %s28, 1
      %p474 = por %p472, %p473
      %p475 = scmp.ne.s32.totalorder %s467, %s470
      %p476 = scmp.eq.s32.totalorder %s28, 0
      %p477 = por %p475, %p476
      %p478 = scmp.ne.s32.totalorder %s467, %s470
      %p479 = scmp.eq.s32.totalorder %s33, 1
      %p480 = por %p478, %p479
      %p481 = scmp.ne.s32.totalorder %s470, %s471
      %p482 = scmp.eq.s32.totalorder %s33, 0
      %p483 = por %p481, %p482
      %p484 = scmp.ne.s32.totalorder %s470, %s471
      %p485 = scmp.eq.s32.totalorder %s34, 1
      %p486 = por %p484, %p485
      %p488 = scmp.ne.s32.totalorder %s471, %s487
      %p489 = scmp.eq.s32.totalorder %s34, 0
      %p490 = por %p488, %p489
      %p491 = scmp.le.s32.totalorder 1, %s28
      %p492 = scmp.lt.s32.totalorder %s28, 3
      %p493 = pnand %p491, %p492
      %p494 = pneg %p493
      // Predicated region
      $region9: #{tpu_custom_call.1} parent=5 // pred_check
        _
      $region10: #{tpu_custom_call.1} parent=5 // pred_check_branch
        %496 = sbr.rel (%p493) target = $region12
      $region11: #{tpu_custom_call.1} parent=5 // pred_region
        %s497 = ssub.s32 %s28, 1
        // Predicated region
        $region13: #{tpu_custom_call.1} parent=11 // pred_check
          %p498 = pneg %p179
        $region14: #{tpu_custom_call.1} parent=11 // pred_check_branch
          %500 = sbr.rel (%p498) target = $region16
        $region15: #{tpu_custom_call.1} parent=11 // pred_region
          _
        $region16: #{tpu_custom_call.1} parent=11 // pred_fallthru
          _
        // Predicated region
        $region17: #{tpu_custom_call.1} parent=11 // pred_check
          %p501 = pneg %p200
        $region18: #{tpu_custom_call.1} parent=11 // pred_check_branch
          %503 = sbr.rel (%p501) target = $region20
        $region19: #{tpu_custom_call.1} parent=11 // pred_region
          _
        $region20: #{tpu_custom_call.1} parent=11 // pred_fallthru
          _
        // Predicated region
        $region21: #{tpu_custom_call.1} parent=11 // pred_check
          %p504 = pneg %p247
        $region22: #{tpu_custom_call.1} parent=11 // pred_check_branch
          %506 = sbr.rel (%p504) target = $region24
        $region23: #{tpu_custom_call.1} parent=11 // pred_region
          _
        $region24: #{tpu_custom_call.1} parent=11 // pred_fallthru
          _
        // Predicated region
        $region25: #{tpu_custom_call.1} parent=11 // pred_check
          %p507 = pneg %p268
        $region26: #{tpu_custom_call.1} parent=11 // pred_check_branch
          %509 = sbr.rel (%p507) target = $region28
        $region27: #{tpu_custom_call.1} parent=11 // pred_region
          _
        $region28: #{tpu_custom_call.1} parent=11 // pred_fallthru
          _
        // Predicated region
        $region29: #{tpu_custom_call.1} parent=11 // pred_check
          %p510 = pneg %p289
        $region30: #{tpu_custom_call.1} parent=11 // pred_check_branch
          %512 = sbr.rel (%p510) target = $region32
        $region31: #{tpu_custom_call.1} parent=11 // pred_region
          _
        $region32: #{tpu_custom_call.1} parent=11 // pred_fallthru
          _
        // Predicated region
        $region33: #{tpu_custom_call.1} parent=11 // pred_check
          %p513 = pneg %p310
        $region34: #{tpu_custom_call.1} parent=11 // pred_check_branch
          %515 = sbr.rel (%p513) target = $region36
        $region35: #{tpu_custom_call.1} parent=11 // pred_region
          _
        $region36: #{tpu_custom_call.1} parent=11 // pred_fallthru
          _
        // Predicated region
        $region37: #{tpu_custom_call.1} parent=11 // pred_check
          %p516 = pneg %p331
        $region38: #{tpu_custom_call.1} parent=11 // pred_check_branch
          %518 = sbr.rel (%p516) target = $region40
        $region39: #{tpu_custom_call.1} parent=11 // pred_region
          _
        $region40: #{tpu_custom_call.1} parent=11 // pred_fallthru
          _
        // Predicated region
        $region41: #{tpu_custom_call.1} parent=11 // pred_check
          %p519 = pneg %p352
        $region42: #{tpu_custom_call.1} parent=11 // pred_check_branch
          %521 = sbr.rel (%p519) target = $region44
        $region43: #{tpu_custom_call.1} parent=11 // pred_region
          _
        $region44: #{tpu_custom_call.1} parent=11 // pred_fallthru
          _
        // Predicated region
        $region45: #{tpu_custom_call.1} parent=11 // pred_check
          %p522 = pneg %p373
        $region46: #{tpu_custom_call.1} parent=11 // pred_check_branch
          %524 = sbr.rel (%p522) target = $region48
        $region47: #{tpu_custom_call.1} parent=11 // pred_region
          _
        $region48: #{tpu_custom_call.1} parent=11 // pred_fallthru
          _
        // Predicated region
        $region49: #{tpu_custom_call.1} parent=11 // pred_check
          %p525 = pneg %p394
        $region50: #{tpu_custom_call.1} parent=11 // pred_check_branch
          %527 = sbr.rel (%p525) target = $region52
        $region51: #{tpu_custom_call.1} parent=11 // pred_region
          _
        $region52: #{tpu_custom_call.1} parent=11 // pred_fallthru
          _
        // Predicated region
        $region53: #{tpu_custom_call.1} parent=11 // pred_check
          %p528 = pneg %p415
        $region54: #{tpu_custom_call.1} parent=11 // pred_check_branch
          %530 = sbr.rel (%p528) target = $region56
        $region55: #{tpu_custom_call.1} parent=11 // pred_region
          _
        $region56: #{tpu_custom_call.1} parent=11 // pred_fallthru
          _
        // Predicated region
        $region57: #{tpu_custom_call.1} parent=11 // pred_check
          %p531 = pneg %p436
        $region58: #{tpu_custom_call.1} parent=11 // pred_check_branch
          %533 = sbr.rel (%p531) target = $region60
        $region59: #{tpu_custom_call.1} parent=11 // pred_region
          _
        $region60: #{tpu_custom_call.1} parent=11 // pred_fallthru
          _
        // Predicated region
        $region61: #{tpu_custom_call.1} parent=11 // pred_check
          %p534 = pneg %p457
        $region62: #{tpu_custom_call.1} parent=11 // pred_check_branch
          %536 = sbr.rel (%p534) target = $region64
        $region63: #{tpu_custom_call.1} parent=11 // pred_region
          _
        $region64: #{tpu_custom_call.1} parent=11 // pred_fallthru
          _
      $region12: #{tpu_custom_call.1} parent=5 // pred_fallthru
        _
      %p537 = scmp.lt.s32.totalorder %s28, 2
      // Predicated region
      $region65: #{tpu_custom_call.1} parent=5 // pred_check
        %p538 = pneg %p537
      $region66: #{tpu_custom_call.1} parent=5 // pred_check_branch
        %540 = sbr.rel (%p538) target = $region68
      $region67: #{tpu_custom_call.1} parent=5 // pred_region
        // Predicated region
        $region69: #{tpu_custom_call.1} parent=67 // pred_check
          %p541 = pneg %p48
        $region70: #{tpu_custom_call.1} parent=67 // pred_check_branch
          %543 = sbr.rel (%p541) target = $region72
        $region71: #{tpu_custom_call.1} parent=67 // pred_region
          %p544 = scmp.lt.s32.totalorder %s28, 1
          %s545 = scalar_select %p544, %s28, 1
          %s546 = smul.addr %s545, 128
          %s547 = smul.addr %s546, 8
          %s548 = scalar_lea.vmem %s0, %s547
        $region72: #{tpu_custom_call.1} parent=67 // pred_fallthru
          _
        // Predicated region
        $region73: #{tpu_custom_call.1} parent=67 // pred_check
          %p549 = pneg %p74
        $region74: #{tpu_custom_call.1} parent=67 // pred_check_branch
          %551 = sbr.rel (%p549) target = $region76
        $region75: #{tpu_custom_call.1} parent=67 // pred_region
          %p552 = scmp.lt.s32.totalorder %s28, 1
          %s553 = scalar_select %p552, %s28, 1
          %s554 = smul.addr %s553, 8
          %s555 = scalar_lea.vmem %s1, %s554
        $region76: #{tpu_custom_call.1} parent=67 // pred_fallthru
          _
        // Predicated region
        $region77: #{tpu_custom_call.1} parent=67 // pred_check
          %p556 = pneg %p100
        $region78: #{tpu_custom_call.1} parent=67 // pred_check_branch
          %558 = sbr.rel (%p556) target = $region80
        $region79: #{tpu_custom_call.1} parent=67 // pred_region
          %p559 = scmp.lt.s32.totalorder %s28, 1
          %s560 = scalar_select %p559, %s28, 1
          %s561 = smul.addr %s560, 8
          %s562 = scalar_lea.vmem %s2, %s561
        $region80: #{tpu_custom_call.1} parent=67 // pred_fallthru
          _
        // Predicated region
        $region81: #{tpu_custom_call.1} parent=67 // pred_check
          %p563 = pneg %p126
        $region82: #{tpu_custom_call.1} parent=67 // pred_check_branch
          %565 = sbr.rel (%p563) target = $region84
        $region83: #{tpu_custom_call.1} parent=67 // pred_region
          %p566 = scmp.lt.s32.totalorder %s28, 1
          %s567 = scalar_select %p566, %s28, 1
          %s568 = smul.addr %s567, 8
          %s569 = scalar_lea.vmem %s3, %s568
        $region84: #{tpu_custom_call.1} parent=67 // pred_fallthru
          _
        // Predicated region
        $region85: #{tpu_custom_call.1} parent=67 // pred_check
          %p570 = pneg %p152
        $region86: #{tpu_custom_call.1} parent=67 // pred_check_branch
          %572 = sbr.rel (%p570) target = $region88
        $region87: #{tpu_custom_call.1} parent=67 // pred_region
          %p573 = scmp.lt.s32.totalorder %s28, 1
          %s574 = scalar_select %p573, %s28, 1
          %s575 = smul.addr %s574, 8
          %s576 = scalar_lea.vmem %s4, %s575
        $region88: #{tpu_custom_call.1} parent=67 // pred_fallthru
          _
        // Predicated region
        $region89: #{tpu_custom_call.1} parent=67 // pred_check
          %p577 = pneg %p220
        $region90: #{tpu_custom_call.1} parent=67 // pred_check_branch
          %579 = sbr.rel (%p577) target = $region92
        $region91: #{tpu_custom_call.1} parent=67 // pred_region
          %p580 = scmp.lt.s32.totalorder %s28, 1
          %s581 = scalar_select %p580, %s28, 1
          %s582 = smul.addr %s581, 8
          %s583 = scalar_lea.vmem %s7, %s582
        $region92: #{tpu_custom_call.1} parent=67 // pred_fallthru
          _
      $region68: #{tpu_custom_call.1} parent=5 // pred_fallthru
        _
      %p584 = scmp.le.s32.totalorder 1, %s28
      %p585 = scmp.lt.s32.totalorder %s28, 3
      %p586 = pnand %p584, %p585
      %p587 = pneg %p586
      // Predicated region
      $region93: #{tpu_custom_call.1} parent=5 // pred_check
        _
      $region94: #{tpu_custom_call.1} parent=5 // pred_check_branch
        %589 = sbr.rel (%p586) target = $region96
      $region95: #{tpu_custom_call.1} parent=5 // pred_region
        %s590 = ssub.s32 %s28, 1
        %p591 = scmp.lt.s32.totalorder %s33, 1
        %s592 = scalar_select %p591, %s33, 1
        %s593 = smul.addr %s592, 128
        %s594 = smul.addr %s593, 8
        %s595 = scalar_lea.vmem %s0, %s594
        %p596 = pneg %p54
        %p597 = pneg %p51
        %p598 = scmp.lt.s32.totalorder %s33, 1
        %s599 = scalar_select %p598, %s33, 1
        %s600 = smul.addr %s599, 8
        %s601 = scalar_lea.vmem %s1, %s600
        %p602 = pneg %p80
        %p603 = pneg %p77
        %p604 = scmp.lt.s32.totalorder %s33, 1
        %s605 = scalar_select %p604, %s33, 1
        %s606 = smul.addr %s605, 8
        %s607 = scalar_lea.vmem %s2, %s606
        %p608 = pneg %p106
        %p609 = pneg %p103
        %p610 = scmp.lt.s32.totalorder %s33, 1
        %s611 = scalar_select %p610, %s33, 1
        %s612 = smul.addr %s611, 8
        %s613 = scalar_lea.vmem %s3, %s612
        %p614 = pneg %p132
        %p615 = pneg %p129
        %p616 = scmp.lt.s32.totalorder %s33, 1
        %s617 = scalar_select %p616, %s33, 1
        %s618 = smul.addr %s617, 8
        %s619 = scalar_lea.vmem %s4, %s618
        %p620 = pneg %p158
        %p621 = pneg %p155
        %p622 = pneg %p179
        %p623 = pneg %p176
        %p624 = pneg %p200
        %p625 = pneg %p197
        %p626 = scmp.lt.s32.totalorder %s33, 1
        %s627 = scalar_select %p626, %s33, 1
        %s628 = smul.addr %s627, 8
        %s629 = scalar_lea.vmem %s7, %s628
        %p630 = pneg %p226
        %p631 = pneg %p223
        %p632 = pneg %p247
        %p633 = pneg %p244
        %p634 = pneg %p268
        %p635 = pneg %p265
        %p636 = pneg %p289
        %p637 = pneg %p286
        %p638 = pneg %p310
        %p639 = pneg %p307
        %p640 = pneg %p331
        %p641 = pneg %p328
        %p642 = pneg %p352
        %p643 = pneg %p349
        %p644 = pneg %p373
        %p645 = pneg %p370
        %p646 = pneg %p394
        %p647 = pneg %p391
        %p648 = pneg %p415
        %p649 = pneg %p412
        %p650 = pneg %p436
        %p651 = pneg %p433
        %p652 = pneg %p457
        %p653 = pneg %p454
        %p654 = pneg %p483
        %p655 = pneg %p480
        %s656 = sand.u32 %s470, 1
        %s657 = scalar_lea.sflag [#allocation3], %s656
        %s658 = sand.u32 %s470, 1
        %s659 = smul.addr %s658, 64
        %s660 = scalar_lea.vmem [#allocation2], %s659
        %p661 = scmp.lt.s32.totalorder %s33, 1
        %s662 = scalar_select %p661, %s33, 1
        %s663 = smul.addr %s662, 128
        %s664 = smul.addr %s663, 8
        %s665 = scalar_lea.vmem %s0, %s664
        %p666 = scmp.lt.s32.totalorder %s33, 1
        %s667 = scalar_select %p666, %s33, 1
        %s668 = smul.addr %s667, 8
        %s669 = scalar_lea.vmem %s1, %s668
        %p670 = scmp.lt.s32.totalorder %s33, 1
        %s671 = scalar_select %p670, %s33, 1
        %s672 = smul.addr %s671, 8
        %s673 = scalar_lea.vmem %s2, %s672
        %p674 = scmp.lt.s32.totalorder %s33, 1
        %s675 = scalar_select %p674, %s33, 1
        %s676 = smul.addr %s675, 8
        %s677 = scalar_lea.vmem %s3, %s676
        %p678 = scmp.lt.s32.totalorder %s33, 1
        %s679 = scalar_select %p678, %s33, 1
        %s680 = smul.addr %s679, 8
        %s681 = scalar_lea.vmem %s4, %s680
        %p682 = scmp.lt.s32.totalorder %s33, 1
        %s683 = scalar_select %p682, %s33, 1
        %s684 = smul.addr %s683, 8
        %s685 = scalar_lea.vmem %s7, %s684
        %v686 = vld [vmem:[%s665] sm:$0xff]
        %v687 = vld [vmem:[%s665 + $0x8] sm:$0xff]
        %v688 = vld [vmem:[%s665 + $0x10] sm:$0xff]
        %v689 = vld [vmem:[%s665 + $0x18] sm:$0xff]
        %v690 = vld [vmem:[%s665 + $0x20] sm:$0xff]
        %v691 = vld [vmem:[%s665 + $0x28] sm:$0xff]
        %v692 = vld [vmem:[%s665 + $0x30] sm:$0xff]
        %v693 = vld [vmem:[%s665 + $0x38] sm:$0xff]
        %v694 = vld [vmem:[%s665 + $0x40] sm:$0xff]
        %v695 = vld [vmem:[%s665 + $0x48] sm:$0xff]
        %v696 = vld [vmem:[%s665 + $0x50] sm:$0xff]
        %v697 = vld [vmem:[%s665 + $0x58] sm:$0xff]
        %v698 = vld [vmem:[%s665 + $0x60] sm:$0xff]
        %v699 = vld [vmem:[%s665 + $0x68] sm:$0xff]
        %v700 = vld [vmem:[%s665 + $0x70] sm:$0xff]
        %v701 = vld [vmem:[%s665 + $0x78] sm:$0xff]
        %v702 = vld [vmem:[%s665 + $0x80] sm:$0xff]
        %v703 = vld [vmem:[%s665 + $0x88] sm:$0xff]
        %v704 = vld [vmem:[%s665 + $0x90] sm:$0xff]
        %v705 = vld [vmem:[%s665 + $0x98] sm:$0xff]
        %v706 = vld [vmem:[%s665 + $0xa0] sm:$0xff]
        %v707 = vld [vmem:[%s665 + $0xa8] sm:$0xff]
        %v708 = vld [vmem:[%s665 + $0xb0] sm:$0xff]
        %v709 = vld [vmem:[%s665 + $0xb8] sm:$0xff]
        %v710 = vld [vmem:[%s665 + $0xc0] sm:$0xff]
        %v711 = vld [vmem:[%s665 + $0xc8] sm:$0xff]
        %v712 = vld [vmem:[%s665 + $0xd0] sm:$0xff]
        %v713 = vld [vmem:[%s665 + $0xd8] sm:$0xff]
        %v714 = vld [vmem:[%s665 + $0xe0] sm:$0xff]
        %v715 = vld [vmem:[%s665 + $0xe8] sm:$0xff]
        %v716 = vld [vmem:[%s665 + $0xf0] sm:$0xff]
        %v717 = vld [vmem:[%s665 + $0xf8] sm:$0xff]
        %v718 = vld [vmem:[%s665 + $0x100] sm:$0xff]
        %v719 = vld [vmem:[%s665 + $0x108] sm:$0xff]
        %v720 = vld [vmem:[%s665 + $0x110] sm:$0xff]
        %v721 = vld [vmem:[%s665 + $0x118] sm:$0xff]
        %v722 = vld [vmem:[%s665 + $0x120] sm:$0xff]
        %v723 = vld [vmem:[%s665 + $0x128] sm:$0xff]
        %v724 = vld [vmem:[%s665 + $0x130] sm:$0xff]
        %v725 = vld [vmem:[%s665 + $0x138] sm:$0xff]
        %v726 = vld [vmem:[%s665 + $0x140] sm:$0xff]
        %v727 = vld [vmem:[%s665 + $0x148] sm:$0xff]
        %v728 = vld [vmem:[%s665 + $0x150] sm:$0xff]
        %v729 = vld [vmem:[%s665 + $0x158] sm:$0xff]
        %v730 = vld [vmem:[%s665 + $0x160] sm:$0xff]
        %v731 = vld [vmem:[%s665 + $0x168] sm:$0xff]
        %v732 = vld [vmem:[%s665 + $0x170] sm:$0xff]
        %v733 = vld [vmem:[%s665 + $0x178] sm:$0xff]
        %v734 = vld [vmem:[%s665 + $0x180] sm:$0xff]
        %v735 = vld [vmem:[%s665 + $0x188] sm:$0xff]
        %v736 = vld [vmem:[%s665 + $0x190] sm:$0xff]
        %v737 = vld [vmem:[%s665 + $0x198] sm:$0xff]
        %v738 = vld [vmem:[%s665 + $0x1a0] sm:$0xff]
        %v739 = vld [vmem:[%s665 + $0x1a8] sm:$0xff]
        %v740 = vld [vmem:[%s665 + $0x1b0] sm:$0xff]
        %v741 = vld [vmem:[%s665 + $0x1b8] sm:$0xff]
        %v742 = vld [vmem:[%s665 + $0x1c0] sm:$0xff]
        %v743 = vld [vmem:[%s665 + $0x1c8] sm:$0xff]
        %v744 = vld [vmem:[%s665 + $0x1d0] sm:$0xff]
        %v745 = vld [vmem:[%s665 + $0x1d8] sm:$0xff]
        %v746 = vld [vmem:[%s665 + $0x1e0] sm:$0xff]
        %v747 = vld [vmem:[%s665 + $0x1e8] sm:$0xff]
        %v748 = vld [vmem:[%s665 + $0x1f0] sm:$0xff]
        %v749 = vld [vmem:[%s665 + $0x1f8] sm:$0xff]
        %v750 = vld [vmem:[%s665 + $0x200] sm:$0xff]
        %v751 = vld [vmem:[%s665 + $0x208] sm:$0xff]
        %v752 = vld [vmem:[%s665 + $0x210] sm:$0xff]
        %v753 = vld [vmem:[%s665 + $0x218] sm:$0xff]
        %v754 = vld [vmem:[%s665 + $0x220] sm:$0xff]
        %v755 = vld [vmem:[%s665 + $0x228] sm:$0xff]
        %v756 = vld [vmem:[%s665 + $0x230] sm:$0xff]
        %v757 = vld [vmem:[%s665 + $0x238] sm:$0xff]
        %v758 = vld [vmem:[%s665 + $0x240] sm:$0xff]
        %v759 = vld [vmem:[%s665 + $0x248] sm:$0xff]
        %v760 = vld [vmem:[%s665 + $0x250] sm:$0xff]
        %v761 = vld [vmem:[%s665 + $0x258] sm:$0xff]
        %v762 = vld [vmem:[%s665 + $0x260] sm:$0xff]
        %v763 = vld [vmem:[%s665 + $0x268] sm:$0xff]
        %v764 = vld [vmem:[%s665 + $0x270] sm:$0xff]
        %v765 = vld [vmem:[%s665 + $0x278] sm:$0xff]
        %v766 = vld [vmem:[%s665 + $0x280] sm:$0xff]
        %v767 = vld [vmem:[%s665 + $0x288] sm:$0xff]
        %v768 = vld [vmem:[%s665 + $0x290] sm:$0xff]
        %v769 = vld [vmem:[%s665 + $0x298] sm:$0xff]
        %v770 = vld [vmem:[%s665 + $0x2a0] sm:$0xff]
        %v771 = vld [vmem:[%s665 + $0x2a8] sm:$0xff]
        %v772 = vld [vmem:[%s665 + $0x2b0] sm:$0xff]
        %v773 = vld [vmem:[%s665 + $0x2b8] sm:$0xff]
        %v774 = vld [vmem:[%s665 + $0x2c0] sm:$0xff]
        %v775 = vld [vmem:[%s665 + $0x2c8] sm:$0xff]
        %v776 = vld [vmem:[%s665 + $0x2d0] sm:$0xff]
        %v777 = vld [vmem:[%s665 + $0x2d8] sm:$0xff]
        %v778 = vld [vmem:[%s665 + $0x2e0] sm:$0xff]
        %v779 = vld [vmem:[%s665 + $0x2e8] sm:$0xff]
        %v780 = vld [vmem:[%s665 + $0x2f0] sm:$0xff]
        %v781 = vld [vmem:[%s665 + $0x2f8] sm:$0xff]
        %v782 = vld [vmem:[%s665 + $0x300] sm:$0xff]
        %v783 = vld [vmem:[%s665 + $0x308] sm:$0xff]
        %v784 = vld [vmem:[%s665 + $0x310] sm:$0xff]
        %v785 = vld [vmem:[%s665 + $0x318] sm:$0xff]
        %v786 = vld [vmem:[%s665 + $0x320] sm:$0xff]
        %v787 = vld [vmem:[%s665 + $0x328] sm:$0xff]
        %v788 = vld [vmem:[%s665 + $0x330] sm:$0xff]
        %v789 = vld [vmem:[%s665 + $0x338] sm:$0xff]
        %v790 = vld [vmem:[%s665 + $0x340] sm:$0xff]
        %v791 = vld [vmem:[%s665 + $0x348] sm:$0xff]
        %v792 = vld [vmem:[%s665 + $0x350] sm:$0xff]
        %v793 = vld [vmem:[%s665 + $0x358] sm:$0xff]
        %v794 = vld [vmem:[%s665 + $0x360] sm:$0xff]
        %v795 = vld [vmem:[%s665 + $0x368] sm:$0xff]
        %v796 = vld [vmem:[%s665 + $0x370] sm:$0xff]
        %v797 = vld [vmem:[%s665 + $0x378] sm:$0xff]
        %v798 = vld [vmem:[%s665 + $0x380] sm:$0xff]
        %v799 = vld [vmem:[%s665 + $0x388] sm:$0xff]
        %v800 = vld [vmem:[%s665 + $0x390] sm:$0xff]
        %v801 = vld [vmem:[%s665 + $0x398] sm:$0xff]
        %v802 = vld [vmem:[%s665 + $0x3a0] sm:$0xff]
        %v803 = vld [vmem:[%s665 + $0x3a8] sm:$0xff]
        %v804 = vld [vmem:[%s665 + $0x3b0] sm:$0xff]
        %v805 = vld [vmem:[%s665 + $0x3b8] sm:$0xff]
        %v806 = vld [vmem:[%s665 + $0x3c0] sm:$0xff]
        %v807 = vld [vmem:[%s665 + $0x3c8] sm:$0xff]
        %v808 = vld [vmem:[%s665 + $0x3d0] sm:$0xff]
        %v809 = vld [vmem:[%s665 + $0x3d8] sm:$0xff]
        %v810 = vld [vmem:[%s665 + $0x3e0] sm:$0xff]
        %v811 = vld [vmem:[%s665 + $0x3e8] sm:$0xff]
        %v812 = vld [vmem:[%s665 + $0x3f0] sm:$0xff]
        %v813 = vld [vmem:[%s665 + $0x3f8] sm:$0xff]
        %v814 = vld [vmem:[%s8] sm:$0xff]
        %v815 = vld [vmem:[%s8 + $0x8] sm:$0xff]
        %v816 = vld [vmem:[%s8 + $0x10] sm:$0xff]
        %v817 = vld [vmem:[%s8 + $0x18] sm:$0xff]
        %v818 = vld [vmem:[%s9] sm:$0x1]
        %v820 = vlaneseq
        %v821 = vshrl.u32 %v820, 7
        %v822 = vsub.s32 0, %v821
        %v823 = vrot.slane %v818, %v822
        %vm825 = vcmask 261120
        %v827 = vsel %vm825, %v686, 0
        %v830 = vsel %vm825, %v687, 0
        %v833 = vsel %vm825, %v688, 0
        %v836 = vsel %vm825, %v689, 0
        %v839 = vsel %vm825, %v690, 0
        %v842 = vsel %vm825, %v691, 0
        %v845 = vsel %vm825, %v692, 0
        %v848 = vsel %vm825, %v693, 0
        %v851 = vsel %vm825, %v694, 0
        %v854 = vsel %vm825, %v695, 0
        %v857 = vsel %vm825, %v696, 0
        %v860 = vsel %vm825, %v697, 0
        %v863 = vsel %vm825, %v698, 0
        %v866 = vsel %vm825, %v699, 0
        %v869 = vsel %vm825, %v700, 0
        %v872 = vsel %vm825, %v701, 0
        %v875 = vsel %vm825, %v702, 0
        %v878 = vsel %vm825, %v703, 0
        %v881 = vsel %vm825, %v704, 0
        %v884 = vsel %vm825, %v705, 0
        %v887 = vsel %vm825, %v706, 0
        %v890 = vsel %vm825, %v707, 0
        %v893 = vsel %vm825, %v708, 0
        %v896 = vsel %vm825, %v709, 0
        %v899 = vsel %vm825, %v710, 0
        %v902 = vsel %vm825, %v711, 0
        %v905 = vsel %vm825, %v712, 0
        %v908 = vsel %vm825, %v713, 0
        %v911 = vsel %vm825, %v714, 0
        %v914 = vsel %vm825, %v715, 0
        %v917 = vsel %vm825, %v716, 0
        %v920 = vsel %vm825, %v717, 0
        %v923 = vsel %vm825, %v718, 0
        %v926 = vsel %vm825, %v719, 0
        %v929 = vsel %vm825, %v720, 0
        %v932 = vsel %vm825, %v721, 0
        %v935 = vsel %vm825, %v722, 0
        %v938 = vsel %vm825, %v723, 0
        %v941 = vsel %vm825, %v724, 0
        %v944 = vsel %vm825, %v725, 0
        %v947 = vsel %vm825, %v726, 0
        %v950 = vsel %vm825, %v727, 0
        %v953 = vsel %vm825, %v728, 0
        %v956 = vsel %vm825, %v729, 0
        %v959 = vsel %vm825, %v730, 0
        %v962 = vsel %vm825, %v731, 0
        %v965 = vsel %vm825, %v732, 0
        %v968 = vsel %vm825, %v733, 0
        %v971 = vsel %vm825, %v734, 0
        %v974 = vsel %vm825, %v735, 0
        %v977 = vsel %vm825, %v736, 0
        %v980 = vsel %vm825, %v737, 0
        %v983 = vsel %vm825, %v738, 0
        %v986 = vsel %vm825, %v739, 0
        %v989 = vsel %vm825, %v740, 0
        %v992 = vsel %vm825, %v741, 0
        %v995 = vsel %vm825, %v742, 0
        %v998 = vsel %vm825, %v743, 0
        %v1001 = vsel %vm825, %v744, 0
        %v1004 = vsel %vm825, %v745, 0
        %v1007 = vsel %vm825, %v746, 0
        %v1010 = vsel %vm825, %v747, 0
        %v1013 = vsel %vm825, %v748, 0
        %v1016 = vsel %vm825, %v749, 0
        %v1019 = vsel %vm825, %v750, 0
        %v1022 = vsel %vm825, %v751, 0
        %v1025 = vsel %vm825, %v752, 0
        %v1028 = vsel %vm825, %v753, 0
        %v1031 = vsel %vm825, %v754, 0
        %v1034 = vsel %vm825, %v755, 0
        %v1037 = vsel %vm825, %v756, 0
        %v1040 = vsel %vm825, %v757, 0
        %v1043 = vsel %vm825, %v758, 0
        %v1046 = vsel %vm825, %v759, 0
        %v1049 = vsel %vm825, %v760, 0
        %v1052 = vsel %vm825, %v761, 0
        %v1055 = vsel %vm825, %v762, 0
        %v1058 = vsel %vm825, %v763, 0
        %v1061 = vsel %vm825, %v764, 0
        %v1064 = vsel %vm825, %v765, 0
        %v1067 = vsel %vm825, %v766, 0
        %v1070 = vsel %vm825, %v767, 0
        %v1073 = vsel %vm825, %v768, 0
        %v1076 = vsel %vm825, %v769, 0
        %v1079 = vsel %vm825, %v770, 0
        %v1082 = vsel %vm825, %v771, 0
        %v1085 = vsel %vm825, %v772, 0
        %v1088 = vsel %vm825, %v773, 0
        %v1091 = vsel %vm825, %v774, 0
        %v1094 = vsel %vm825, %v775, 0
        %v1097 = vsel %vm825, %v776, 0
        %v1100 = vsel %vm825, %v777, 0
        %v1103 = vsel %vm825, %v778, 0
        %v1106 = vsel %vm825, %v779, 0
        %v1109 = vsel %vm825, %v780, 0
        %v1112 = vsel %vm825, %v781, 0
        %v1115 = vsel %vm825, %v782, 0
        %v1118 = vsel %vm825, %v783, 0
        %v1121 = vsel %vm825, %v784, 0
        %v1124 = vsel %vm825, %v785, 0
        %v1127 = vsel %vm825, %v786, 0
        %v1130 = vsel %vm825, %v787, 0
        %v1133 = vsel %vm825, %v788, 0
        %v1136 = vsel %vm825, %v789, 0
        %v1139 = vsel %vm825, %v790, 0
        %v1142 = vsel %vm825, %v791, 0
        %v1145 = vsel %vm825, %v792, 0
        %v1148 = vsel %vm825, %v793, 0
        %v1151 = vsel %vm825, %v794, 0
        %v1154 = vsel %vm825, %v795, 0
        %v1157 = vsel %vm825, %v796, 0
        %v1160 = vsel %vm825, %v797, 0
        %v1163 = vsel %vm825, %v798, 0
        %v1166 = vsel %vm825, %v799, 0
        %v1169 = vsel %vm825, %v800, 0
        %v1172 = vsel %vm825, %v801, 0
        %v1175 = vsel %vm825, %v802, 0
        %v1178 = vsel %vm825, %v803, 0
        %v1181 = vsel %vm825, %v804, 0
        %v1184 = vsel %vm825, %v805, 0
        %v1187 = vsel %vm825, %v806, 0
        %v1190 = vsel %vm825, %v807, 0
        %v1193 = vsel %vm825, %v808, 0
        %v1196 = vsel %vm825, %v809, 0
        %v1199 = vsel %vm825, %v810, 0
        %v1202 = vsel %vm825, %v811, 0
        %v1205 = vsel %vm825, %v812, 0
        %v1208 = vsel %vm825, %v813, 0
        %1210 = vmatprep.subr.mxu0 0.0
        %1211 = vmatpush1.msra.mxu0 %v814
        %1212 = vmatprep.subr.mxu0 0.0
        %1213 = vmatpush1.msra.mxu0 %v815
        %1214 = vmatprep.subr.mxu0 0.0
        %1215 = vmatpush1.msra.mxu0 %v816
        %1216 = vmatprep.subr.mxu0 0.0
        %1217 = vmatpush1.msra.mxu0 %v817
        %1218 = vmatprep.subr.mxu0 0.0
        %1219 = vmatpush1.msra.mxu0 0.0
        %1220 = vmatprep.subr.mxu0 0.0
        %1221 = vmatpush1.msra.mxu0 0.0
        %1222 = vmatprep.subr.mxu0 0.0
        %1223 = vmatpush1.msra.mxu0 0.0
        %1224 = vmatprep.subr.mxu0 0.0
        %1225 = vmatpush1.msra.mxu0 0.0
        %1226 = vmatprep.subr.mxu0 0.0
        %1227 = vmatpush1.msra.mxu0 0.0
        %1228 = vmatprep.subr.mxu0 0.0
        %1229 = vmatpush1.msra.mxu0 0.0
        %1230 = vmatprep.subr.mxu0 0.0
        %1231 = vmatpush1.msra.mxu0 0.0
        %1232 = vmatprep.subr.mxu0 0.0
        %1233 = vmatpush1.msra.mxu0 0.0
        %1234 = vmatprep.subr.mxu0 0.0
        %1235 = vmatpush1.msra.mxu0 0.0
        %1236 = vmatprep.subr.mxu0 0.0
        %1237 = vmatpush1.msra.mxu0 0.0
        %1238 = vmatprep.subr.mxu0 0.0
        %1239 = vmatpush1.msra.mxu0 0.0
        %1240 = vmatprep.subr.mxu0 0.0
        %1241 = vmatpush1.msra.mxu0 0.0
        %1242 = vmatprep.subr.mxu0 0.0
        %1243 = vmatpush1.msra.mxu0 0.0
        %1244 = vmatprep.subr.mxu0 0.0
        %1245 = vmatpush1.msra.mxu0 0.0
        %1246 = vmatprep.subr.mxu0 0.0
        %1247 = vmatpush1.msra.mxu0 0.0
        %1248 = vmatprep.subr.mxu0 0.0
        %1249 = vmatpush1.msra.mxu0 0.0
        %1250 = vmatprep.subr.mxu0 0.0
        %1251 = vmatpush1.msra.mxu0 0.0
        %1252 = vmatprep.subr.mxu0 0.0
        %1253 = vmatpush1.msra.mxu0 0.0
        %1254 = vmatprep.subr.mxu0 0.0
        %1255 = vmatpush1.msra.mxu0 0.0
        %1256 = vmatprep.subr.mxu0 0.0
        %1257 = vmatpush1.msra.mxu0 0.0
        %1258 = vmatprep.subr.mxu0 0.0
        %1259 = vmatpush1.msra.mxu0 0.0
        %1260 = vmatprep.subr.mxu0 0.0
        %1261 = vmatpush1.msra.mxu0 0.0
        %1262 = vmatprep.subr.mxu0 0.0
        %1263 = vmatpush1.msra.mxu0 0.0
        %1264 = vmatprep.subr.mxu0 0.0
        %1265 = vmatpush1.msra.mxu0 0.0
        %1266 = vmatprep.subr.mxu0 0.0
        %1267 = vmatpush1.msra.mxu0 0.0
        %1268 = vmatprep.subr.mxu0 0.0
        %1269 = vmatpush1.msra.mxu0 0.0
        %1270 = vmatprep.subr.mxu0 0.0
        %1271 = vmatpush1.msra.mxu0 0.0
        %1272 = vmatprep.subr.mxu0 0.0
        %1273 = vmatpush1.msra.mxu0 0.0
        %1274 = vmatprep.mubr.f32.mxu0 0.0
        %1275 = vmatmul.mubr.f32.gmra.mrb[0].mxu0 %v827
        %v1276 = vpop.f32.mrb[0].mxu0
        %v1277 = vadd.f32 %v823, %v1276
        %v1278 = vpop.f32.mrb[0].mxu0
        %1279 = vmatprep.mubr.f32.mxu0 0.0
        %1280 = vmatmul.mubr.f32.gmra.mrb[0].mxu0 %v830
        %v1281 = vpop.f32.mrb[0].mxu0
        %v1282 = vadd.f32 %v823, %v1281
        %v1283 = vpop.f32.mrb[0].mxu0
        %1284 = vmatprep.mubr.f32.mxu0 0.0
        %1285 = vmatmul.mubr.f32.gmra.mrb[0].mxu0 %v833
        %v1286 = vpop.f32.mrb[0].mxu0
        %v1287 = vadd.f32 %v823, %v1286
        %v1288 = vpop.f32.mrb[0].mxu0
        %1289 = vmatprep.mubr.f32.mxu0 0.0
        %1290 = vmatmul.mubr.f32.gmra.mrb[0].mxu0 %v836
        %v1291 = vpop.f32.mrb[0].mxu0
        %v1292 = vadd.f32 %v823, %v1291
        %v1293 = vpop.f32.mrb[0].mxu0
        %1294 = vmatprep.mubr.f32.mxu0 0.0
        %1295 = vmatmul.mubr.f32.gmra.mrb[0].mxu0 %v839
        %v1296 = vpop.f32.mrb[0].mxu0
        %v1297 = vadd.f32 %v823, %v1296
        %v1298 = vpop.f32.mrb[0].mxu0
        %1299 = vmatprep.mubr.f32.mxu0 0.0
        %1300 = vmatmul.mubr.f32.gmra.mrb[0].mxu0 %v842
        %v1301 = vpop.f32.mrb[0].mxu0
        %v1302 = vadd.f32 %v823, %v1301
        %v1303 = vpop.f32.mrb[0].mxu0
        %1304 = vmatprep.mubr.f32.mxu0 0.0
        %1305 = vmatmul.mubr.f32.gmra.mrb[0].mxu0 %v845
        %v1306 = vpop.f32.mrb[0].mxu0
        %v1307 = vadd.f32 %v823, %v1306
        %v1308 = vpop.f32.mrb[0].mxu0
        %1309 = vmatprep.mubr.f32.mxu0 0.0
        %1310 = vmatmul.mubr.f32.gmra.mrb[0].mxu0 %v848
        %v1311 = vpop.f32.mrb[0].mxu0
        %v1312 = vadd.f32 %v823, %v1311
        %v1313 = vpop.f32.mrb[0].mxu0
        %1314 = vmatprep.mubr.f32.mxu0 0.0
        %1315 = vmatmul.mubr.f32.gmra.mrb[0].mxu0 %v851
        %v1316 = vpop.f32.mrb[0].mxu0
        %v1317 = vadd.f32 %v823, %v1316
        %v1318 = vpop.f32.mrb[0].mxu0
        %1319 = vmatprep.mubr.f32.mxu0 0.0
        %1320 = vmatmul.mubr.f32.gmra.mrb[0].mxu0 %v854
        %v1321 = vpop.f32.mrb[0].mxu0
        %v1322 = vadd.f32 %v823, %v1321
        %v1323 = vpop.f32.mrb[0].mxu0
        %1324 = vmatprep.mubr.f32.mxu0 0.0
        %1325 = vmatmul.mubr.f32.gmra.mrb[0].mxu0 %v857
        %v1326 = vpop.f32.mrb[0].mxu0
        %v1327 = vadd.f32 %v823, %v1326
        %v1328 = vpop.f32.mrb[0].mxu0
        %1329 = vmatprep.mubr.f32.mxu0 0.0
        %1330 = vmatmul.mubr.f32.gmra.mrb[0].mxu0 %v860
        %v1331 = vpop.f32.mrb[0].mxu0
        %v1332 = vadd.f32 %v823, %v1331
        %v1333 = vpop.f32.mrb[0].mxu0
        %1334 = vmatprep.mubr.f32.mxu0 0.0
        %1335 = vmatmul.mubr.f32.gmra.mrb[0].mxu0 %v863
        %v1336 = vpop.f32.mrb[0].mxu0
        %v1337 = vadd.f32 %v823, %v1336
        %v1338 = vpop.f32.mrb[0].mxu0
        %1339 = vmatprep.mubr.f32.mxu0 0.0
        %1340 = vmatmul.mubr.f32.gmra.mrb[0].mxu0 %v866
        %v1341 = vpop.f32.mrb[0].mxu0
        %v1342 = vadd.f32 %v823, %v1341
        %v1343 = vpop.f32.mrb[0].mxu0
        %1344 = vmatprep.mubr.f32.mxu0 0.0
        %1345 = vmatmul.mubr.f32.gmra.mrb[0].mxu0 %v869
        %v1346 = vpop.f32.mrb[0].mxu0
        %v1347 = vadd.f32 %v823, %v1346
        %v1348 = vpop.f32.mrb[0].mxu0
        %1349 = vmatprep.mubr.f32.mxu0 0.0
        %1350 = vmatmul.mubr.f32.gmra.mrb[0].mxu0 %v872
        %v1351 = vpop.f32.mrb[0].mxu0
        %v1352 = vadd.f32 %v823, %v1351
        %v1353 = vpop.f32.mrb[0].mxu0
        %1354 = vmatprep.mubr.f32.mxu0 0.0
        %1355 = vmatmul.mubr.f32.gmra.mrb[0].mxu0 %v875
        %v1356 = vpop.f32.mrb[0].mxu0
        %v1357 = vadd.f32 %v823, %v1356
        %v1358 = vpop.f32.mrb[0].mxu0
        %1359 = vmatprep.mubr.f32.mxu0 0.0
        %1360 = vmatmul.mubr.f32.gmra.mrb[0].mxu0 %v878
        %v1361 = vpop.f32.mrb[0].mxu0
        %v1362 = vadd.f32 %v823, %v1361
        %v1363 = vpop.f32.mrb[0].mxu0
        %1364 = vmatprep.mubr.f32.mxu0 0.0
        %1365 = vmatmul.mubr.f32.gmra.mrb[0].mxu0 %v881
        %v1366 = vpop.f32.mrb[0].mxu0
        %v1367 = vadd.f32 %v823, %v1366
        %v1368 = vpop.f32.mrb[0].mxu0
        %1369 = vmatprep.mubr.f32.mxu0 0.0
        %1370 = vmatmul.mubr.f32.gmra.mrb[0].mxu0 %v884
        %v1371 = vpop.f32.mrb[0].mxu0
        %v1372 = vadd.f32 %v823, %v1371
        %v1373 = vpop.f32.mrb[0].mxu0
        %1374 = vmatprep.mubr.f32.mxu0 0.0
        %1375 = vmatmul.mubr.f32.gmra.mrb[0].mxu0 %v887
        %v1376 = vpop.f32.mrb[0].mxu0
        %v1377 = vadd.f32 %v823, %v1376
        %v1378 = vpop.f32.mrb[0].mxu0
        %1379 = vmatprep.mubr.f32.mxu0 0.0
        %1380 = vmatmul.mubr.f32.gmra.mrb[0].mxu0 %v890
        %v1381 = vpop.f32.mrb[0].mxu0
        %v1382 = vadd.f32 %v823, %v1381
        %v1383 = vpop.f32.mrb[0].mxu0
        %1384 = vmatprep.mubr.f32.mxu0 0.0
        %1385 = vmatmul.mubr.f32.gmra.mrb[0].mxu0 %v893
        %v1386 = vpop.f32.mrb[0].mxu0
        %v1387 = vadd.f32 %v823, %v1386
        %v1388 = vpop.f32.mrb[0].mxu0
        %1389 = vmatprep.mubr.f32.mxu0 0.0
        %1390 = vmatmul.mubr.f32.gmra.mrb[0].mxu0 %v896
        %v1391 = vpop.f32.mrb[0].mxu0
        %v1392 = vadd.f32 %v823, %v1391
        %v1393 = vpop.f32.mrb[0].mxu0
        %1394 = vmatprep.mubr.f32.mxu0 0.0
        %1395 = vmatmul.mubr.f32.gmra.mrb[0].mxu0 %v899
        %v1396 = vpop.f32.mrb[0].mxu0
        %v1397 = vadd.f32 %v823, %v1396
        %v1398 = vpop.f32.mrb[0].mxu0
        %1399 = vmatprep.mubr.f32.mxu0 0.0
        %1400 = vmatmul.mubr.f32.gmra.mrb[0].mxu0 %v902
        %v1401 = vpop.f32.mrb[0].mxu0
        %v1402 = vadd.f32 %v823, %v1401
        %v1403 = vpop.f32.mrb[0].mxu0
        %1404 = vmatprep.mubr.f32.mxu0 0.0
        %1405 = vmatmul.mubr.f32.gmra.mrb[0].mxu0 %v905
        %v1406 = vpop.f32.mrb[0].mxu0
        %v1407 = vadd.f32 %v823, %v1406
        %v1408 = vpop.f32.mrb[0].mxu0
        %1409 = vmatprep.mubr.f32.mxu0 0.0
        %1410 = vmatmul.mubr.f32.gmra.mrb[0].mxu0 %v908
        %v1411 = vpop.f32.mrb[0].mxu0
        %v1412 = vadd.f32 %v823, %v1411
        %v1413 = vpop.f32.mrb[0].mxu0
        %1414 = vmatprep.mubr.f32.mxu0 0.0
        %1415 = vmatmul.mubr.f32.gmra.mrb[0].mxu0 %v911
        %v1416 = vpop.f32.mrb[0].mxu0
        %v1417 = vadd.f32 %v823, %v1416
        %v1418 = vpop.f32.mrb[0].mxu0
        %1419 = vmatprep.mubr.f32.mxu0 0.0
        %1420 = vmatmul.mubr.f32.gmra.mrb[0].mxu0 %v914
        %v1421 = vpop.f32.mrb[0].mxu0
        %v1422 = vadd.f32 %v823, %v1421
        %v1423 = vpop.f32.mrb[0].mxu0
        %1424 = vmatprep.mubr.f32.mxu0 0.0
        %1425 = vmatmul.mubr.f32.gmra.mrb[0].mxu0 %v917
        %v1426 = vpop.f32.mrb[0].mxu0
        %v1427 = vadd.f32 %v823, %v1426
        %v1428 = vpop.f32.mrb[0].mxu0
        %1429 = vmatprep.mubr.f32.mxu0 0.0
        %1430 = vmatmul.mubr.f32.gmra.mrb[0].mxu0 %v920
        %v1431 = vpop.f32.mrb[0].mxu0
        %v1432 = vadd.f32 %v823, %v1431
        %v1433 = vpop.f32.mrb[0].mxu0
        %1434 = vmatprep.mubr.f32.mxu0 0.0
        %1435 = vmatmul.mubr.f32.gmra.mrb[0].mxu0 %v923
        %v1436 = vpop.f32.mrb[0].mxu0
        %v1437 = vadd.f32 %v823, %v1436
        %v1438 = vpop.f32.mrb[0].mxu0
        %1439 = vmatprep.mubr.f32.mxu0 0.0
        %1440 = vmatmul.mubr.f32.gmra.mrb[0].mxu0 %v926
        %v1441 = vpop.f32.mrb[0].mxu0
        %v1442 = vadd.f32 %v823, %v1441
        %v1443 = vpop.f32.mrb[0].mxu0
        %1444 = vmatprep.mubr.f32.mxu0 0.0
        %1445 = vmatmul.mubr.f32.gmra.mrb[0].mxu0 %v929
        %v1446 = vpop.f32.mrb[0].mxu0
        %v1447 = vadd.f32 %v823, %v1446
        %v1448 = vpop.f32.mrb[0].mxu0
        %1449 = vmatprep.mubr.f32.mxu0 0.0
        %1450 = vmatmul.mubr.f32.gmra.mrb[0].mxu0 %v932
        %v1451 = vpop.f32.mrb[0].mxu0
        %v1452 = vadd.f32 %v823, %v1451
        %v1453 = vpop.f32.mrb[0].mxu0
        %1454 = vmatprep.mubr.f32.mxu0 0.0
        %1455 = vmatmul.mubr.f32.gmra.mrb[0].mxu0 %v935
        %v1456 = vpop.f32.mrb[0].mxu0
        %v1457 = vadd.f32 %v823, %v1456
        %v1458 = vpop.f32.mrb[0].mxu0
        %1459 = vmatprep.mubr.f32.mxu0 0.0
        %1460 = vmatmul.mubr.f32.gmra.mrb[0].mxu0 %v938
        %v1461 = vpop.f32.mrb[0].mxu0
        %v1462 = vadd.f32 %v823, %v1461
        %v1463 = vpop.f32.mrb[0].mxu0
        %1464 = vmatprep.mubr.f32.mxu0 0.0
        %1465 = vmatmul.mubr.f32.gmra.mrb[0].mxu0 %v941
        %v1466 = vpop.f32.mrb[0].mxu0
        %v1467 = vadd.f32 %v823, %v1466
        %v1468 = vpop.f32.mrb[0].mxu0
        %1469 = vmatprep.mubr.f32.mxu0 0.0
        %1470 = vmatmul.mubr.f32.gmra.mrb[0].mxu0 %v944
        %v1471 = vpop.f32.mrb[0].mxu0
        %v1472 = vadd.f32 %v823, %v1471
        %v1473 = vpop.f32.mrb[0].mxu0
        %1474 = vmatprep.mubr.f32.mxu0 0.0
        %1475 = vmatmul.mubr.f32.gmra.mrb[0].mxu0 %v947
        %v1476 = vpop.f32.mrb[0].mxu0
        %v1477 = vadd.f32 %v823, %v1476
        %v1478 = vpop.f32.mrb[0].mxu0
        %1479 = vmatprep.mubr.f32.mxu0 0.0
        %1480 = vmatmul.mubr.f32.gmra.mrb[0].mxu0 %v950
        %v1481 = vpop.f32.mrb[0].mxu0
        %v1482 = vadd.f32 %v823, %v1481
        %v1483 = vpop.f32.mrb[0].mxu0
        %1484 = vmatprep.mubr.f32.mxu0 0.0
        %1485 = vmatmul.mubr.f32.gmra.mrb[0].mxu0 %v953
        %v1486 = vpop.f32.mrb[0].mxu0
        %v1487 = vadd.f32 %v823, %v1486
        %v1488 = vpop.f32.mrb[0].mxu0
        %1489 = vmatprep.mubr.f32.mxu0 0.0
        %1490 = vmatmul.mubr.f32.gmra.mrb[0].mxu0 %v956
        %v1491 = vpop.f32.mrb[0].mxu0
        %v1492 = vadd.f32 %v823, %v1491
        %v1493 = vpop.f32.mrb[0].mxu0
        %1494 = vmatprep.mubr.f32.mxu0 0.0
        %1495 = vmatmul.mubr.f32.gmra.mrb[0].mxu0 %v959
        %v1496 = vpop.f32.mrb[0].mxu0
        %v1497 = vadd.f32 %v823, %v1496
        %v1498 = vpop.f32.mrb[0].mxu0
        %1499 = vmatprep.mubr.f32.mxu0 0.0
        %1500 = vmatmul.mubr.f32.gmra.mrb[0].mxu0 %v962
        %v1501 = vpop.f32.mrb[0].mxu0
        %v1502 = vadd.f32 %v823, %v1501
        %v1503 = vpop.f32.mrb[0].mxu0
        %1504 = vmatprep.mubr.f32.mxu0 0.0
        %1505 = vmatmul.mubr.f32.gmra.mrb[0].mxu0 %v965
        %v1506 = vpop.f32.mrb[0].mxu0
        %v1507 = vadd.f32 %v823, %v1506
        %v1508 = vpop.f32.mrb[0].mxu0
        %1509 = vmatprep.mubr.f32.mxu0 0.0
        %1510 = vmatmul.mubr.f32.gmra.mrb[0].mxu0 %v968
        %v1511 = vpop.f32.mrb[0].mxu0
        %v1512 = vadd.f32 %v823, %v1511
        %v1513 = vpop.f32.mrb[0].mxu0
        %1514 = vmatprep.mubr.f32.mxu0 0.0
        %1515 = vmatmul.mubr.f32.gmra.mrb[0].mxu0 %v971
        %v1516 = vpop.f32.mrb[0].mxu0
        %v1517 = vadd.f32 %v823, %v1516
        %v1518 = vpop.f32.mrb[0].mxu0
        %1519 = vmatprep.mubr.f32.mxu0 0.0
        %1520 = vmatmul.mubr.f32.gmra.mrb[0].mxu0 %v974
        %v1521 = vpop.f32.mrb[0].mxu0
        %v1522 = vadd.f32 %v823, %v1521
        %v1523 = vpop.f32.mrb[0].mxu0
        %1524 = vmatprep.mubr.f32.mxu0 0.0
        %1525 = vmatmul.mubr.f32.gmra.mrb[0].mxu0 %v977
        %v1526 = vpop.f32.mrb[0].mxu0
        %v1527 = vadd.f32 %v823, %v1526
        %v1528 = vpop.f32.mrb[0].mxu0
        %1529 = vmatprep.mubr.f32.mxu0 0.0
        %1530 = vmatmul.mubr.f32.gmra.mrb[0].mxu0 %v980
        %v1531 = vpop.f32.mrb[0].mxu0
        %v1532 = vadd.f32 %v823, %v1531
        %v1533 = vpop.f32.mrb[0].mxu0
        %1534 = vmatprep.mubr.f32.mxu0 0.0
        %1535 = vmatmul.mubr.f32.gmra.mrb[0].mxu0 %v983
        %v1536 = vpop.f32.mrb[0].mxu0
        %v1537 = vadd.f32 %v823, %v1536
        %v1538 = vpop.f32.mrb[0].mxu0
        %1539 = vmatprep.mubr.f32.mxu0 0.0
        %1540 = vmatmul.mubr.f32.gmra.mrb[0].mxu0 %v986
        %v1541 = vpop.f32.mrb[0].mxu0
        %v1542 = vadd.f32 %v823, %v1541
        %v1543 = vpop.f32.mrb[0].mxu0
        %1544 = vmatprep.mubr.f32.mxu0 0.0
        %1545 = vmatmul.mubr.f32.gmra.mrb[0].mxu0 %v989
        %v1546 = vpop.f32.mrb[0].mxu0
        %v1547 = vadd.f32 %v823, %v1546
        %v1548 = vpop.f32.mrb[0].mxu0
        %1549 = vmatprep.mubr.f32.mxu0 0.0
        %1550 = vmatmul.mubr.f32.gmra.mrb[0].mxu0 %v992
        %v1551 = vpop.f32.mrb[0].mxu0
        %v1552 = vadd.f32 %v823, %v1551
        %v1553 = vpop.f32.mrb[0].mxu0
        %1554 = vmatprep.mubr.f32.mxu0 0.0
        %1555 = vmatmul.mubr.f32.gmra.mrb[0].mxu0 %v995
        %v1556 = vpop.f32.mrb[0].mxu0
        %v1557 = vadd.f32 %v823, %v1556
        %v1558 = vpop.f32.mrb[0].mxu0
        %1559 = vmatprep.mubr.f32.mxu0 0.0
        %1560 = vmatmul.mubr.f32.gmra.mrb[0].mxu0 %v998
        %v1561 = vpop.f32.mrb[0].mxu0
        %v1562 = vadd.f32 %v823, %v1561
        %v1563 = vpop.f32.mrb[0].mxu0
        %1564 = vmatprep.mubr.f32.mxu0 0.0
        %1565 = vmatmul.mubr.f32.gmra.mrb[0].mxu0 %v1001
        %v1566 = vpop.f32.mrb[0].mxu0
        %v1567 = vadd.f32 %v823, %v1566
        %v1568 = vpop.f32.mrb[0].mxu0
        %1569 = vmatprep.mubr.f32.mxu0 0.0
        %1570 = vmatmul.mubr.f32.gmra.mrb[0].mxu0 %v1004
        %v1571 = vpop.f32.mrb[0].mxu0
        %v1572 = vadd.f32 %v823, %v1571
        %v1573 = vpop.f32.mrb[0].mxu0
        %1574 = vmatprep.mubr.f32.mxu0 0.0
        %1575 = vmatmul.mubr.f32.gmra.mrb[0].mxu0 %v1007
        %v1576 = vpop.f32.mrb[0].mxu0
        %v1577 = vadd.f32 %v823, %v1576
        %v1578 = vpop.f32.mrb[0].mxu0
        %1579 = vmatprep.mubr.f32.mxu0 0.0
        %1580 = vmatmul.mubr.f32.gmra.mrb[0].mxu0 %v1010
        %v1581 = vpop.f32.mrb[0].mxu0
        %v1582 = vadd.f32 %v823, %v1581
        %v1583 = vpop.f32.mrb[0].mxu0
        %1584 = vmatprep.mubr.f32.mxu0 0.0
        %1585 = vmatmul.mubr.f32.gmra.mrb[0].mxu0 %v1013
        %v1586 = vpop.f32.mrb[0].mxu0
        %v1587 = vadd.f32 %v823, %v1586
        %v1588 = vpop.f32.mrb[0].mxu0
        %1589 = vmatprep.mubr.f32.mxu0 0.0
        %1590 = vmatmul.mubr.f32.gmra.mrb[0].mxu0 %v1016
        %v1591 = vpop.f32.mrb[0].mxu0
        %v1592 = vadd.f32 %v823, %v1591
        %v1593 = vpop.f32.mrb[0].mxu0
        %1594 = vmatprep.mubr.f32.mxu0 0.0
        %1595 = vmatmul.mubr.f32.gmra.mrb[0].mxu0 %v1019
        %v1596 = vpop.f32.mrb[0].mxu0
        %v1597 = vadd.f32 %v823, %v1596
        %v1598 = vpop.f32.mrb[0].mxu0
        %1599 = vmatprep.mubr.f32.mxu0 0.0
        %1600 = vmatmul.mubr.f32.gmra.mrb[0].mxu0 %v1022
        %v1601 = vpop.f32.mrb[0].mxu0
        %v1602 = vadd.f32 %v823, %v1601
        %v1603 = vpop.f32.mrb[0].mxu0
        %1604 = vmatprep.mubr.f32.mxu0 0.0
        %1605 = vmatmul.mubr.f32.gmra.mrb[0].mxu0 %v1025
        %v1606 = vpop.f32.mrb[0].mxu0
        %v1607 = vadd.f32 %v823, %v1606
        %v1608 = vpop.f32.mrb[0].mxu0
        %1609 = vmatprep.mubr.f32.mxu0 0.0
        %1610 = vmatmul.mubr.f32.gmra.mrb[0].mxu0 %v1028
        %v1611 = vpop.f32.mrb[0].mxu0
        %v1612 = vadd.f32 %v823, %v1611
        %v1613 = vpop.f32.mrb[0].mxu0
        %1614 = vmatprep.mubr.f32.mxu0 0.0
        %1615 = vmatmul.mubr.f32.gmra.mrb[0].mxu0 %v1031
        %v1616 = vpop.f32.mrb[0].mxu0
        %v1617 = vadd.f32 %v823, %v1616
        %v1618 = vpop.f32.mrb[0].mxu0
        %1619 = vmatprep.mubr.f32.mxu0 0.0
        %1620 = vmatmul.mubr.f32.gmra.mrb[0].mxu0 %v1034
        %v1621 = vpop.f32.mrb[0].mxu0
        %v1622 = vadd.f32 %v823, %v1621
        %v1623 = vpop.f32.mrb[0].mxu0
        %1624 = vmatprep.mubr.f32.mxu0 0.0
        %1625 = vmatmul.mubr.f32.gmra.mrb[0].mxu0 %v1037
        %v1626 = vpop.f32.mrb[0].mxu0
        %v1627 = vadd.f32 %v823, %v1626
        %v1628 = vpop.f32.mrb[0].mxu0
        %1629 = vmatprep.mubr.f32.mxu0 0.0
        %1630 = vmatmul.mubr.f32.gmra.mrb[0].mxu0 %v1040
        %v1631 = vpop.f32.mrb[0].mxu0
        %v1632 = vadd.f32 %v823, %v1631
        %v1633 = vpop.f32.mrb[0].mxu0
        %1634 = vmatprep.mubr.f32.mxu0 0.0
        %1635 = vmatmul.mubr.f32.gmra.mrb[0].mxu0 %v1043
        %v1636 = vpop.f32.mrb[0].mxu0
        %v1637 = vadd.f32 %v823, %v1636
        %v1638 = vpop.f32.mrb[0].mxu0
        %1639 = vmatprep.mubr.f32.mxu0 0.0
        %1640 = vmatmul.mubr.f32.gmra.mrb[0].mxu0 %v1046
        %v1641 = vpop.f32.mrb[0].mxu0
        %v1642 = vadd.f32 %v823, %v1641
        %v1643 = vpop.f32.mrb[0].mxu0
        %1644 = vmatprep.mubr.f32.mxu0 0.0
        %1645 = vmatmul.mubr.f32.gmra.mrb[0].mxu0 %v1049
        %v1646 = vpop.f32.mrb[0].mxu0
        %v1647 = vadd.f32 %v823, %v1646
        %v1648 = vpop.f32.mrb[0].mxu0
        %1649 = vmatprep.mubr.f32.mxu0 0.0
        %1650 = vmatmul.mubr.f32.gmra.mrb[0].mxu0 %v1052
        %v1651 = vpop.f32.mrb[0].mxu0
        %v1652 = vadd.f32 %v823, %v1651
        %v1653 = vpop.f32.mrb[0].mxu0
        %1654 = vmatprep.mubr.f32.mxu0 0.0
        %1655 = vmatmul.mubr.f32.gmra.mrb[0].mxu0 %v1055
        %v1656 = vpop.f32.mrb[0].mxu0
        %v1657 = vadd.f32 %v823, %v1656
        %v1658 = vpop.f32.mrb[0].mxu0
        %1659 = vmatprep.mubr.f32.mxu0 0.0
        %1660 = vmatmul.mubr.f32.gmra.mrb[0].mxu0 %v1058
        %v1661 = vpop.f32.mrb[0].mxu0
        %v1662 = vadd.f32 %v823, %v1661
        %v1663 = vpop.f32.mrb[0].mxu0
        %1664 = vmatprep.mubr.f32.mxu0 0.0
        %1665 = vmatmul.mubr.f32.gmra.mrb[0].mxu0 %v1061
        %v1666 = vpop.f32.mrb[0].mxu0
        %v1667 = vadd.f32 %v823, %v1666
        %v1668 = vpop.f32.mrb[0].mxu0
        %1669 = vmatprep.mubr.f32.mxu0 0.0
        %1670 = vmatmul.mubr.f32.gmra.mrb[0].mxu0 %v1064
        %v1671 = vpop.f32.mrb[0].mxu0
        %v1672 = vadd.f32 %v823, %v1671
        %v1673 = vpop.f32.mrb[0].mxu0
        %1674 = vmatprep.mubr.f32.mxu0 0.0
        %1675 = vmatmul.mubr.f32.gmra.mrb[0].mxu0 %v1067
        %v1676 = vpop.f32.mrb[0].mxu0
        %v1677 = vadd.f32 %v823, %v1676
        %v1678 = vpop.f32.mrb[0].mxu0
        %1679 = vmatprep.mubr.f32.mxu0 0.0
        %1680 = vmatmul.mubr.f32.gmra.mrb[0].mxu0 %v1070
        %v1681 = vpop.f32.mrb[0].mxu0
        %v1682 = vadd.f32 %v823, %v1681
        %v1683 = vpop.f32.mrb[0].mxu0
        %1684 = vmatprep.mubr.f32.mxu0 0.0
        %1685 = vmatmul.mubr.f32.gmra.mrb[0].mxu0 %v1073
        %v1686 = vpop.f32.mrb[0].mxu0
        %v1687 = vadd.f32 %v823, %v1686
        %v1688 = vpop.f32.mrb[0].mxu0
        %1689 = vmatprep.mubr.f32.mxu0 0.0
        %1690 = vmatmul.mubr.f32.gmra.mrb[0].mxu0 %v1076
        %v1691 = vpop.f32.mrb[0].mxu0
        %v1692 = vadd.f32 %v823, %v1691
        %v1693 = vpop.f32.mrb[0].mxu0
        %1694 = vmatprep.mubr.f32.mxu0 0.0
        %1695 = vmatmul.mubr.f32.gmra.mrb[0].mxu0 %v1079
        %v1696 = vpop.f32.mrb[0].mxu0
        %v1697 = vadd.f32 %v823, %v1696
        %v1698 = vpop.f32.mrb[0].mxu0
        %1699 = vmatprep.mubr.f32.mxu0 0.0
        %1700 = vmatmul.mubr.f32.gmra.mrb[0].mxu0 %v1082
        %v1701 = vpop.f32.mrb[0].mxu0
        %v1702 = vadd.f32 %v823, %v1701
        %v1703 = vpop.f32.mrb[0].mxu0
        %1704 = vmatprep.mubr.f32.mxu0 0.0
        %1705 = vmatmul.mubr.f32.gmra.mrb[0].mxu0 %v1085
        %v1706 = vpop.f32.mrb[0].mxu0
        %v1707 = vadd.f32 %v823, %v1706
        %v1708 = vpop.f32.mrb[0].mxu0
        %1709 = vmatprep.mubr.f32.mxu0 0.0
        %1710 = vmatmul.mubr.f32.gmra.mrb[0].mxu0 %v1088
        %v1711 = vpop.f32.mrb[0].mxu0
        %v1712 = vadd.f32 %v823, %v1711
        %v1713 = vpop.f32.mrb[0].mxu0
        %1714 = vmatprep.mubr.f32.mxu0 0.0
        %1715 = vmatmul.mubr.f32.gmra.mrb[0].mxu0 %v1091
        %v1716 = vpop.f32.mrb[0].mxu0
        %v1717 = vadd.f32 %v823, %v1716
        %v1718 = vpop.f32.mrb[0].mxu0
        %1719 = vmatprep.mubr.f32.mxu0 0.0
        %1720 = vmatmul.mubr.f32.gmra.mrb[0].mxu0 %v1094
        %v1721 = vpop.f32.mrb[0].mxu0
        %v1722 = vadd.f32 %v823, %v1721
        %v1723 = vpop.f32.mrb[0].mxu0
        %1724 = vmatprep.mubr.f32.mxu0 0.0
        %1725 = vmatmul.mubr.f32.gmra.mrb[0].mxu0 %v1097
        %v1726 = vpop.f32.mrb[0].mxu0
        %v1727 = vadd.f32 %v823, %v1726
        %v1728 = vpop.f32.mrb[0].mxu0
        %1729 = vmatprep.mubr.f32.mxu0 0.0
        %1730 = vmatmul.mubr.f32.gmra.mrb[0].mxu0 %v1100
        %v1731 = vpop.f32.mrb[0].mxu0
        %v1732 = vadd.f32 %v823, %v1731
        %v1733 = vpop.f32.mrb[0].mxu0
        %1734 = vmatprep.mubr.f32.mxu0 0.0
        %1735 = vmatmul.mubr.f32.gmra.mrb[0].mxu0 %v1103
        %v1736 = vpop.f32.mrb[0].mxu0
        %v1737 = vadd.f32 %v823, %v1736
        %v1738 = vpop.f32.mrb[0].mxu0
        %1739 = vmatprep.mubr.f32.mxu0 0.0
        %1740 = vmatmul.mubr.f32.gmra.mrb[0].mxu0 %v1106
        %v1741 = vpop.f32.mrb[0].mxu0
        %v1742 = vadd.f32 %v823, %v1741
        %v1743 = vpop.f32.mrb[0].mxu0
        %1744 = vmatprep.mubr.f32.mxu0 0.0
        %1745 = vmatmul.mubr.f32.gmra.mrb[0].mxu0 %v1109
        %v1746 = vpop.f32.mrb[0].mxu0
        %v1747 = vadd.f32 %v823, %v1746
        %v1748 = vpop.f32.mrb[0].mxu0
        %1749 = vmatprep.mubr.f32.mxu0 0.0
        %1750 = vmatmul.mubr.f32.gmra.mrb[0].mxu0 %v1112
        %v1751 = vpop.f32.mrb[0].mxu0
        %v1752 = vadd.f32 %v823, %v1751
        %v1753 = vpop.f32.mrb[0].mxu0
        %1754 = vmatprep.mubr.f32.mxu0 0.0
        %1755 = vmatmul.mubr.f32.gmra.mrb[0].mxu0 %v1115
        %v1756 = vpop.f32.mrb[0].mxu0
        %v1757 = vadd.f32 %v823, %v1756
        %v1758 = vpop.f32.mrb[0].mxu0
        %1759 = vmatprep.mubr.f32.mxu0 0.0
        %1760 = vmatmul.mubr.f32.gmra.mrb[0].mxu0 %v1118
        %v1761 = vpop.f32.mrb[0].mxu0
        %v1762 = vadd.f32 %v823, %v1761
        %v1763 = vpop.f32.mrb[0].mxu0
        %1764 = vmatprep.mubr.f32.mxu0 0.0
        %1765 = vmatmul.mubr.f32.gmra.mrb[0].mxu0 %v1121
        %v1766 = vpop.f32.mrb[0].mxu0
        %v1767 = vadd.f32 %v823, %v1766
        %v1768 = vpop.f32.mrb[0].mxu0
        %1769 = vmatprep.mubr.f32.mxu0 0.0
        %1770 = vmatmul.mubr.f32.gmra.mrb[0].mxu0 %v1124
        %v1771 = vpop.f32.mrb[0].mxu0
        %v1772 = vadd.f32 %v823, %v1771
        %v1773 = vpop.f32.mrb[0].mxu0
        %1774 = vmatprep.mubr.f32.mxu0 0.0
        %1775 = vmatmul.mubr.f32.gmra.mrb[0].mxu0 %v1127
        %v1776 = vpop.f32.mrb[0].mxu0
        %v1777 = vadd.f32 %v823, %v1776
        %v1778 = vpop.f32.mrb[0].mxu0
        %1779 = vmatprep.mubr.f32.mxu0 0.0
        %1780 = vmatmul.mubr.f32.gmra.mrb[0].mxu0 %v1130
        %v1781 = vpop.f32.mrb[0].mxu0
        %v1782 = vadd.f32 %v823, %v1781
        %v1783 = vpop.f32.mrb[0].mxu0
        %1784 = vmatprep.mubr.f32.mxu0 0.0
        %1785 = vmatmul.mubr.f32.gmra.mrb[0].mxu0 %v1133
        %v1786 = vpop.f32.mrb[0].mxu0
        %v1787 = vadd.f32 %v823, %v1786
        %v1788 = vpop.f32.mrb[0].mxu0
        %1789 = vmatprep.mubr.f32.mxu0 0.0
        %1790 = vmatmul.mubr.f32.gmra.mrb[0].mxu0 %v1136
        %v1791 = vpop.f32.mrb[0].mxu0
        %v1792 = vadd.f32 %v823, %v1791
        %v1793 = vpop.f32.mrb[0].mxu0
        %1794 = vmatprep.mubr.f32.mxu0 0.0
        %1795 = vmatmul.mubr.f32.gmra.mrb[0].mxu0 %v1139
        %v1796 = vpop.f32.mrb[0].mxu0
        %v1797 = vadd.f32 %v823, %v1796
        %v1798 = vpop.f32.mrb[0].mxu0
        %1799 = vmatprep.mubr.f32.mxu0 0.0
        %1800 = vmatmul.mubr.f32.gmra.mrb[0].mxu0 %v1142
        %v1801 = vpop.f32.mrb[0].mxu0
        %v1802 = vadd.f32 %v823, %v1801
        %v1803 = vpop.f32.mrb[0].mxu0
        %1804 = vmatprep.mubr.f32.mxu0 0.0
        %1805 = vmatmul.mubr.f32.gmra.mrb[0].mxu0 %v1145
        %v1806 = vpop.f32.mrb[0].mxu0
        %v1807 = vadd.f32 %v823, %v1806
        %v1808 = vpop.f32.mrb[0].mxu0
        %1809 = vmatprep.mubr.f32.mxu0 0.0
        %1810 = vmatmul.mubr.f32.gmra.mrb[0].mxu0 %v1148
        %v1811 = vpop.f32.mrb[0].mxu0
        %v1812 = vadd.f32 %v823, %v1811
        %v1813 = vpop.f32.mrb[0].mxu0
        %1814 = vmatprep.mubr.f32.mxu0 0.0
        %1815 = vmatmul.mubr.f32.gmra.mrb[0].mxu0 %v1151
        %v1816 = vpop.f32.mrb[0].mxu0
        %v1817 = vadd.f32 %v823, %v1816
        %v1818 = vpop.f32.mrb[0].mxu0
        %1819 = vmatprep.mubr.f32.mxu0 0.0
        %1820 = vmatmul.mubr.f32.gmra.mrb[0].mxu0 %v1154
        %v1821 = vpop.f32.mrb[0].mxu0
        %v1822 = vadd.f32 %v823, %v1821
        %v1823 = vpop.f32.mrb[0].mxu0
        %1824 = vmatprep.mubr.f32.mxu0 0.0
        %1825 = vmatmul.mubr.f32.gmra.mrb[0].mxu0 %v1157
        %v1826 = vpop.f32.mrb[0].mxu0
        %v1827 = vadd.f32 %v823, %v1826
        %v1828 = vpop.f32.mrb[0].mxu0
        %1829 = vmatprep.mubr.f32.mxu0 0.0
        %1830 = vmatmul.mubr.f32.gmra.mrb[0].mxu0 %v1160
        %v1831 = vpop.f32.mrb[0].mxu0
        %v1832 = vadd.f32 %v823, %v1831
        %v1833 = vpop.f32.mrb[0].mxu0
        %1834 = vmatprep.mubr.f32.mxu0 0.0
        %1835 = vmatmul.mubr.f32.gmra.mrb[0].mxu0 %v1163
        %v1836 = vpop.f32.mrb[0].mxu0
        %v1837 = vadd.f32 %v823, %v1836
        %v1838 = vpop.f32.mrb[0].mxu0
        %1839 = vmatprep.mubr.f32.mxu0 0.0
        %1840 = vmatmul.mubr.f32.gmra.mrb[0].mxu0 %v1166
        %v1841 = vpop.f32.mrb[0].mxu0
        %v1842 = vadd.f32 %v823, %v1841
        %v1843 = vpop.f32.mrb[0].mxu0
        %1844 = vmatprep.mubr.f32.mxu0 0.0
        %1845 = vmatmul.mubr.f32.gmra.mrb[0].mxu0 %v1169
        %v1846 = vpop.f32.mrb[0].mxu0
        %v1847 = vadd.f32 %v823, %v1846
        %v1848 = vpop.f32.mrb[0].mxu0
        %1849 = vmatprep.mubr.f32.mxu0 0.0
        %1850 = vmatmul.mubr.f32.gmra.mrb[0].mxu0 %v1172
        %v1851 = vpop.f32.mrb[0].mxu0
        %v1852 = vadd.f32 %v823, %v1851
        %v1853 = vpop.f32.mrb[0].mxu0
        %1854 = vmatprep.mubr.f32.mxu0 0.0
        %1855 = vmatmul.mubr.f32.gmra.mrb[0].mxu0 %v1175
        %v1856 = vpop.f32.mrb[0].mxu0
        %v1857 = vadd.f32 %v823, %v1856
        %v1858 = vpop.f32.mrb[0].mxu0
        %1859 = vmatprep.mubr.f32.mxu0 0.0
        %1860 = vmatmul.mubr.f32.gmra.mrb[0].mxu0 %v1178
        %v1861 = vpop.f32.mrb[0].mxu0
        %v1862 = vadd.f32 %v823, %v1861
        %v1863 = vpop.f32.mrb[0].mxu0
        %1864 = vmatprep.mubr.f32.mxu0 0.0
        %1865 = vmatmul.mubr.f32.gmra.mrb[0].mxu0 %v1181
        %v1866 = vpop.f32.mrb[0].mxu0
        %v1867 = vadd.f32 %v823, %v1866
        %v1868 = vpop.f32.mrb[0].mxu0
        %1869 = vmatprep.mubr.f32.mxu0 0.0
        %1870 = vmatmul.mubr.f32.gmra.mrb[0].mxu0 %v1184
        %v1871 = vpop.f32.mrb[0].mxu0
        %v1872 = vadd.f32 %v823, %v1871
        %v1873 = vpop.f32.mrb[0].mxu0
        %1874 = vmatprep.mubr.f32.mxu0 0.0
        %1875 = vmatmul.mubr.f32.gmra.mrb[0].mxu0 %v1187
        %v1876 = vpop.f32.mrb[0].mxu0
        %v1877 = vadd.f32 %v823, %v1876
        %v1878 = vpop.f32.mrb[0].mxu0
        %1879 = vmatprep.mubr.f32.mxu0 0.0
        %1880 = vmatmul.mubr.f32.gmra.mrb[0].mxu0 %v1190
        %v1881 = vpop.f32.mrb[0].mxu0
        %v1882 = vadd.f32 %v823, %v1881
        %v1883 = vpop.f32.mrb[0].mxu0
        %1884 = vmatprep.mubr.f32.mxu0 0.0
        %1885 = vmatmul.mubr.f32.gmra.mrb[0].mxu0 %v1193
        %v1886 = vpop.f32.mrb[0].mxu0
        %v1887 = vadd.f32 %v823, %v1886
        %v1888 = vpop.f32.mrb[0].mxu0
        %1889 = vmatprep.mubr.f32.mxu0 0.0
        %1890 = vmatmul.mubr.f32.gmra.mrb[0].mxu0 %v1196
        %v1891 = vpop.f32.mrb[0].mxu0
        %v1892 = vadd.f32 %v823, %v1891
        %v1893 = vpop.f32.mrb[0].mxu0
        %1894 = vmatprep.mubr.f32.mxu0 0.0
        %1895 = vmatmul.mubr.f32.gmra.mrb[0].mxu0 %v1199
        %v1896 = vpop.f32.mrb[0].mxu0
        %v1897 = vadd.f32 %v823, %v1896
        %v1898 = vpop.f32.mrb[0].mxu0
        %1899 = vmatprep.mubr.f32.mxu0 0.0
        %1900 = vmatmul.mubr.f32.gmra.mrb[0].mxu0 %v1202
        %v1901 = vpop.f32.mrb[0].mxu0
        %v1902 = vadd.f32 %v823, %v1901
        %v1903 = vpop.f32.mrb[0].mxu0
        %1904 = vmatprep.mubr.f32.mxu0 0.0
        %1905 = vmatmul.mubr.f32.gmra.mrb[0].mxu0 %v1205
        %v1906 = vpop.f32.mrb[0].mxu0
        %v1907 = vadd.f32 %v823, %v1906
        %v1908 = vpop.f32.mrb[0].mxu0
        %1909 = vmatprep.mubr.f32.mxu0 0.0
        %1910 = vmatmul.mubr.f32.gmra.mrb[0].mxu0 %v1208
        %v1911 = vpop.f32.mrb[0].mxu0
        %v1912 = vadd.f32 %v823, %v1911
        %v1913 = vpop.f32.mrb[0].mxu0
        %1914 = vdwg.mxu0
        %v1915 = vmax.f32 %v1277, 0.0
        %v1916 = vmax.f32 %v1282, 0.0
        %v1917 = vmax.f32 %v1287, 0.0
        %v1918 = vmax.f32 %v1292, 0.0
        %v1919 = vmax.f32 %v1297, 0.0
        %v1920 = vmax.f32 %v1302, 0.0
        %v1921 = vmax.f32 %v1307, 0.0
        %v1922 = vmax.f32 %v1312, 0.0
        %v1923 = vmax.f32 %v1317, 0.0
        %v1924 = vmax.f32 %v1322, 0.0
        %v1925 = vmax.f32 %v1327, 0.0
        %v1926 = vmax.f32 %v1332, 0.0
        %v1927 = vmax.f32 %v1337, 0.0
        %v1928 = vmax.f32 %v1342, 0.0
        %v1929 = vmax.f32 %v1347, 0.0
        %v1930 = vmax.f32 %v1352, 0.0
        %v1931 = vmax.f32 %v1357, 0.0
        %v1932 = vmax.f32 %v1362, 0.0
        %v1933 = vmax.f32 %v1367, 0.0
        %v1934 = vmax.f32 %v1372, 0.0
        %v1935 = vmax.f32 %v1377, 0.0
        %v1936 = vmax.f32 %v1382, 0.0
        %v1937 = vmax.f32 %v1387, 0.0
        %v1938 = vmax.f32 %v1392, 0.0
        %v1939 = vmax.f32 %v1397, 0.0
        %v1940 = vmax.f32 %v1402, 0.0
        %v1941 = vmax.f32 %v1407, 0.0
        %v1942 = vmax.f32 %v1412, 0.0
        %v1943 = vmax.f32 %v1417, 0.0
        %v1944 = vmax.f32 %v1422, 0.0
        %v1945 = vmax.f32 %v1427, 0.0
        %v1946 = vmax.f32 %v1432, 0.0
        %v1947 = vmax.f32 %v1437, 0.0
        %v1948 = vmax.f32 %v1442, 0.0
        %v1949 = vmax.f32 %v1447, 0.0
        %v1950 = vmax.f32 %v1452, 0.0
        %v1951 = vmax.f32 %v1457, 0.0
        %v1952 = vmax.f32 %v1462, 0.0
        %v1953 = vmax.f32 %v1467, 0.0
        %v1954 = vmax.f32 %v1472, 0.0
        %v1955 = vmax.f32 %v1477, 0.0
        %v1956 = vmax.f32 %v1482, 0.0
        %v1957 = vmax.f32 %v1487, 0.0
        %v1958 = vmax.f32 %v1492, 0.0
        %v1959 = vmax.f32 %v1497, 0.0
        %v1960 = vmax.f32 %v1502, 0.0
        %v1961 = vmax.f32 %v1507, 0.0
        %v1962 = vmax.f32 %v1512, 0.0
        %v1963 = vmax.f32 %v1517, 0.0
        %v1964 = vmax.f32 %v1522, 0.0
        %v1965 = vmax.f32 %v1527, 0.0
        %v1966 = vmax.f32 %v1532, 0.0
        %v1967 = vmax.f32 %v1537, 0.0
        %v1968 = vmax.f32 %v1542, 0.0
        %v1969 = vmax.f32 %v1547, 0.0
        %v1970 = vmax.f32 %v1552, 0.0
        %v1971 = vmax.f32 %v1557, 0.0
        %v1972 = vmax.f32 %v1562, 0.0
        %v1973 = vmax.f32 %v1567, 0.0
        %v1974 = vmax.f32 %v1572, 0.0
        %v1975 = vmax.f32 %v1577, 0.0
        %v1976 = vmax.f32 %v1582, 0.0
        %v1977 = vmax.f32 %v1587, 0.0
        %v1978 = vmax.f32 %v1592, 0.0
        %v1979 = vmax.f32 %v1597, 0.0
        %v1980 = vmax.f32 %v1602, 0.0
        %v1981 = vmax.f32 %v1607, 0.0
        %v1982 = vmax.f32 %v1612, 0.0
        %v1983 = vmax.f32 %v1617, 0.0
        %v1984 = vmax.f32 %v1622, 0.0
        %v1985 = vmax.f32 %v1627, 0.0
        %v1986 = vmax.f32 %v1632, 0.0
        %v1987 = vmax.f32 %v1637, 0.0
        %v1988 = vmax.f32 %v1642, 0.0
        %v1989 = vmax.f32 %v1647, 0.0
        %v1990 = vmax.f32 %v1652, 0.0
        %v1991 = vmax.f32 %v1657, 0.0
        %v1992 = vmax.f32 %v1662, 0.0
        %v1993 = vmax.f32 %v1667, 0.0
        %v1994 = vmax.f32 %v1672, 0.0
        %v1995 = vmax.f32 %v1677, 0.0
        %v1996 = vmax.f32 %v1682, 0.0
        %v1997 = vmax.f32 %v1687, 0.0
        %v1998 = vmax.f32 %v1692, 0.0
        %v1999 = vmax.f32 %v1697, 0.0
        %v2000 = vmax.f32 %v1702, 0.0
        %v2001 = vmax.f32 %v1707, 0.0
        %v2002 = vmax.f32 %v1712, 0.0
        %v2003 = vmax.f32 %v1717, 0.0
        %v2004 = vmax.f32 %v1722, 0.0
        %v2005 = vmax.f32 %v1727, 0.0
        %v2006 = vmax.f32 %v1732, 0.0
        %v2007 = vmax.f32 %v1737, 0.0
        %v2008 = vmax.f32 %v1742, 0.0
        %v2009 = vmax.f32 %v1747, 0.0
        %v2010 = vmax.f32 %v1752, 0.0
        %v2011 = vmax.f32 %v1757, 0.0
        %v2012 = vmax.f32 %v1762, 0.0
        %v2013 = vmax.f32 %v1767, 0.0
        %v2014 = vmax.f32 %v1772, 0.0
        %v2015 = vmax.f32 %v1777, 0.0
        %v2016 = vmax.f32 %v1782, 0.0
        %v2017 = vmax.f32 %v1787, 0.0
        %v2018 = vmax.f32 %v1792, 0.0
        %v2019 = vmax.f32 %v1797, 0.0
        %v2020 = vmax.f32 %v1802, 0.0
        %v2021 = vmax.f32 %v1807, 0.0
        %v2022 = vmax.f32 %v1812, 0.0
        %v2023 = vmax.f32 %v1817, 0.0
        %v2024 = vmax.f32 %v1822, 0.0
        %v2025 = vmax.f32 %v1827, 0.0
        %v2026 = vmax.f32 %v1832, 0.0
        %v2027 = vmax.f32 %v1837, 0.0
        %v2028 = vmax.f32 %v1842, 0.0
        %v2029 = vmax.f32 %v1847, 0.0
        %v2030 = vmax.f32 %v1852, 0.0
        %v2031 = vmax.f32 %v1857, 0.0
        %v2032 = vmax.f32 %v1862, 0.0
        %v2033 = vmax.f32 %v1867, 0.0
        %v2034 = vmax.f32 %v1872, 0.0
        %v2035 = vmax.f32 %v1877, 0.0
        %v2036 = vmax.f32 %v1882, 0.0
        %v2037 = vmax.f32 %v1887, 0.0
        %v2038 = vmax.f32 %v1892, 0.0
        %v2039 = vmax.f32 %v1897, 0.0
        %v2040 = vmax.f32 %v1902, 0.0
        %v2041 = vmax.f32 %v1907, 0.0
        %v2042 = vmax.f32 %v1912, 0.0
        %v2043 = vld [vmem:[%s5] sm:$0xff]
        %v2044 = vld [vmem:[%s6] sm:$0xff]
        %v2045 = vld [vmem:[%s673] sm:$0xff]
        %v2047 = vlaneseq
        %v2048 = vshrl.u32 %v2047, 7
        %v2049 = vsub.s32 0, %v2048
        %v2050 = vrot.slane %v2043, %v2049
        %v2051 = vlaneseq
        %v2052 = vshrl.u32 %v2051, 7
        %v2053 = vsub.s32 1, %v2052
        %v2054 = vrot.slane %v2043, %v2053
        %v2055 = vlaneseq
        %v2056 = vshrl.u32 %v2055, 7
        %v2057 = vsub.s32 2, %v2056
        %v2058 = vrot.slane %v2043, %v2057
        %v2059 = vlaneseq
        %v2060 = vshrl.u32 %v2059, 7
        %v2061 = vsub.s32 3, %v2060
        %v2062 = vrot.slane %v2043, %v2061
        %v2063 = vlaneseq
        %v2064 = vshrl.u32 %v2063, 7
        %v2065 = vsub.s32 4, %v2064
        %v2066 = vrot.slane %v2043, %v2065
        %v2067 = vlaneseq
        %v2068 = vshrl.u32 %v2067, 7
        %v2069 = vsub.s32 5, %v2068
        %v2070 = vrot.slane %v2043, %v2069
        %v2071 = vlaneseq
        %v2072 = vshrl.u32 %v2071, 7
        %v2073 = vsub.s32 6, %v2072
        %v2074 = vrot.slane %v2043, %v2073
        %v2075 = vlaneseq
        %v2076 = vshrl.u32 %v2075, 7
        %v2077 = vsub.s32 7, %v2076
        %v2078 = vrot.slane %v2043, %v2077
        %2088 = vset.pattern.permute.xlu0 0
        %2089 = vperm.xlu0 %2088, %v2045
        %v2090 = vpop.permute.xlu0 %2089
        %vm2092 = vcmp.ge.f32.partialorder %v2050, %v2090
        %vm2093 = vcmp.ge.f32.partialorder %v2054, %v2090
        %vm2094 = vcmp.ge.f32.partialorder %v2058, %v2090
        %vm2095 = vcmp.ge.f32.partialorder %v2062, %v2090
        %vm2096 = vcmp.ge.f32.partialorder %v2066, %v2090
        %vm2097 = vcmp.ge.f32.partialorder %v2070, %v2090
        %vm2098 = vcmp.ge.f32.partialorder %v2074, %v2090
        %vm2099 = vcmp.ge.f32.partialorder %v2078, %v2090
        %v2100 = vld [vmem:[%s681] sm:$0xff]
        %2102 = vset.pattern.permute.xlu0 0
        %2103 = vperm.xlu0 %2102, %v2100
        %v2104 = vpop.permute.xlu0 %2103
        %vm2106 = vcmp.le.f32.partialorder %v2050, %v2104
        %vm2107 = vcmp.le.f32.partialorder %v2054, %v2104
        %vm2108 = vcmp.le.f32.partialorder %v2058, %v2104
        %vm2109 = vcmp.le.f32.partialorder %v2062, %v2104
        %vm2110 = vcmp.le.f32.partialorder %v2066, %v2104
        %vm2111 = vcmp.le.f32.partialorder %v2070, %v2104
        %vm2112 = vcmp.le.f32.partialorder %v2074, %v2104
        %vm2113 = vcmp.le.f32.partialorder %v2078, %v2104
        %vm2114 = vmand %vm2092, %vm2106
        %vm2115 = vmand %vm2093, %vm2107
        %vm2116 = vmand %vm2094, %vm2108
        %vm2117 = vmand %vm2095, %vm2109
        %vm2118 = vmand %vm2096, %vm2110
        %vm2119 = vmand %vm2097, %vm2111
        %vm2120 = vmand %vm2098, %vm2112
        %vm2121 = vmand %vm2099, %vm2113
        %v2122 = vld [vmem:[%s669] sm:$0xff]
        %v2124 = vlaneseq
        %v2125 = vshrl.u32 %v2124, 7
        %v2126 = vsub.s32 0, %v2125
        %v2127 = vrot.slane %v2044, %v2126
        %v2128 = vlaneseq
        %v2129 = vshrl.u32 %v2128, 7
        %v2130 = vsub.s32 1, %v2129
        %v2131 = vrot.slane %v2044, %v2130
        %v2132 = vlaneseq
        %v2133 = vshrl.u32 %v2132, 7
        %v2134 = vsub.s32 2, %v2133
        %v2135 = vrot.slane %v2044, %v2134
        %v2136 = vlaneseq
        %v2137 = vshrl.u32 %v2136, 7
        %v2138 = vsub.s32 3, %v2137
        %v2139 = vrot.slane %v2044, %v2138
        %v2140 = vlaneseq
        %v2141 = vshrl.u32 %v2140, 7
        %v2142 = vsub.s32 4, %v2141
        %v2143 = vrot.slane %v2044, %v2142
        %v2144 = vlaneseq
        %v2145 = vshrl.u32 %v2144, 7
        %v2146 = vsub.s32 5, %v2145
        %v2147 = vrot.slane %v2044, %v2146
        %v2148 = vlaneseq
        %v2149 = vshrl.u32 %v2148, 7
        %v2150 = vsub.s32 6, %v2149
        %v2151 = vrot.slane %v2044, %v2150
        %v2152 = vlaneseq
        %v2153 = vshrl.u32 %v2152, 7
        %v2154 = vsub.s32 7, %v2153
        %v2155 = vrot.slane %v2044, %v2154
        %2165 = vset.pattern.permute.xlu0 0
        %2166 = vperm.xlu0 %2165, %v2122
        %v2167 = vpop.permute.xlu0 %2166
        %vm2169 = vcmp.ge.f32.partialorder %v2127, %v2167
        %vm2170 = vcmp.ge.f32.partialorder %v2131, %v2167
        %vm2171 = vcmp.ge.f32.partialorder %v2135, %v2167
        %vm2172 = vcmp.ge.f32.partialorder %v2139, %v2167
        %vm2173 = vcmp.ge.f32.partialorder %v2143, %v2167
        %vm2174 = vcmp.ge.f32.partialorder %v2147, %v2167
        %vm2175 = vcmp.ge.f32.partialorder %v2151, %v2167
        %vm2176 = vcmp.ge.f32.partialorder %v2155, %v2167
        %vm2177 = vmand %vm2114, %vm2169
        %vm2178 = vmand %vm2115, %vm2170
        %vm2179 = vmand %vm2116, %vm2171
        %vm2180 = vmand %vm2117, %vm2172
        %vm2181 = vmand %vm2118, %vm2173
        %vm2182 = vmand %vm2119, %vm2174
        %vm2183 = vmand %vm2120, %vm2175
        %vm2184 = vmand %vm2121, %vm2176
        %v2185 = vld [vmem:[%s677] sm:$0xff]
        %2187 = vset.pattern.permute.xlu0 0
        %2188 = vperm.xlu0 %2187, %v2185
        %v2189 = vpop.permute.xlu0 %2188
        %vm2191 = vcmp.le.f32.partialorder %v2127, %v2189
        %vm2192 = vcmp.le.f32.partialorder %v2131, %v2189
        %vm2193 = vcmp.le.f32.partialorder %v2135, %v2189
        %vm2194 = vcmp.le.f32.partialorder %v2139, %v2189
        %vm2195 = vcmp.le.f32.partialorder %v2143, %v2189
        %vm2196 = vcmp.le.f32.partialorder %v2147, %v2189
        %vm2197 = vcmp.le.f32.partialorder %v2151, %v2189
        %vm2198 = vcmp.le.f32.partialorder %v2155, %v2189
        %vm2199 = vmand %vm2177, %vm2191
        %vm2200 = vmand %vm2178, %vm2192
        %vm2201 = vmand %vm2179, %vm2193
        %vm2202 = vmand %vm2180, %vm2194
        %vm2203 = vmand %vm2181, %vm2195
        %vm2204 = vmand %vm2182, %vm2196
        %vm2205 = vmand %vm2183, %vm2197
        %vm2206 = vmand %vm2184, %vm2198
        %v2207 = vsel %vm2199, 1, 0
        %v2208 = vsel %vm2200, 1, 0
        %v2209 = vsel %vm2201, 1, 0
        %v2210 = vsel %vm2202, 1, 0
        %v2211 = vsel %vm2203, 1, 0
        %v2212 = vsel %vm2204, 1, 0
        %v2213 = vsel %vm2205, 1, 0
        %v2214 = vsel %vm2206, 1, 0
        %v2215 = vcvt.s32.f32 %v2207
        %v2216 = vcvt.s32.f32 %v2208
        %v2217 = vcvt.s32.f32 %v2209
        %v2218 = vcvt.s32.f32 %v2210
        %v2219 = vcvt.s32.f32 %v2211
        %v2220 = vcvt.s32.f32 %v2212
        %v2221 = vcvt.s32.f32 %v2213
        %v2222 = vcvt.s32.f32 %v2214
        %2223 = vmatprep.subr.mxu0 0.0
        %2224 = vmatpush1.msra.mxu0 %v1915
        %2225 = vmatprep.subr.mxu0 0.0
        %2226 = vmatpush1.msra.mxu0 %v1916
        %2227 = vmatprep.subr.mxu0 0.0
        %2228 = vmatpush1.msra.mxu0 %v1917
        %2229 = vmatprep.subr.mxu0 0.0
        %2230 = vmatpush1.msra.mxu0 %v1918
        %2231 = vmatprep.subr.mxu0 0.0
        %2232 = vmatpush1.msra.mxu0 %v1919
        %2233 = vmatprep.subr.mxu0 0.0
        %2234 = vmatpush1.msra.mxu0 %v1920
        %2235 = vmatprep.subr.mxu0 0.0
        %2236 = vmatpush1.msra.mxu0 %v1921
        %2237 = vmatprep.subr.mxu0 0.0
        %2238 = vmatpush1.msra.mxu0 %v1922
        %2239 = vmatprep.subr.mxu0 0.0
        %2240 = vmatpush1.msra.mxu0 %v1923
        %2241 = vmatprep.subr.mxu0 0.0
        %2242 = vmatpush1.msra.mxu0 %v1924
        %2243 = vmatprep.subr.mxu0 0.0
        %2244 = vmatpush1.msra.mxu0 %v1925
        %2245 = vmatprep.subr.mxu0 0.0
        %2246 = vmatpush1.msra.mxu0 %v1926
        %2247 = vmatprep.subr.mxu0 0.0
        %2248 = vmatpush1.msra.mxu0 %v1927
        %2249 = vmatprep.subr.mxu0 0.0
        %2250 = vmatpush1.msra.mxu0 %v1928
        %2251 = vmatprep.subr.mxu0 0.0
        %2252 = vmatpush1.msra.mxu0 %v1929
        %2253 = vmatprep.subr.mxu0 0.0
        %2254 = vmatpush1.msra.mxu0 %v1930
        %2255 = vmatprep.subr.mxu0 0.0
        %2256 = vmatpush1.msra.mxu0 %v1931
        %2257 = vmatprep.subr.mxu0 0.0
        %2258 = vmatpush1.msra.mxu0 %v1932
        %2259 = vmatprep.subr.mxu0 0.0
        %2260 = vmatpush1.msra.mxu0 %v1933
        %2261 = vmatprep.subr.mxu0 0.0
        %2262 = vmatpush1.msra.mxu0 %v1934
        %2263 = vmatprep.subr.mxu0 0.0
        %2264 = vmatpush1.msra.mxu0 %v1935
        %2265 = vmatprep.subr.mxu0 0.0
        %2266 = vmatpush1.msra.mxu0 %v1936
        %2267 = vmatprep.subr.mxu0 0.0
        %2268 = vmatpush1.msra.mxu0 %v1937
        %2269 = vmatprep.subr.mxu0 0.0
        %2270 = vmatpush1.msra.mxu0 %v1938
        %2271 = vmatprep.subr.mxu0 0.0
        %2272 = vmatpush1.msra.mxu0 %v1939
        %2273 = vmatprep.subr.mxu0 0.0
        %2274 = vmatpush1.msra.mxu0 %v1940
        %2275 = vmatprep.subr.mxu0 0.0
        %2276 = vmatpush1.msra.mxu0 %v1941
        %2277 = vmatprep.subr.mxu0 0.0
        %2278 = vmatpush1.msra.mxu0 %v1942
        %2279 = vmatprep.subr.mxu0 0.0
        %2280 = vmatpush1.msra.mxu0 %v1943
        %2281 = vmatprep.subr.mxu0 0.0
        %2282 = vmatpush1.msra.mxu0 %v1944
        %2283 = vmatprep.subr.mxu0 0.0
        %2284 = vmatpush1.msra.mxu0 %v1945
        %2285 = vmatprep.subr.mxu0 0.0
        %2286 = vmatpush1.msra.mxu0 %v1946
        %2287 = vmatprep.mubr.f32.mxu0 %v2216
        %2288 = vmatmul.mubr.f32.gmra.mrb[0].mxu0 %v2215
        %v2289 = vpop.f32.mrb[0].mxu0
        %v2290 = vadd.f32 0.0, %v2289
        %v2291 = vpop.f32.mrb[0].mxu0
        %2292 = vdwg.mxu0
        %2293 = vmatprep.subr.mxu0 0.0
        %2294 = vmatpush1.msra.mxu0 %v1947
        %2295 = vmatprep.subr.mxu0 0.0
        %2296 = vmatpush1.msra.mxu0 %v1948
        %2297 = vmatprep.subr.mxu0 0.0
        %2298 = vmatpush1.msra.mxu0 %v1949
        %2299 = vmatprep.subr.mxu0 0.0
        %2300 = vmatpush1.msra.mxu0 %v1950
        %2301 = vmatprep.subr.mxu0 0.0
        %2302 = vmatpush1.msra.mxu0 %v1951
        %2303 = vmatprep.subr.mxu0 0.0
        %2304 = vmatpush1.msra.mxu0 %v1952
        %2305 = vmatprep.subr.mxu0 0.0
        %2306 = vmatpush1.msra.mxu0 %v1953
        %2307 = vmatprep.subr.mxu0 0.0
        %2308 = vmatpush1.msra.mxu0 %v1954
        %2309 = vmatprep.subr.mxu0 0.0
        %2310 = vmatpush1.msra.mxu0 %v1955
        %2311 = vmatprep.subr.mxu0 0.0
        %2312 = vmatpush1.msra.mxu0 %v1956
        %2313 = vmatprep.subr.mxu0 0.0
        %2314 = vmatpush1.msra.mxu0 %v1957
        %2315 = vmatprep.subr.mxu0 0.0
        %2316 = vmatpush1.msra.mxu0 %v1958
        %2317 = vmatprep.subr.mxu0 0.0
        %2318 = vmatpush1.msra.mxu0 %v1959
        %2319 = vmatprep.subr.mxu0 0.0
        %2320 = vmatpush1.msra.mxu0 %v1960
        %2321 = vmatprep.subr.mxu0 0.0
        %2322 = vmatpush1.msra.mxu0 %v1961
        %2323 = vmatprep.subr.mxu0 0.0
        %2324 = vmatpush1.msra.mxu0 %v1962
        %2325 = vmatprep.subr.mxu0 0.0
        %2326 = vmatpush1.msra.mxu0 %v1963
        %2327 = vmatprep.subr.mxu0 0.0
        %2328 = vmatpush1.msra.mxu0 %v1964
        %2329 = vmatprep.subr.mxu0 0.0
        %2330 = vmatpush1.msra.mxu0 %v1965
        %2331 = vmatprep.subr.mxu0 0.0
        %2332 = vmatpush1.msra.mxu0 %v1966
        %2333 = vmatprep.subr.mxu0 0.0
        %2334 = vmatpush1.msra.mxu0 %v1967
        %2335 = vmatprep.subr.mxu0 0.0
        %2336 = vmatpush1.msra.mxu0 %v1968
        %2337 = vmatprep.subr.mxu0 0.0
        %2338 = vmatpush1.msra.mxu0 %v1969
        %2339 = vmatprep.subr.mxu0 0.0
        %2340 = vmatpush1.msra.mxu0 %v1970
        %2341 = vmatprep.subr.mxu0 0.0
        %2342 = vmatpush1.msra.mxu0 %v1971
        %2343 = vmatprep.subr.mxu0 0.0
        %2344 = vmatpush1.msra.mxu0 %v1972
        %2345 = vmatprep.subr.mxu0 0.0
        %2346 = vmatpush1.msra.mxu0 %v1973
        %2347 = vmatprep.subr.mxu0 0.0
        %2348 = vmatpush1.msra.mxu0 %v1974
        %2349 = vmatprep.subr.mxu0 0.0
        %2350 = vmatpush1.msra.mxu0 %v1975
        %2351 = vmatprep.subr.mxu0 0.0
        %2352 = vmatpush1.msra.mxu0 %v1976
        %2353 = vmatprep.subr.mxu0 0.0
        %2354 = vmatpush1.msra.mxu0 %v1977
        %2355 = vmatprep.subr.mxu0 0.0
        %2356 = vmatpush1.msra.mxu0 %v1978
        %2357 = vmatprep.mubr.f32.mxu0 %v2218
        %2358 = vmatmul.mubr.f32.gmra.mrb[0].mxu0 %v2217
        %v2359 = vpop.f32.mrb[0].mxu0
        %v2360 = vadd.f32 %v2290, %v2359
        %v2361 = vpop.f32.mrb[0].mxu0
        %2362 = vdwg.mxu0
        %2363 = vmatprep.subr.mxu0 0.0
        %2364 = vmatpush1.msra.mxu0 %v1979
        %2365 = vmatprep.subr.mxu0 0.0
        %2366 = vmatpush1.msra.mxu0 %v1980
        %2367 = vmatprep.subr.mxu0 0.0
        %2368 = vmatpush1.msra.mxu0 %v1981
        %2369 = vmatprep.subr.mxu0 0.0
        %2370 = vmatpush1.msra.mxu0 %v1982
        %2371 = vmatprep.subr.mxu0 0.0
        %2372 = vmatpush1.msra.mxu0 %v1983
        %2373 = vmatprep.subr.mxu0 0.0
        %2374 = vmatpush1.msra.mxu0 %v1984
        %2375 = vmatprep.subr.mxu0 0.0
        %2376 = vmatpush1.msra.mxu0 %v1985
        %2377 = vmatprep.subr.mxu0 0.0
        %2378 = vmatpush1.msra.mxu0 %v1986
        %2379 = vmatprep.subr.mxu0 0.0
        %2380 = vmatpush1.msra.mxu0 %v1987
        %2381 = vmatprep.subr.mxu0 0.0
        %2382 = vmatpush1.msra.mxu0 %v1988
        %2383 = vmatprep.subr.mxu0 0.0
        %2384 = vmatpush1.msra.mxu0 %v1989
        %2385 = vmatprep.subr.mxu0 0.0
        %2386 = vmatpush1.msra.mxu0 %v1990
        %2387 = vmatprep.subr.mxu0 0.0
        %2388 = vmatpush1.msra.mxu0 %v1991
        %2389 = vmatprep.subr.mxu0 0.0
        %2390 = vmatpush1.msra.mxu0 %v1992
        %2391 = vmatprep.subr.mxu0 0.0
        %2392 = vmatpush1.msra.mxu0 %v1993
        %2393 = vmatprep.subr.mxu0 0.0
        %2394 = vmatpush1.msra.mxu0 %v1994
        %2395 = vmatprep.subr.mxu0 0.0
        %2396 = vmatpush1.msra.mxu0 %v1995
        %2397 = vmatprep.subr.mxu0 0.0
        %2398 = vmatpush1.msra.mxu0 %v1996
        %2399 = vmatprep.subr.mxu0 0.0
        %2400 = vmatpush1.msra.mxu0 %v1997
        %2401 = vmatprep.subr.mxu0 0.0
        %2402 = vmatpush1.msra.mxu0 %v1998
        %2403 = vmatprep.subr.mxu0 0.0
        %2404 = vmatpush1.msra.mxu0 %v1999
        %2405 = vmatprep.subr.mxu0 0.0
        %2406 = vmatpush1.msra.mxu0 %v2000
        %2407 = vmatprep.subr.mxu0 0.0
        %2408 = vmatpush1.msra.mxu0 %v2001
        %2409 = vmatprep.subr.mxu0 0.0
        %2410 = vmatpush1.msra.mxu0 %v2002
        %2411 = vmatprep.subr.mxu0 0.0
        %2412 = vmatpush1.msra.mxu0 %v2003
        %2413 = vmatprep.subr.mxu0 0.0
        %2414 = vmatpush1.msra.mxu0 %v2004
        %2415 = vmatprep.subr.mxu0 0.0
        %2416 = vmatpush1.msra.mxu0 %v2005
        %2417 = vmatprep.subr.mxu0 0.0
        %2418 = vmatpush1.msra.mxu0 %v2006
        %2419 = vmatprep.subr.mxu0 0.0
        %2420 = vmatpush1.msra.mxu0 %v2007
        %2421 = vmatprep.subr.mxu0 0.0
        %2422 = vmatpush1.msra.mxu0 %v2008
        %2423 = vmatprep.subr.mxu0 0.0
        %2424 = vmatpush1.msra.mxu0 %v2009
        %2425 = vmatprep.subr.mxu0 0.0
        %2426 = vmatpush1.msra.mxu0 %v2010
        %2427 = vmatprep.mubr.f32.mxu0 %v2220
        %2428 = vmatmul.mubr.f32.gmra.mrb[0].mxu0 %v2219
        %v2429 = vpop.f32.mrb[0].mxu0
        %v2430 = vadd.f32 %v2360, %v2429
        %v2431 = vpop.f32.mrb[0].mxu0
        %2432 = vdwg.mxu0
        %2433 = vmatprep.subr.mxu0 0.0
        %2434 = vmatpush1.msra.mxu0 %v2011
        %2435 = vmatprep.subr.mxu0 0.0
        %2436 = vmatpush1.msra.mxu0 %v2012
        %2437 = vmatprep.subr.mxu0 0.0
        %2438 = vmatpush1.msra.mxu0 %v2013
        %2439 = vmatprep.subr.mxu0 0.0
        %2440 = vmatpush1.msra.mxu0 %v2014
        %2441 = vmatprep.subr.mxu0 0.0
        %2442 = vmatpush1.msra.mxu0 %v2015
        %2443 = vmatprep.subr.mxu0 0.0
        %2444 = vmatpush1.msra.mxu0 %v2016
        %2445 = vmatprep.subr.mxu0 0.0
        %2446 = vmatpush1.msra.mxu0 %v2017
        %2447 = vmatprep.subr.mxu0 0.0
        %2448 = vmatpush1.msra.mxu0 %v2018
        %2449 = vmatprep.subr.mxu0 0.0
        %2450 = vmatpush1.msra.mxu0 %v2019
        %2451 = vmatprep.subr.mxu0 0.0
        %2452 = vmatpush1.msra.mxu0 %v2020
        %2453 = vmatprep.subr.mxu0 0.0
        %2454 = vmatpush1.msra.mxu0 %v2021
        %2455 = vmatprep.subr.mxu0 0.0
        %2456 = vmatpush1.msra.mxu0 %v2022
        %2457 = vmatprep.subr.mxu0 0.0
        %2458 = vmatpush1.msra.mxu0 %v2023
        %2459 = vmatprep.subr.mxu0 0.0
        %2460 = vmatpush1.msra.mxu0 %v2024
        %2461 = vmatprep.subr.mxu0 0.0
        %2462 = vmatpush1.msra.mxu0 %v2025
        %2463 = vmatprep.subr.mxu0 0.0
        %2464 = vmatpush1.msra.mxu0 %v2026
        %2465 = vmatprep.subr.mxu0 0.0
        %2466 = vmatpush1.msra.mxu0 %v2027
        %2467 = vmatprep.subr.mxu0 0.0
        %2468 = vmatpush1.msra.mxu0 %v2028
        %2469 = vmatprep.subr.mxu0 0.0
        %2470 = vmatpush1.msra.mxu0 %v2029
        %2471 = vmatprep.subr.mxu0 0.0
        %2472 = vmatpush1.msra.mxu0 %v2030
        %2473 = vmatprep.subr.mxu0 0.0
        %2474 = vmatpush1.msra.mxu0 %v2031
        %2475 = vmatprep.subr.mxu0 0.0
        %2476 = vmatpush1.msra.mxu0 %v2032
        %2477 = vmatprep.subr.mxu0 0.0
        %2478 = vmatpush1.msra.mxu0 %v2033
        %2479 = vmatprep.subr.mxu0 0.0
        %2480 = vmatpush1.msra.mxu0 %v2034
        %2481 = vmatprep.subr.mxu0 0.0
        %2482 = vmatpush1.msra.mxu0 %v2035
        %2483 = vmatprep.subr.mxu0 0.0
        %2484 = vmatpush1.msra.mxu0 %v2036
        %2485 = vmatprep.subr.mxu0 0.0
        %2486 = vmatpush1.msra.mxu0 %v2037
        %2487 = vmatprep.subr.mxu0 0.0
        %2488 = vmatpush1.msra.mxu0 %v2038
        %2489 = vmatprep.subr.mxu0 0.0
        %2490 = vmatpush1.msra.mxu0 %v2039
        %2491 = vmatprep.subr.mxu0 0.0
        %2492 = vmatpush1.msra.mxu0 %v2040
        %2493 = vmatprep.subr.mxu0 0.0
        %2494 = vmatpush1.msra.mxu0 %v2041
        %2495 = vmatprep.subr.mxu0 0.0
        %2496 = vmatpush1.msra.mxu0 %v2042
        %2497 = vmatprep.mubr.f32.mxu0 %v2222
        %2498 = vmatmul.mubr.f32.gmra.mrb[0].mxu0 %v2221
        %v2499 = vpop.f32.mrb[0].mxu0
        %v2500 = vadd.f32 %v2430, %v2499
        %v2501 = vpop.f32.mrb[0].mxu0
        %2502 = vdwg.mxu0
        %v2503 = vadd.f32 %v2215, %v2216
        %v2504 = vadd.f32 %v2503, %v2217
        %v2505 = vadd.f32 %v2504, %v2218
        %v2506 = vadd.f32 %v2505, %v2219
        %v2507 = vadd.f32 %v2506, %v2220
        %v2508 = vadd.f32 %v2507, %v2221
        %v2509 = vadd.f32 %v2508, %v2222
        %2510 = vadd.xlane.f32.xlu0 %v2509
        %v2511 = vpop.xlane.xlu0 %2510
        %v2512 = vmax.f32 %v2511, 1.0
        %v2513 = vrcp.pop %v2512
        %v2514 = vmul.f32 %v2500, %v2513
        %v2515 = vld [vmem:[%s10] sm:$0xff]
        %v2516 = vld [vmem:[%s10 + $0x8] sm:$0xff]
        %v2517 = vld [vmem:[%s11] sm:$0x1]
        %v2519 = vlaneseq
        %v2520 = vshrl.u32 %v2519, 7
        %v2521 = vsub.s32 0, %v2520
        %v2522 = vrot.slane %v2517, %v2521
        %vm2524 = vcmask 130048
        %v2526 = vsel %vm2524, %v2514, 0
        %2528 = vmatprep.subr.mxu0 0.0
        %2529 = vmatpush1.msra.mxu0 %v2515
        %2530 = vmatprep.subr.mxu0 0.0
        %2531 = vmatpush1.msra.mxu0 %v2516
        %2532 = vmatprep.subr.mxu0 0.0
        %2533 = vmatpush1.msra.mxu0 0.0
        %2534 = vmatprep.subr.mxu0 0.0
        %2535 = vmatpush1.msra.mxu0 0.0
        %2536 = vmatprep.subr.mxu0 0.0
        %2537 = vmatpush1.msra.mxu0 0.0
        %2538 = vmatprep.subr.mxu0 0.0
        %2539 = vmatpush1.msra.mxu0 0.0
        %2540 = vmatprep.subr.mxu0 0.0
        %2541 = vmatpush1.msra.mxu0 0.0
        %2542 = vmatprep.subr.mxu0 0.0
        %2543 = vmatpush1.msra.mxu0 0.0
        %2544 = vmatprep.subr.mxu0 0.0
        %2545 = vmatpush1.msra.mxu0 0.0
        %2546 = vmatprep.subr.mxu0 0.0
        %2547 = vmatpush1.msra.mxu0 0.0
        %2548 = vmatprep.subr.mxu0 0.0
        %2549 = vmatpush1.msra.mxu0 0.0
        %2550 = vmatprep.subr.mxu0 0.0
        %2551 = vmatpush1.msra.mxu0 0.0
        %2552 = vmatprep.subr.mxu0 0.0
        %2553 = vmatpush1.msra.mxu0 0.0
        %2554 = vmatprep.subr.mxu0 0.0
        %2555 = vmatpush1.msra.mxu0 0.0
        %2556 = vmatprep.subr.mxu0 0.0
        %2557 = vmatpush1.msra.mxu0 0.0
        %2558 = vmatprep.subr.mxu0 0.0
        %2559 = vmatpush1.msra.mxu0 0.0
        %2560 = vmatprep.subr.mxu0 0.0
        %2561 = vmatpush1.msra.mxu0 0.0
        %2562 = vmatprep.subr.mxu0 0.0
        %2563 = vmatpush1.msra.mxu0 0.0
        %2564 = vmatprep.subr.mxu0 0.0
        %2565 = vmatpush1.msra.mxu0 0.0
        %2566 = vmatprep.subr.mxu0 0.0
        %2567 = vmatpush1.msra.mxu0 0.0
        %2568 = vmatprep.subr.mxu0 0.0
        %2569 = vmatpush1.msra.mxu0 0.0
        %2570 = vmatprep.subr.mxu0 0.0
        %2571 = vmatpush1.msra.mxu0 0.0
        %2572 = vmatprep.subr.mxu0 0.0
        %2573 = vmatpush1.msra.mxu0 0.0
        %2574 = vmatprep.subr.mxu0 0.0
        %2575 = vmatpush1.msra.mxu0 0.0
        %2576 = vmatprep.subr.mxu0 0.0
        %2577 = vmatpush1.msra.mxu0 0.0
        %2578 = vmatprep.subr.mxu0 0.0
        %2579 = vmatpush1.msra.mxu0 0.0
        %2580 = vmatprep.subr.mxu0 0.0
        %2581 = vmatpush1.msra.mxu0 0.0
        %2582 = vmatprep.subr.mxu0 0.0
        %2583 = vmatpush1.msra.mxu0 0.0
        %2584 = vmatprep.subr.mxu0 0.0
        %2585 = vmatpush1.msra.mxu0 0.0
        %2586 = vmatprep.subr.mxu0 0.0
        %2587 = vmatpush1.msra.mxu0 0.0
        %2588 = vmatprep.subr.mxu0 0.0
        %2589 = vmatpush1.msra.mxu0 0.0
        %2590 = vmatprep.subr.mxu0 0.0
        %2591 = vmatpush1.msra.mxu0 0.0
        %2592 = vmatprep.mubr.f32.mxu0 0.0
        %2593 = vmatmul.mubr.f32.gmra.mrb[0].mxu0 %v2526
        %v2594 = vpop.f32.mrb[0].mxu0
        %v2595 = vadd.f32 %v2522, %v2594
        %v2596 = vpop.f32.mrb[0].mxu0
        %2597 = vdwg.mxu0
        %v2598 = vmax.f32 %v2595, 0.0
        %v2599 = vld [vmem:[%s685] sm:$0xff]
        %v2600 = vld [vmem:[%s12] sm:$0xff]
        %v2601 = vld [vmem:[%s12 + $0x8] sm:$0xff]
        %v2602 = vld [vmem:[%s12 + $0x10] sm:$0xff]
        %v2603 = vld [vmem:[%s12 + $0x18] sm:$0xff]
        %v2604 = vld [vmem:[%s12 + $0x20] sm:$0xff]
        %v2605 = vld [vmem:[%s12 + $0x28] sm:$0xff]
        %v2606 = vld [vmem:[%s12 + $0x30] sm:$0xff]
        %v2607 = vld [vmem:[%s12 + $0x38] sm:$0xff]
        %v2608 = vld [vmem:[%s12 + $0x40] sm:$0xff]
        %v2609 = vld [vmem:[%s12 + $0x48] sm:$0xff]
        %v2610 = vld [vmem:[%s12 + $0x50] sm:$0xff]
        %v2611 = vld [vmem:[%s12 + $0x58] sm:$0xff]
        %v2612 = vld [vmem:[%s12 + $0x60] sm:$0xff]
        %v2613 = vld [vmem:[%s12 + $0x68] sm:$0xff]
        %v2614 = vld [vmem:[%s12 + $0x70] sm:$0xff]
        %v2615 = vld [vmem:[%s12 + $0x78] sm:$0xff]
        %v2616 = vld [vmem:[%s12 + $0x80] sm:$0xff]
        %v2617 = vld [vmem:[%s12 + $0x88] sm:$0xff]
        %v2618 = vld [vmem:[%s12 + $0x90] sm:$0xff]
        %v2619 = vld [vmem:[%s12 + $0x98] sm:$0xff]
        %v2620 = vld [vmem:[%s12 + $0xa0] sm:$0xff]
        %v2621 = vld [vmem:[%s12 + $0xa8] sm:$0xff]
        %v2622 = vld [vmem:[%s12 + $0xb0] sm:$0xff]
        %v2623 = vld [vmem:[%s12 + $0xb8] sm:$0xff]
        %v2624 = vld [vmem:[%s12 + $0xc0] sm:$0xff]
        %v2625 = vld [vmem:[%s12 + $0xc8] sm:$0xff]
        %v2626 = vld [vmem:[%s12 + $0xd0] sm:$0xff]
        %v2627 = vld [vmem:[%s12 + $0xd8] sm:$0xff]
        %v2628 = vld [vmem:[%s12 + $0xe0] sm:$0xff]
        %v2629 = vld [vmem:[%s12 + $0xe8] sm:$0xff]
        %v2630 = vld [vmem:[%s12 + $0xf0] sm:$0xff]
        %v2631 = vld [vmem:[%s12 + $0xf8] sm:$0xff]
        %v2632 = vld [vmem:[%s12 + $0x100] sm:$0xff]
        %v2633 = vld [vmem:[%s12 + $0x108] sm:$0xff]
        %v2634 = vld [vmem:[%s12 + $0x110] sm:$0xff]
        %v2635 = vld [vmem:[%s12 + $0x118] sm:$0xff]
        %v2636 = vld [vmem:[%s12 + $0x120] sm:$0xff]
        %v2637 = vld [vmem:[%s12 + $0x128] sm:$0xff]
        %v2638 = vld [vmem:[%s12 + $0x130] sm:$0xff]
        %v2639 = vld [vmem:[%s12 + $0x138] sm:$0xff]
        %v2640 = vld [vmem:[%s12 + $0x140] sm:$0xff]
        %v2641 = vld [vmem:[%s12 + $0x148] sm:$0xff]
        %v2642 = vld [vmem:[%s12 + $0x150] sm:$0xff]
        %v2643 = vld [vmem:[%s12 + $0x158] sm:$0xff]
        %v2644 = vld [vmem:[%s12 + $0x160] sm:$0xff]
        %v2645 = vld [vmem:[%s12 + $0x168] sm:$0xff]
        %v2646 = vld [vmem:[%s12 + $0x170] sm:$0xff]
        %v2647 = vld [vmem:[%s12 + $0x178] sm:$0xff]
        %v2648 = vld [vmem:[%s13] sm:$0xff]
        %v2649 = vld [vmem:[%s13 + $0x8] sm:$0xff]
        %v2650 = vld [vmem:[%s13 + $0x10] sm:$0xff]
        %v2651 = vld [vmem:[%s13 + $0x18] sm:$0xff]
        %v2652 = vld [vmem:[%s13 + $0x20] sm:$0xff]
        %v2653 = vld [vmem:[%s13 + $0x28] sm:$0xff]
        %v2654 = vld [vmem:[%s13 + $0x30] sm:$0xff]
        %v2655 = vld [vmem:[%s13 + $0x38] sm:$0xff]
        %v2656 = vld [vmem:[%s13 + $0x40] sm:$0xff]
        %v2657 = vld [vmem:[%s13 + $0x48] sm:$0xff]
        %v2658 = vld [vmem:[%s13 + $0x50] sm:$0xff]
        %v2659 = vld [vmem:[%s13 + $0x58] sm:$0xff]
        %v2660 = vld [vmem:[%s13 + $0x60] sm:$0xff]
        %v2661 = vld [vmem:[%s13 + $0x68] sm:$0xff]
        %v2662 = vld [vmem:[%s13 + $0x70] sm:$0xff]
        %v2663 = vld [vmem:[%s13 + $0x78] sm:$0xff]
        %v2664 = vld [vmem:[%s13 + $0x80] sm:$0xff]
        %v2665 = vld [vmem:[%s13 + $0x88] sm:$0xff]
        %v2666 = vld [vmem:[%s13 + $0x90] sm:$0xff]
        %v2667 = vld [vmem:[%s13 + $0x98] sm:$0xff]
        %v2668 = vld [vmem:[%s13 + $0xa0] sm:$0xff]
        %v2669 = vld [vmem:[%s13 + $0xa8] sm:$0xff]
        %v2670 = vld [vmem:[%s13 + $0xb0] sm:$0xff]
        %v2671 = vld [vmem:[%s13 + $0xb8] sm:$0xff]
        %v2672 = vld [vmem:[%s13 + $0xc0] sm:$0xff]
        %v2673 = vld [vmem:[%s13 + $0xc8] sm:$0xff]
        %v2674 = vld [vmem:[%s13 + $0xd0] sm:$0xff]
        %v2675 = vld [vmem:[%s13 + $0xd8] sm:$0xff]
        %v2676 = vld [vmem:[%s13 + $0xe0] sm:$0xff]
        %v2677 = vld [vmem:[%s13 + $0xe8] sm:$0xff]
        %v2678 = vld [vmem:[%s13 + $0xf0] sm:$0xff]
        %v2679 = vld [vmem:[%s13 + $0xf8] sm:$0xff]
        %v2680 = vld [vmem:[%s13 + $0x100] sm:$0xff]
        %v2681 = vld [vmem:[%s13 + $0x108] sm:$0xff]
        %v2682 = vld [vmem:[%s13 + $0x110] sm:$0xff]
        %v2683 = vld [vmem:[%s13 + $0x118] sm:$0xff]
        %v2684 = vld [vmem:[%s13 + $0x120] sm:$0xff]
        %v2685 = vld [vmem:[%s13 + $0x128] sm:$0xff]
        %v2686 = vld [vmem:[%s13 + $0x130] sm:$0xff]
        %v2687 = vld [vmem:[%s13 + $0x138] sm:$0xff]
        %v2688 = vld [vmem:[%s13 + $0x140] sm:$0xff]
        %v2689 = vld [vmem:[%s13 + $0x148] sm:$0xff]
        %v2690 = vld [vmem:[%s13 + $0x150] sm:$0xff]
        %v2691 = vld [vmem:[%s13 + $0x158] sm:$0xff]
        %v2692 = vld [vmem:[%s13 + $0x160] sm:$0xff]
        %v2693 = vld [vmem:[%s13 + $0x168] sm:$0xff]
        %v2694 = vld [vmem:[%s13 + $0x170] sm:$0xff]
        %v2695 = vld [vmem:[%s13 + $0x178] sm:$0xff]
        %v2696 = vld [vmem:[%s14] sm:$0xff]
        %v2697 = vld [vmem:[%s14 + $0x8] sm:$0xff]
        %v2698 = vld [vmem:[%s14 + $0x10] sm:$0xff]
        %v2699 = vld [vmem:[%s14 + $0x18] sm:$0xff]
        %v2700 = vld [vmem:[%s14 + $0x20] sm:$0xff]
        %v2701 = vld [vmem:[%s14 + $0x28] sm:$0xff]
        %v2702 = vld [vmem:[%s14 + $0x30] sm:$0xff]
        %v2703 = vld [vmem:[%s14 + $0x38] sm:$0xff]
        %v2704 = vld [vmem:[%s14 + $0x40] sm:$0xff]
        %v2705 = vld [vmem:[%s14 + $0x48] sm:$0xff]
        %v2706 = vld [vmem:[%s14 + $0x50] sm:$0xff]
        %v2707 = vld [vmem:[%s14 + $0x58] sm:$0xff]
        %v2708 = vld [vmem:[%s14 + $0x60] sm:$0xff]
        %v2709 = vld [vmem:[%s14 + $0x68] sm:$0xff]
        %v2710 = vld [vmem:[%s14 + $0x70] sm:$0xff]
        %v2711 = vld [vmem:[%s14 + $0x78] sm:$0xff]
        %v2712 = vld [vmem:[%s15] sm:$0x3]
        %v2714 = vlaneseq
        %v2715 = vshrl.u32 %v2714, 7
        %v2716 = vsub.s32 0, %v2715
        %v2717 = vrot.slane %v2712, %v2716
        %v2718 = vlaneseq
        %v2719 = vshrl.u32 %v2718, 7
        %v2720 = vsub.s32 1, %v2719
        %v2721 = vrot.slane %v2712, %v2720
        %v2724 = vld [vmem:[%s16] sm:$0x1]
        %v2726 = vlaneseq
        %v2727 = vshrl.u32 %v2726, 7
        %v2728 = vsub.s32 0, %v2727
        %v2729 = vrot.slane %v2724, %v2728
        %2731 = vmatprep.subr.mxu0 %v2601
        %2732 = vmatpush1.msra.mxu0 %v2600
        %2733 = vmatprep.subr.mxu0 %v2604
        %2734 = vmatpush1.msra.mxu0 %v2603
        %2735 = vmatprep.subr.mxu0 %v2607
        %2736 = vmatpush1.msra.mxu0 %v2606
        %2737 = vmatprep.subr.mxu0 %v2610
        %2738 = vmatpush1.msra.mxu0 %v2609
        %2739 = vmatprep.subr.mxu0 %v2613
        %2740 = vmatpush1.msra.mxu0 %v2612
        %2741 = vmatprep.subr.mxu0 %v2616
        %2742 = vmatpush1.msra.mxu0 %v2615
        %2743 = vmatprep.subr.mxu0 %v2619
        %2744 = vmatpush1.msra.mxu0 %v2618
        %2745 = vmatprep.subr.mxu0 %v2622
        %2746 = vmatpush1.msra.mxu0 %v2621
        %2747 = vmatprep.subr.mxu0 %v2625
        %2748 = vmatpush1.msra.mxu0 %v2624
        %2749 = vmatprep.subr.mxu0 %v2628
        %2750 = vmatpush1.msra.mxu0 %v2627
        %2751 = vmatprep.subr.mxu0 %v2631
        %2752 = vmatpush1.msra.mxu0 %v2630
        %2753 = vmatprep.subr.mxu0 %v2634
        %2754 = vmatpush1.msra.mxu0 %v2633
        %2755 = vmatprep.subr.mxu0 %v2637
        %2756 = vmatpush1.msra.mxu0 %v2636
        %2757 = vmatprep.subr.mxu0 %v2640
        %2758 = vmatpush1.msra.mxu0 %v2639
        %2759 = vmatprep.subr.mxu0 %v2643
        %2760 = vmatpush1.msra.mxu0 %v2642
        %2761 = vmatprep.subr.mxu0 %v2646
        %2762 = vmatpush1.msra.mxu0 %v2645
        %2763 = vmatprep.subr.mxu0 0.0
        %2764 = vmatpush1.msra.mxu0 0.0
        %2765 = vmatprep.subr.mxu0 0.0
        %2766 = vmatpush1.msra.mxu0 0.0
        %2767 = vmatprep.subr.mxu0 0.0
        %2768 = vmatpush1.msra.mxu0 0.0
        %2769 = vmatprep.subr.mxu0 0.0
        %2770 = vmatpush1.msra.mxu0 0.0
        %2771 = vmatprep.subr.mxu0 0.0
        %2772 = vmatpush1.msra.mxu0 0.0
        %2773 = vmatprep.subr.mxu0 0.0
        %2774 = vmatpush1.msra.mxu0 0.0
        %2775 = vmatprep.subr.mxu0 0.0
        %2776 = vmatpush1.msra.mxu0 0.0
        %2777 = vmatprep.subr.mxu0 0.0
        %2778 = vmatpush1.msra.mxu0 0.0
        %2779 = vmatprep.subr.mxu0 0.0
        %2780 = vmatpush1.msra.mxu0 0.0
        %2781 = vmatprep.subr.mxu0 0.0
        %2782 = vmatpush1.msra.mxu0 0.0
        %2783 = vmatprep.subr.mxu0 0.0
        %2784 = vmatpush1.msra.mxu0 0.0
        %2785 = vmatprep.subr.mxu0 0.0
        %2786 = vmatpush1.msra.mxu0 0.0
        %2787 = vmatprep.subr.mxu0 0.0
        %2788 = vmatpush1.msra.mxu0 0.0
        %2789 = vmatprep.subr.mxu0 0.0
        %2790 = vmatpush1.msra.mxu0 0.0
        %2791 = vmatprep.subr.mxu0 0.0
        %2792 = vmatpush1.msra.mxu0 0.0
        %2793 = vmatprep.subr.mxu0 0.0
        %2794 = vmatpush1.msra.mxu0 0.0
        %2795 = vmatprep.mubr.f32.mxu0 0.0
        %2796 = vmatmul.mubr.f32.gmra.mrb[0].mxu0 %v2598
        %v2797 = vpop.f32.mrb[0].mxu0
        %v2798 = vadd.f32 0.0, %v2797
        %v2799 = vpop.f32.mrb[0].mxu0
        %v2800 = vadd.f32 0.0, %v2799
        %2801 = vdwg.mxu0
        %2802 = vmatprep.subr.mxu0 0.0
        %2803 = vmatpush1.msra.mxu0 %v2602
        %2804 = vmatprep.subr.mxu0 0.0
        %2805 = vmatpush1.msra.mxu0 %v2605
        %2806 = vmatprep.subr.mxu0 0.0
        %2807 = vmatpush1.msra.mxu0 %v2608
        %2808 = vmatprep.subr.mxu0 0.0
        %2809 = vmatpush1.msra.mxu0 %v2611
        %2810 = vmatprep.subr.mxu0 0.0
        %2811 = vmatpush1.msra.mxu0 %v2614
        %2812 = vmatprep.subr.mxu0 0.0
        %2813 = vmatpush1.msra.mxu0 %v2617
        %2814 = vmatprep.subr.mxu0 0.0
        %2815 = vmatpush1.msra.mxu0 %v2620
        %2816 = vmatprep.subr.mxu0 0.0
        %2817 = vmatpush1.msra.mxu0 %v2623
        %2818 = vmatprep.subr.mxu0 0.0
        %2819 = vmatpush1.msra.mxu0 %v2626
        %2820 = vmatprep.subr.mxu0 0.0
        %2821 = vmatpush1.msra.mxu0 %v2629
        %2822 = vmatprep.subr.mxu0 0.0
        %2823 = vmatpush1.msra.mxu0 %v2632
        %2824 = vmatprep.subr.mxu0 0.0
        %2825 = vmatpush1.msra.mxu0 %v2635
        %2826 = vmatprep.subr.mxu0 0.0
        %2827 = vmatpush1.msra.mxu0 %v2638
        %2828 = vmatprep.subr.mxu0 0.0
        %2829 = vmatpush1.msra.mxu0 %v2641
        %2830 = vmatprep.subr.mxu0 0.0
        %2831 = vmatpush1.msra.mxu0 %v2644
        %2832 = vmatprep.subr.mxu0 0.0
        %2833 = vmatpush1.msra.mxu0 %v2647
        %2834 = vmatprep.subr.mxu0 0.0
        %2835 = vmatpush1.msra.mxu0 0.0
        %2836 = vmatprep.subr.mxu0 0.0
        %2837 = vmatpush1.msra.mxu0 0.0
        %2838 = vmatprep.subr.mxu0 0.0
        %2839 = vmatpush1.msra.mxu0 0.0
        %2840 = vmatprep.subr.mxu0 0.0
        %2841 = vmatpush1.msra.mxu0 0.0
        %2842 = vmatprep.subr.mxu0 0.0
        %2843 = vmatpush1.msra.mxu0 0.0
        %2844 = vmatprep.subr.mxu0 0.0
        %2845 = vmatpush1.msra.mxu0 0.0
        %2846 = vmatprep.subr.mxu0 0.0
        %2847 = vmatpush1.msra.mxu0 0.0
        %2848 = vmatprep.subr.mxu0 0.0
        %2849 = vmatpush1.msra.mxu0 0.0
        %2850 = vmatprep.subr.mxu0 0.0
        %2851 = vmatpush1.msra.mxu0 0.0
        %2852 = vmatprep.subr.mxu0 0.0
        %2853 = vmatpush1.msra.mxu0 0.0
        %2854 = vmatprep.subr.mxu0 0.0
        %2855 = vmatpush1.msra.mxu0 0.0
        %2856 = vmatprep.subr.mxu0 0.0
        %2857 = vmatpush1.msra.mxu0 0.0
        %2858 = vmatprep.subr.mxu0 0.0
        %2859 = vmatpush1.msra.mxu0 0.0
        %2860 = vmatprep.subr.mxu0 0.0
        %2861 = vmatpush1.msra.mxu0 0.0
        %2862 = vmatprep.subr.mxu0 0.0
        %2863 = vmatpush1.msra.mxu0 0.0
        %2864 = vmatprep.subr.mxu0 0.0
        %2865 = vmatpush1.msra.mxu0 0.0
        %2866 = vmatprep.mubr.f32.mxu0 0.0
        %2867 = vmatmul.mubr.f32.gmra.mrb[0].mxu0 %v2598
        %v2868 = vpop.f32.mrb[0].mxu0
        %v2869 = vadd.f32 0.0, %v2868
        %v2870 = vpop.f32.mrb[0].mxu0
        %2871 = vdwg.mxu0
        %vm2872 = vcmask 64512
        %v2874 = vsel %vm2872, %v2599, 0
        %2876 = vmatprep.subr.mxu0 0.0
        %2877 = vmatpush1.msra.mxu0 %v2798
        %2878 = vmatprep.subr.mxu0 0.0
        %2879 = vmatpush1.msra.mxu0 0.0
        %2880 = vmatprep.subr.mxu0 0.0
        %2881 = vmatpush1.msra.mxu0 0.0
        %2882 = vmatprep.subr.mxu0 0.0
        %2883 = vmatpush1.msra.mxu0 0.0
        %2884 = vmatprep.subr.mxu0 0.0
        %2885 = vmatpush1.msra.mxu0 0.0
        %2886 = vmatprep.subr.mxu0 0.0
        %2887 = vmatpush1.msra.mxu0 0.0
        %2888 = vmatprep.subr.mxu0 0.0
        %2889 = vmatpush1.msra.mxu0 0.0
        %2890 = vmatprep.subr.mxu0 0.0
        %2891 = vmatpush1.msra.mxu0 0.0
        %2892 = vmatprep.subr.mxu0 0.0
        %2893 = vmatpush1.msra.mxu0 0.0
        %2894 = vmatprep.subr.mxu0 0.0
        %2895 = vmatpush1.msra.mxu0 0.0
        %2896 = vmatprep.subr.mxu0 0.0
        %2897 = vmatpush1.msra.mxu0 0.0
        %2898 = vmatprep.subr.mxu0 0.0
        %2899 = vmatpush1.msra.mxu0 0.0
        %2900 = vmatprep.subr.mxu0 0.0
        %2901 = vmatpush1.msra.mxu0 0.0
        %2902 = vmatprep.subr.mxu0 0.0
        %2903 = vmatpush1.msra.mxu0 0.0
        %2904 = vmatprep.subr.mxu0 0.0
        %2905 = vmatpush1.msra.mxu0 0.0
        %2906 = vmatprep.subr.mxu0 0.0
        %2907 = vmatpush1.msra.mxu0 0.0
        %2908 = vmatprep.subr.mxu0 0.0
        %2909 = vmatpush1.msra.mxu0 0.0
        %2910 = vmatprep.subr.mxu0 0.0
        %2911 = vmatpush1.msra.mxu0 0.0
        %2912 = vmatprep.subr.mxu0 0.0
        %2913 = vmatpush1.msra.mxu0 0.0
        %2914 = vmatprep.subr.mxu0 0.0
        %2915 = vmatpush1.msra.mxu0 0.0
        %2916 = vmatprep.subr.mxu0 0.0
        %2917 = vmatpush1.msra.mxu0 0.0
        %2918 = vmatprep.subr.mxu0 0.0
        %2919 = vmatpush1.msra.mxu0 0.0
        %2920 = vmatprep.subr.mxu0 0.0
        %2921 = vmatpush1.msra.mxu0 0.0
        %2922 = vmatprep.subr.mxu0 0.0
        %2923 = vmatpush1.msra.mxu0 0.0
        %2924 = vmatprep.subr.mxu0 0.0
        %2925 = vmatpush1.msra.mxu0 0.0
        %2926 = vmatprep.subr.mxu0 0.0
        %2927 = vmatpush1.msra.mxu0 0.0
        %2928 = vmatprep.subr.mxu0 0.0
        %2929 = vmatpush1.msra.mxu0 0.0
        %2930 = vmatprep.subr.mxu0 0.0
        %2931 = vmatpush1.msra.mxu0 0.0
        %2932 = vmatprep.subr.mxu0 0.0
        %2933 = vmatpush1.msra.mxu0 0.0
        %2934 = vmatprep.subr.mxu0 0.0
        %2935 = vmatpush1.msra.mxu0 0.0
        %2936 = vmatprep.subr.mxu0 0.0
        %2937 = vmatpush1.msra.mxu0 0.0
        %2938 = vmatprep.subr.mxu0 0.0
        %2939 = vmatpush1.msra.mxu0 0.0
        %2940 = vmatprep.mubr.f32.mxu0 0.0
        %2941 = vmatmul.mubr.f32.gmra.mrb[0].mxu0 %v2874
        %v2942 = vpop.f32.mrb[0].mxu0
        %v2943 = vadd.f32 0.0, %v2942
        %v2944 = vpop.f32.mrb[0].mxu0
        %2945 = vdwg.mxu0
        %2946 = vmatprep.subr.mxu0 %v2649
        %2947 = vmatpush1.msra.mxu0 %v2648
        %2948 = vmatprep.subr.mxu0 %v2652
        %2949 = vmatpush1.msra.mxu0 %v2651
        %2950 = vmatprep.subr.mxu0 %v2655
        %2951 = vmatpush1.msra.mxu0 %v2654
        %2952 = vmatprep.subr.mxu0 %v2658
        %2953 = vmatpush1.msra.mxu0 %v2657
        %2954 = vmatprep.subr.mxu0 %v2661
        %2955 = vmatpush1.msra.mxu0 %v2660
        %2956 = vmatprep.subr.mxu0 %v2664
        %2957 = vmatpush1.msra.mxu0 %v2663
        %2958 = vmatprep.subr.mxu0 %v2667
        %2959 = vmatpush1.msra.mxu0 %v2666
        %2960 = vmatprep.subr.mxu0 %v2670
        %2961 = vmatpush1.msra.mxu0 %v2669
        %2962 = vmatprep.subr.mxu0 %v2673
        %2963 = vmatpush1.msra.mxu0 %v2672
        %2964 = vmatprep.subr.mxu0 %v2676
        %2965 = vmatpush1.msra.mxu0 %v2675
        %2966 = vmatprep.subr.mxu0 %v2679
        %2967 = vmatpush1.msra.mxu0 %v2678
        %2968 = vmatprep.subr.mxu0 %v2682
        %2969 = vmatpush1.msra.mxu0 %v2681
        %2970 = vmatprep.subr.mxu0 %v2685
        %2971 = vmatpush1.msra.mxu0 %v2684
        %2972 = vmatprep.subr.mxu0 %v2688
        %2973 = vmatpush1.msra.mxu0 %v2687
        %2974 = vmatprep.subr.mxu0 %v2691
        %2975 = vmatpush1.msra.mxu0 %v2690
        %2976 = vmatprep.subr.mxu0 %v2694
        %2977 = vmatpush1.msra.mxu0 %v2693
        %2978 = vmatprep.subr.mxu0 0.0
        %2979 = vmatpush1.msra.mxu0 0.0
        %2980 = vmatprep.subr.mxu0 0.0
        %2981 = vmatpush1.msra.mxu0 0.0
        %2982 = vmatprep.subr.mxu0 0.0
        %2983 = vmatpush1.msra.mxu0 0.0
        %2984 = vmatprep.subr.mxu0 0.0
        %2985 = vmatpush1.msra.mxu0 0.0
        %2986 = vmatprep.subr.mxu0 0.0
        %2987 = vmatpush1.msra.mxu0 0.0
        %2988 = vmatprep.subr.mxu0 0.0
        %2989 = vmatpush1.msra.mxu0 0.0
        %2990 = vmatprep.subr.mxu0 0.0
        %2991 = vmatpush1.msra.mxu0 0.0
        %2992 = vmatprep.subr.mxu0 0.0
        %2993 = vmatpush1.msra.mxu0 0.0
        %2994 = vmatprep.subr.mxu0 0.0
        %2995 = vmatpush1.msra.mxu0 0.0
        %2996 = vmatprep.subr.mxu0 0.0
        %2997 = vmatpush1.msra.mxu0 0.0
        %2998 = vmatprep.subr.mxu0 0.0
        %2999 = vmatpush1.msra.mxu0 0.0
        %3000 = vmatprep.subr.mxu0 0.0
        %3001 = vmatpush1.msra.mxu0 0.0
        %3002 = vmatprep.subr.mxu0 0.0
        %3003 = vmatpush1.msra.mxu0 0.0
        %3004 = vmatprep.subr.mxu0 0.0
        %3005 = vmatpush1.msra.mxu0 0.0
        %3006 = vmatprep.subr.mxu0 0.0
        %3007 = vmatpush1.msra.mxu0 0.0
        %3008 = vmatprep.subr.mxu0 0.0
        %3009 = vmatpush1.msra.mxu0 0.0
        %3010 = vmatprep.mubr.f32.mxu0 0.0
        %3011 = vmatmul.mubr.f32.gmra.mrb[0].mxu0 %v2943
        %v3012 = vpop.f32.mrb[0].mxu0
        %v3013 = vadd.f32 0.0, %v3012
        %v3014 = vpop.f32.mrb[0].mxu0
        %v3015 = vadd.f32 0.0, %v3014
        %3016 = vdwg.mxu0
        %3017 = vmatprep.subr.mxu0 0.0
        %3018 = vmatpush1.msra.mxu0 %v2650
        %3019 = vmatprep.subr.mxu0 0.0
        %3020 = vmatpush1.msra.mxu0 %v2653
        %3021 = vmatprep.subr.mxu0 0.0
        %3022 = vmatpush1.msra.mxu0 %v2656
        %3023 = vmatprep.subr.mxu0 0.0
        %3024 = vmatpush1.msra.mxu0 %v2659
        %3025 = vmatprep.subr.mxu0 0.0
        %3026 = vmatpush1.msra.mxu0 %v2662
        %3027 = vmatprep.subr.mxu0 0.0
        %3028 = vmatpush1.msra.mxu0 %v2665
        %3029 = vmatprep.subr.mxu0 0.0
        %3030 = vmatpush1.msra.mxu0 %v2668
        %3031 = vmatprep.subr.mxu0 0.0
        %3032 = vmatpush1.msra.mxu0 %v2671
        %3033 = vmatprep.subr.mxu0 0.0
        %3034 = vmatpush1.msra.mxu0 %v2674
        %3035 = vmatprep.subr.mxu0 0.0
        %3036 = vmatpush1.msra.mxu0 %v2677
        %3037 = vmatprep.subr.mxu0 0.0
        %3038 = vmatpush1.msra.mxu0 %v2680
        %3039 = vmatprep.subr.mxu0 0.0
        %3040 = vmatpush1.msra.mxu0 %v2683
        %3041 = vmatprep.subr.mxu0 0.0
        %3042 = vmatpush1.msra.mxu0 %v2686
        %3043 = vmatprep.subr.mxu0 0.0
        %3044 = vmatpush1.msra.mxu0 %v2689
        %3045 = vmatprep.subr.mxu0 0.0
        %3046 = vmatpush1.msra.mxu0 %v2692
        %3047 = vmatprep.subr.mxu0 0.0
        %3048 = vmatpush1.msra.mxu0 %v2695
        %3049 = vmatprep.subr.mxu0 0.0
        %3050 = vmatpush1.msra.mxu0 0.0
        %3051 = vmatprep.subr.mxu0 0.0
        %3052 = vmatpush1.msra.mxu0 0.0
        %3053 = vmatprep.subr.mxu0 0.0
        %3054 = vmatpush1.msra.mxu0 0.0
        %3055 = vmatprep.subr.mxu0 0.0
        %3056 = vmatpush1.msra.mxu0 0.0
        %3057 = vmatprep.subr.mxu0 0.0
        %3058 = vmatpush1.msra.mxu0 0.0
        %3059 = vmatprep.subr.mxu0 0.0
        %3060 = vmatpush1.msra.mxu0 0.0
        %3061 = vmatprep.subr.mxu0 0.0
        %3062 = vmatpush1.msra.mxu0 0.0
        %3063 = vmatprep.subr.mxu0 0.0
        %3064 = vmatpush1.msra.mxu0 0.0
        %3065 = vmatprep.subr.mxu0 0.0
        %3066 = vmatpush1.msra.mxu0 0.0
        %3067 = vmatprep.subr.mxu0 0.0
        %3068 = vmatpush1.msra.mxu0 0.0
        %3069 = vmatprep.subr.mxu0 0.0
        %3070 = vmatpush1.msra.mxu0 0.0
        %3071 = vmatprep.subr.mxu0 0.0
        %3072 = vmatpush1.msra.mxu0 0.0
        %3073 = vmatprep.subr.mxu0 0.0
        %3074 = vmatpush1.msra.mxu0 0.0
        %3075 = vmatprep.subr.mxu0 0.0
        %3076 = vmatpush1.msra.mxu0 0.0
        %3077 = vmatprep.subr.mxu0 0.0
        %3078 = vmatpush1.msra.mxu0 0.0
        %3079 = vmatprep.subr.mxu0 0.0
        %3080 = vmatpush1.msra.mxu0 0.0
        %3081 = vmatprep.mubr.f32.mxu0 0.0
        %3082 = vmatmul.mubr.f32.gmra.mrb[0].mxu0 %v2943
        %v3083 = vpop.f32.mrb[0].mxu0
        %v3084 = vadd.f32 0.0, %v3083
        %v3085 = vpop.f32.mrb[0].mxu0
        %3086 = vdwg.mxu0
        %v3087 = vadd.f32 %v3013, %v2800
        %v3088 = vadd.f32 %v3015, %v2869
        %v3089 = vadd.f32 %v3087, %v2717
        %v3090 = vadd.f32 %v3088, %v2721
        %v3091 = vxor.u32 %v3089, 2147483648
        %v3092 = vmul.f32 %v3091, 1.442695
        %v3093 = vpow.pop %v3092
        %v3094 = vadd.f32 %v3093, 1.0
        %v3095 = vrcp.pop %v3094
        %v3096 = vmul.f32 1.0, %v3095
        %v3097 = vxor.u32 %v3090, 2147483648
        %v3098 = vmul.f32 %v3097, 1.442695
        %v3099 = vpow.pop %v3098
        %v3100 = vadd.f32 %v3099, 1.0
        %v3101 = vrcp.pop %v3100
        %v3102 = vmul.f32 1.0, %v3101
        %v3103 = vmul.f32 %v3102, %v2598
        %3104 = vmatprep.subr.mxu0 0.0
        %3105 = vmatpush1.msra.mxu0 %v2696
        %3106 = vmatprep.subr.mxu0 0.0
        %3107 = vmatpush1.msra.mxu0 %v2697
        %3108 = vmatprep.subr.mxu0 0.0
        %3109 = vmatpush1.msra.mxu0 %v2698
        %3110 = vmatprep.subr.mxu0 0.0
        %3111 = vmatpush1.msra.mxu0 %v2699
        %3112 = vmatprep.subr.mxu0 0.0
        %3113 = vmatpush1.msra.mxu0 %v2700
        %3114 = vmatprep.subr.mxu0 0.0
        %3115 = vmatpush1.msra.mxu0 %v2701
        %3116 = vmatprep.subr.mxu0 0.0
        %3117 = vmatpush1.msra.mxu0 %v2702
        %3118 = vmatprep.subr.mxu0 0.0
        %3119 = vmatpush1.msra.mxu0 %v2703
        %3120 = vmatprep.subr.mxu0 0.0
        %3121 = vmatpush1.msra.mxu0 %v2704
        %3122 = vmatprep.subr.mxu0 0.0
        %3123 = vmatpush1.msra.mxu0 %v2705
        %3124 = vmatprep.subr.mxu0 0.0
        %3125 = vmatpush1.msra.mxu0 %v2706
        %3126 = vmatprep.subr.mxu0 0.0
        %3127 = vmatpush1.msra.mxu0 %v2707
        %3128 = vmatprep.subr.mxu0 0.0
        %3129 = vmatpush1.msra.mxu0 %v2708
        %3130 = vmatprep.subr.mxu0 0.0
        %3131 = vmatpush1.msra.mxu0 %v2709
        %3132 = vmatprep.subr.mxu0 0.0
        %3133 = vmatpush1.msra.mxu0 %v2710
        %3134 = vmatprep.subr.mxu0 0.0
        %3135 = vmatpush1.msra.mxu0 %v2711
        %3136 = vmatprep.subr.mxu0 0.0
        %3137 = vmatpush1.msra.mxu0 0.0
        %3138 = vmatprep.subr.mxu0 0.0
        %3139 = vmatpush1.msra.mxu0 0.0
        %3140 = vmatprep.subr.mxu0 0.0
        %3141 = vmatpush1.msra.mxu0 0.0
        %3142 = vmatprep.subr.mxu0 0.0
        %3143 = vmatpush1.msra.mxu0 0.0
        %3144 = vmatprep.subr.mxu0 0.0
        %3145 = vmatpush1.msra.mxu0 0.0
        %3146 = vmatprep.subr.mxu0 0.0
        %3147 = vmatpush1.msra.mxu0 0.0
        %3148 = vmatprep.subr.mxu0 0.0
        %3149 = vmatpush1.msra.mxu0 0.0
        %3150 = vmatprep.subr.mxu0 0.0
        %3151 = vmatpush1.msra.mxu0 0.0
        %3152 = vmatprep.subr.mxu0 0.0
        %3153 = vmatpush1.msra.mxu0 0.0
        %3154 = vmatprep.subr.mxu0 0.0
        %3155 = vmatpush1.msra.mxu0 0.0
        %3156 = vmatprep.subr.mxu0 0.0
        %3157 = vmatpush1.msra.mxu0 0.0
        %3158 = vmatprep.subr.mxu0 0.0
        %3159 = vmatpush1.msra.mxu0 0.0
        %3160 = vmatprep.subr.mxu0 0.0
        %3161 = vmatpush1.msra.mxu0 0.0
        %3162 = vmatprep.subr.mxu0 0.0
        %3163 = vmatpush1.msra.mxu0 0.0
        %3164 = vmatprep.subr.mxu0 0.0
        %3165 = vmatpush1.msra.mxu0 0.0
        %3166 = vmatprep.subr.mxu0 0.0
        %3167 = vmatpush1.msra.mxu0 0.0
        %3168 = vmatprep.mubr.f32.mxu0 0.0
        %3169 = vmatmul.mubr.f32.gmra.mrb[0].mxu0 %v3103
        %v3170 = vpop.f32.mrb[0].mxu0
        %v3171 = vadd.f32 0.0, %v3170
        %v3172 = vpop.f32.mrb[0].mxu0
        %3173 = vdwg.mxu0
        %v3174 = vadd.f32 %v3084, %v3171
        %v3175 = vadd.f32 %v3174, %v2729
        %v3176 = vtanh.pop %v3175
        %v3177 = vsub.f32 1.0, %v3096
        %v3178 = vmul.f32 %v3177, %v2598
        %v3179 = vmul.f32 %v3096, %v3176
        %v3180 = vadd.f32 %v3178, %v3179
        %3181 = vmatprep.subr.mxu0 %v2601
        %3182 = vmatpush1.msra.mxu0 %v2600
        %3183 = vmatprep.subr.mxu0 %v2604
        %3184 = vmatpush1.msra.mxu0 %v2603
        %3185 = vmatprep.subr.mxu0 %v2607
        %3186 = vmatpush1.msra.mxu0 %v2606
        %3187 = vmatprep.subr.mxu0 %v2610
        %3188 = vmatpush1.msra.mxu0 %v2609
        %3189 = vmatprep.subr.mxu0 %v2613
        %3190 = vmatpush1.msra.mxu0 %v2612
        %3191 = vmatprep.subr.mxu0 %v2616
        %3192 = vmatpush1.msra.mxu0 %v2615
        %3193 = vmatprep.subr.mxu0 %v2619
        %3194 = vmatpush1.msra.mxu0 %v2618
        %3195 = vmatprep.subr.mxu0 %v2622
        %3196 = vmatpush1.msra.mxu0 %v2621
        %3197 = vmatprep.subr.mxu0 %v2625
        %3198 = vmatpush1.msra.mxu0 %v2624
        %3199 = vmatprep.subr.mxu0 %v2628
        %3200 = vmatpush1.msra.mxu0 %v2627
        %3201 = vmatprep.subr.mxu0 %v2631
        %3202 = vmatpush1.msra.mxu0 %v2630
        %3203 = vmatprep.subr.mxu0 %v2634
        %3204 = vmatpush1.msra.mxu0 %v2633
        %3205 = vmatprep.subr.mxu0 %v2637
        %3206 = vmatpush1.msra.mxu0 %v2636
        %3207 = vmatprep.subr.mxu0 %v2640
        %3208 = vmatpush1.msra.mxu0 %v2639
        %3209 = vmatprep.subr.mxu0 %v2643
        %3210 = vmatpush1.msra.mxu0 %v2642
        %3211 = vmatprep.subr.mxu0 %v2646
        %3212 = vmatpush1.msra.mxu0 %v2645
        %3213 = vmatprep.subr.mxu0 0.0
        %3214 = vmatpush1.msra.mxu0 0.0
        %3215 = vmatprep.subr.mxu0 0.0
        %3216 = vmatpush1.msra.mxu0 0.0
        %3217 = vmatprep.subr.mxu0 0.0
        %3218 = vmatpush1.msra.mxu0 0.0
        %3219 = vmatprep.subr.mxu0 0.0
        %3220 = vmatpush1.msra.mxu0 0.0
        %3221 = vmatprep.subr.mxu0 0.0
        %3222 = vmatpush1.msra.mxu0 0.0
        %3223 = vmatprep.subr.mxu0 0.0
        %3224 = vmatpush1.msra.mxu0 0.0
        %3225 = vmatprep.subr.mxu0 0.0
        %3226 = vmatpush1.msra.mxu0 0.0
        %3227 = vmatprep.subr.mxu0 0.0
        %3228 = vmatpush1.msra.mxu0 0.0
        %3229 = vmatprep.subr.mxu0 0.0
        %3230 = vmatpush1.msra.mxu0 0.0
        %3231 = vmatprep.subr.mxu0 0.0
        %3232 = vmatpush1.msra.mxu0 0.0
        %3233 = vmatprep.subr.mxu0 0.0
        %3234 = vmatpush1.msra.mxu0 0.0
        %3235 = vmatprep.subr.mxu0 0.0
        %3236 = vmatpush1.msra.mxu0 0.0
        %3237 = vmatprep.subr.mxu0 0.0
        %3238 = vmatpush1.msra.mxu0 0.0
        %3239 = vmatprep.subr.mxu0 0.0
        %3240 = vmatpush1.msra.mxu0 0.0
        %3241 = vmatprep.subr.mxu0 0.0
        %3242 = vmatpush1.msra.mxu0 0.0
        %3243 = vmatprep.subr.mxu0 0.0
        %3244 = vmatpush1.msra.mxu0 0.0
        %3245 = vmatprep.mubr.f32.mxu0 0.0
        %3246 = vmatmul.mubr.f32.gmra.mrb[0].mxu0 %v3180
        %v3247 = vpop.f32.mrb[0].mxu0
        %v3248 = vadd.f32 0.0, %v3247
        %v3249 = vpop.f32.mrb[0].mxu0
        %v3250 = vadd.f32 0.0, %v3249
        %3251 = vdwg.mxu0
        %3252 = vmatprep.subr.mxu0 0.0
        %3253 = vmatpush1.msra.mxu0 %v2602
        %3254 = vmatprep.subr.mxu0 0.0
        %3255 = vmatpush1.msra.mxu0 %v2605
        %3256 = vmatprep.subr.mxu0 0.0
        %3257 = vmatpush1.msra.mxu0 %v2608
        %3258 = vmatprep.subr.mxu0 0.0
        %3259 = vmatpush1.msra.mxu0 %v2611
        %3260 = vmatprep.subr.mxu0 0.0
        %3261 = vmatpush1.msra.mxu0 %v2614
        %3262 = vmatprep.subr.mxu0 0.0
        %3263 = vmatpush1.msra.mxu0 %v2617
        %3264 = vmatprep.subr.mxu0 0.0
        %3265 = vmatpush1.msra.mxu0 %v2620
        %3266 = vmatprep.subr.mxu0 0.0
        %3267 = vmatpush1.msra.mxu0 %v2623
        %3268 = vmatprep.subr.mxu0 0.0
        %3269 = vmatpush1.msra.mxu0 %v2626
        %3270 = vmatprep.subr.mxu0 0.0
        %3271 = vmatpush1.msra.mxu0 %v2629
        %3272 = vmatprep.subr.mxu0 0.0
        %3273 = vmatpush1.msra.mxu0 %v2632
        %3274 = vmatprep.subr.mxu0 0.0
        %3275 = vmatpush1.msra.mxu0 %v2635
        %3276 = vmatprep.subr.mxu0 0.0
        %3277 = vmatpush1.msra.mxu0 %v2638
        %3278 = vmatprep.subr.mxu0 0.0
        %3279 = vmatpush1.msra.mxu0 %v2641
        %3280 = vmatprep.subr.mxu0 0.0
        %3281 = vmatpush1.msra.mxu0 %v2644
        %3282 = vmatprep.subr.mxu0 0.0
        %3283 = vmatpush1.msra.mxu0 %v2647
        %3284 = vmatprep.subr.mxu0 0.0
        %3285 = vmatpush1.msra.mxu0 0.0
        %3286 = vmatprep.subr.mxu0 0.0
        %3287 = vmatpush1.msra.mxu0 0.0
        %3288 = vmatprep.subr.mxu0 0.0
        %3289 = vmatpush1.msra.mxu0 0.0
        %3290 = vmatprep.subr.mxu0 0.0
        %3291 = vmatpush1.msra.mxu0 0.0
        %3292 = vmatprep.subr.mxu0 0.0
        %3293 = vmatpush1.msra.mxu0 0.0
        %3294 = vmatprep.subr.mxu0 0.0
        %3295 = vmatpush1.msra.mxu0 0.0
        %3296 = vmatprep.subr.mxu0 0.0
        %3297 = vmatpush1.msra.mxu0 0.0
        %3298 = vmatprep.subr.mxu0 0.0
        %3299 = vmatpush1.msra.mxu0 0.0
        %3300 = vmatprep.subr.mxu0 0.0
        %3301 = vmatpush1.msra.mxu0 0.0
        %3302 = vmatprep.subr.mxu0 0.0
        %3303 = vmatpush1.msra.mxu0 0.0
        %3304 = vmatprep.subr.mxu0 0.0
        %3305 = vmatpush1.msra.mxu0 0.0
        %3306 = vmatprep.subr.mxu0 0.0
        %3307 = vmatpush1.msra.mxu0 0.0
        %3308 = vmatprep.subr.mxu0 0.0
        %3309 = vmatpush1.msra.mxu0 0.0
        %3310 = vmatprep.subr.mxu0 0.0
        %3311 = vmatpush1.msra.mxu0 0.0
        %3312 = vmatprep.subr.mxu0 0.0
        %3313 = vmatpush1.msra.mxu0 0.0
        %3314 = vmatprep.subr.mxu0 0.0
        %3315 = vmatpush1.msra.mxu0 0.0
        %3316 = vmatprep.mubr.f32.mxu0 0.0
        %3317 = vmatmul.mubr.f32.gmra.mrb[0].mxu0 %v3180
        %v3318 = vpop.f32.mrb[0].mxu0
        %v3319 = vadd.f32 0.0, %v3318
        %v3320 = vpop.f32.mrb[0].mxu0
        %3321 = vdwg.mxu0
        %3322 = vmatprep.subr.mxu0 0.0
        %3323 = vmatpush1.msra.mxu0 %v3248
        %3324 = vmatprep.subr.mxu0 0.0
        %3325 = vmatpush1.msra.mxu0 0.0
        %3326 = vmatprep.subr.mxu0 0.0
        %3327 = vmatpush1.msra.mxu0 0.0
        %3328 = vmatprep.subr.mxu0 0.0
        %3329 = vmatpush1.msra.mxu0 0.0
        %3330 = vmatprep.subr.mxu0 0.0
        %3331 = vmatpush1.msra.mxu0 0.0
        %3332 = vmatprep.subr.mxu0 0.0
        %3333 = vmatpush1.msra.mxu0 0.0
        %3334 = vmatprep.subr.mxu0 0.0
        %3335 = vmatpush1.msra.mxu0 0.0
        %3336 = vmatprep.subr.mxu0 0.0
        %3337 = vmatpush1.msra.mxu0 0.0
        %3338 = vmatprep.subr.mxu0 0.0
        %3339 = vmatpush1.msra.mxu0 0.0
        %3340 = vmatprep.subr.mxu0 0.0
        %3341 = vmatpush1.msra.mxu0 0.0
        %3342 = vmatprep.subr.mxu0 0.0
        %3343 = vmatpush1.msra.mxu0 0.0
        %3344 = vmatprep.subr.mxu0 0.0
        %3345 = vmatpush1.msra.mxu0 0.0
        %3346 = vmatprep.subr.mxu0 0.0
        %3347 = vmatpush1.msra.mxu0 0.0
        %3348 = vmatprep.subr.mxu0 0.0
        %3349 = vmatpush1.msra.mxu0 0.0
        %3350 = vmatprep.subr.mxu0 0.0
        %3351 = vmatpush1.msra.mxu0 0.0
        %3352 = vmatprep.subr.mxu0 0.0
        %3353 = vmatpush1.msra.mxu0 0.0
        %3354 = vmatprep.subr.mxu0 0.0
        %3355 = vmatpush1.msra.mxu0 0.0
        %3356 = vmatprep.subr.mxu0 0.0
        %3357 = vmatpush1.msra.mxu0 0.0
        %3358 = vmatprep.subr.mxu0 0.0
        %3359 = vmatpush1.msra.mxu0 0.0
        %3360 = vmatprep.subr.mxu0 0.0
        %3361 = vmatpush1.msra.mxu0 0.0
        %3362 = vmatprep.subr.mxu0 0.0
        %3363 = vmatpush1.msra.mxu0 0.0
        %3364 = vmatprep.subr.mxu0 0.0
        %3365 = vmatpush1.msra.mxu0 0.0
        %3366 = vmatprep.subr.mxu0 0.0
        %3367 = vmatpush1.msra.mxu0 0.0
        %3368 = vmatprep.subr.mxu0 0.0
        %3369 = vmatpush1.msra.mxu0 0.0
        %3370 = vmatprep.subr.mxu0 0.0
        %3371 = vmatpush1.msra.mxu0 0.0
        %3372 = vmatprep.subr.mxu0 0.0
        %3373 = vmatpush1.msra.mxu0 0.0
        %3374 = vmatprep.subr.mxu0 0.0
        %3375 = vmatpush1.msra.mxu0 0.0
        %3376 = vmatprep.subr.mxu0 0.0
        %3377 = vmatpush1.msra.mxu0 0.0
        %3378 = vmatprep.subr.mxu0 0.0
        %3379 = vmatpush1.msra.mxu0 0.0
        %3380 = vmatprep.subr.mxu0 0.0
        %3381 = vmatpush1.msra.mxu0 0.0
        %3382 = vmatprep.subr.mxu0 0.0
        %3383 = vmatpush1.msra.mxu0 0.0
        %3384 = vmatprep.subr.mxu0 0.0
        %3385 = vmatpush1.msra.mxu0 0.0
        %3386 = vmatprep.mubr.f32.mxu0 0.0
        %3387 = vmatmul.mubr.f32.gmra.mrb[0].mxu0 %v2874
        %v3388 = vpop.f32.mrb[0].mxu0
        %v3389 = vadd.f32 0.0, %v3388
        %v3390 = vpop.f32.mrb[0].mxu0
        %3391 = vdwg.mxu0
        %3392 = vmatprep.subr.mxu0 %v2649
        %3393 = vmatpush1.msra.mxu0 %v2648
        %3394 = vmatprep.subr.mxu0 %v2652
        %3395 = vmatpush1.msra.mxu0 %v2651
        %3396 = vmatprep.subr.mxu0 %v2655
        %3397 = vmatpush1.msra.mxu0 %v2654
        %3398 = vmatprep.subr.mxu0 %v2658
        %3399 = vmatpush1.msra.mxu0 %v2657
        %3400 = vmatprep.subr.mxu0 %v2661
        %3401 = vmatpush1.msra.mxu0 %v2660
        %3402 = vmatprep.subr.mxu0 %v2664
        %3403 = vmatpush1.msra.mxu0 %v2663
        %3404 = vmatprep.subr.mxu0 %v2667
        %3405 = vmatpush1.msra.mxu0 %v2666
        %3406 = vmatprep.subr.mxu0 %v2670
        %3407 = vmatpush1.msra.mxu0 %v2669
        %3408 = vmatprep.subr.mxu0 %v2673
        %3409 = vmatpush1.msra.mxu0 %v2672
        %3410 = vmatprep.subr.mxu0 %v2676
        %3411 = vmatpush1.msra.mxu0 %v2675
        %3412 = vmatprep.subr.mxu0 %v2679
        %3413 = vmatpush1.msra.mxu0 %v2678
        %3414 = vmatprep.subr.mxu0 %v2682
        %3415 = vmatpush1.msra.mxu0 %v2681
        %3416 = vmatprep.subr.mxu0 %v2685
        %3417 = vmatpush1.msra.mxu0 %v2684
        %3418 = vmatprep.subr.mxu0 %v2688
        %3419 = vmatpush1.msra.mxu0 %v2687
        %3420 = vmatprep.subr.mxu0 %v2691
        %3421 = vmatpush1.msra.mxu0 %v2690
        %3422 = vmatprep.subr.mxu0 %v2694
        %3423 = vmatpush1.msra.mxu0 %v2693
        %3424 = vmatprep.subr.mxu0 0.0
        %3425 = vmatpush1.msra.mxu0 0.0
        %3426 = vmatprep.subr.mxu0 0.0
        %3427 = vmatpush1.msra.mxu0 0.0
        %3428 = vmatprep.subr.mxu0 0.0
        %3429 = vmatpush1.msra.mxu0 0.0
        %3430 = vmatprep.subr.mxu0 0.0
        %3431 = vmatpush1.msra.mxu0 0.0
        %3432 = vmatprep.subr.mxu0 0.0
        %3433 = vmatpush1.msra.mxu0 0.0
        %3434 = vmatprep.subr.mxu0 0.0
        %3435 = vmatpush1.msra.mxu0 0.0
        %3436 = vmatprep.subr.mxu0 0.0
        %3437 = vmatpush1.msra.mxu0 0.0
        %3438 = vmatprep.subr.mxu0 0.0
        %3439 = vmatpush1.msra.mxu0 0.0
        %3440 = vmatprep.subr.mxu0 0.0
        %3441 = vmatpush1.msra.mxu0 0.0
        %3442 = vmatprep.subr.mxu0 0.0
        %3443 = vmatpush1.msra.mxu0 0.0
        %3444 = vmatprep.subr.mxu0 0.0
        %3445 = vmatpush1.msra.mxu0 0.0
        %3446 = vmatprep.subr.mxu0 0.0
        %3447 = vmatpush1.msra.mxu0 0.0
        %3448 = vmatprep.subr.mxu0 0.0
        %3449 = vmatpush1.msra.mxu0 0.0
        %3450 = vmatprep.subr.mxu0 0.0
        %3451 = vmatpush1.msra.mxu0 0.0
        %3452 = vmatprep.subr.mxu0 0.0
        %3453 = vmatpush1.msra.mxu0 0.0
        %3454 = vmatprep.subr.mxu0 0.0
        %3455 = vmatpush1.msra.mxu0 0.0
        %3456 = vmatprep.mubr.f32.mxu0 0.0
        %3457 = vmatmul.mubr.f32.gmra.mrb[0].mxu0 %v3389
        %v3458 = vpop.f32.mrb[0].mxu0
        %v3459 = vadd.f32 0.0, %v3458
        %v3460 = vpop.f32.mrb[0].mxu0
        %v3461 = vadd.f32 0.0, %v3460
        %3462 = vdwg.mxu0
        %3463 = vmatprep.subr.mxu0 0.0
        %3464 = vmatpush1.msra.mxu0 %v2650
        %3465 = vmatprep.subr.mxu0 0.0
        %3466 = vmatpush1.msra.mxu0 %v2653
        %3467 = vmatprep.subr.mxu0 0.0
        %3468 = vmatpush1.msra.mxu0 %v2656
        %3469 = vmatprep.subr.mxu0 0.0
        %3470 = vmatpush1.msra.mxu0 %v2659
        %3471 = vmatprep.subr.mxu0 0.0
        %3472 = vmatpush1.msra.mxu0 %v2662
        %3473 = vmatprep.subr.mxu0 0.0
        %3474 = vmatpush1.msra.mxu0 %v2665
        %3475 = vmatprep.subr.mxu0 0.0
        %3476 = vmatpush1.msra.mxu0 %v2668
        %3477 = vmatprep.subr.mxu0 0.0
        %3478 = vmatpush1.msra.mxu0 %v2671
        %3479 = vmatprep.subr.mxu0 0.0
        %3480 = vmatpush1.msra.mxu0 %v2674
        %3481 = vmatprep.subr.mxu0 0.0
        %3482 = vmatpush1.msra.mxu0 %v2677
        %3483 = vmatprep.subr.mxu0 0.0
        %3484 = vmatpush1.msra.mxu0 %v2680
        %3485 = vmatprep.subr.mxu0 0.0
        %3486 = vmatpush1.msra.mxu0 %v2683
        %3487 = vmatprep.subr.mxu0 0.0
        %3488 = vmatpush1.msra.mxu0 %v2686
        %3489 = vmatprep.subr.mxu0 0.0
        %3490 = vmatpush1.msra.mxu0 %v2689
        %3491 = vmatprep.subr.mxu0 0.0
        %3492 = vmatpush1.msra.mxu0 %v2692
        %3493 = vmatprep.subr.mxu0 0.0
        %3494 = vmatpush1.msra.mxu0 %v2695
        %3495 = vmatprep.subr.mxu0 0.0
        %3496 = vmatpush1.msra.mxu0 0.0
        %3497 = vmatprep.subr.mxu0 0.0
        %3498 = vmatpush1.msra.mxu0 0.0
        %3499 = vmatprep.subr.mxu0 0.0
        %3500 = vmatpush1.msra.mxu0 0.0
        %3501 = vmatprep.subr.mxu0 0.0
        %3502 = vmatpush1.msra.mxu0 0.0
        %3503 = vmatprep.subr.mxu0 0.0
        %3504 = vmatpush1.msra.mxu0 0.0
        %3505 = vmatprep.subr.mxu0 0.0
        %3506 = vmatpush1.msra.mxu0 0.0
        %3507 = vmatprep.subr.mxu0 0.0
        %3508 = vmatpush1.msra.mxu0 0.0
        %3509 = vmatprep.subr.mxu0 0.0
        %3510 = vmatpush1.msra.mxu0 0.0
        %3511 = vmatprep.subr.mxu0 0.0
        %3512 = vmatpush1.msra.mxu0 0.0
        %3513 = vmatprep.subr.mxu0 0.0
        %3514 = vmatpush1.msra.mxu0 0.0
        %3515 = vmatprep.subr.mxu0 0.0
        %3516 = vmatpush1.msra.mxu0 0.0
        %3517 = vmatprep.subr.mxu0 0.0
        %3518 = vmatpush1.msra.mxu0 0.0
        %3519 = vmatprep.subr.mxu0 0.0
        %3520 = vmatpush1.msra.mxu0 0.0
        %3521 = vmatprep.subr.mxu0 0.0
        %3522 = vmatpush1.msra.mxu0 0.0
        %3523 = vmatprep.subr.mxu0 0.0
        %3524 = vmatpush1.msra.mxu0 0.0
        %3525 = vmatprep.subr.mxu0 0.0
        %3526 = vmatpush1.msra.mxu0 0.0
        %3527 = vmatprep.mubr.f32.mxu0 0.0
        %3528 = vmatmul.mubr.f32.gmra.mrb[0].mxu0 %v3389
        %v3529 = vpop.f32.mrb[0].mxu0
        %v3530 = vadd.f32 0.0, %v3529
        %v3531 = vpop.f32.mrb[0].mxu0
        %3532 = vdwg.mxu0
        %v3533 = vadd.f32 %v3459, %v3250
        %v3534 = vadd.f32 %v3461, %v3319
        %v3535 = vadd.f32 %v3533, %v2717
        %v3536 = vadd.f32 %v3534, %v2721
        %v3537 = vxor.u32 %v3535, 2147483648
        %v3538 = vmul.f32 %v3537, 1.442695
        %v3539 = vpow.pop %v3538
        %v3540 = vadd.f32 %v3539, 1.0
        %v3541 = vrcp.pop %v3540
        %v3542 = vmul.f32 1.0, %v3541
        %v3543 = vxor.u32 %v3536, 2147483648
        %v3544 = vmul.f32 %v3543, 1.442695
        %v3545 = vpow.pop %v3544
        %v3546 = vadd.f32 %v3545, 1.0
        %v3547 = vrcp.pop %v3546
        %v3548 = vmul.f32 1.0, %v3547
        %v3549 = vmul.f32 %v3548, %v3180
        %3550 = vmatprep.subr.mxu0 0.0
        %3551 = vmatpush1.msra.mxu0 %v2696
        %3552 = vmatprep.subr.mxu0 0.0
        %3553 = vmatpush1.msra.mxu0 %v2697
        %3554 = vmatprep.subr.mxu0 0.0
        %3555 = vmatpush1.msra.mxu0 %v2698
        %3556 = vmatprep.subr.mxu0 0.0
        %3557 = vmatpush1.msra.mxu0 %v2699
        %3558 = vmatprep.subr.mxu0 0.0
        %3559 = vmatpush1.msra.mxu0 %v2700
        %3560 = vmatprep.subr.mxu0 0.0
        %3561 = vmatpush1.msra.mxu0 %v2701
        %3562 = vmatprep.subr.mxu0 0.0
        %3563 = vmatpush1.msra.mxu0 %v2702
        %3564 = vmatprep.subr.mxu0 0.0
        %3565 = vmatpush1.msra.mxu0 %v2703
        %3566 = vmatprep.subr.mxu0 0.0
        %3567 = vmatpush1.msra.mxu0 %v2704
        %3568 = vmatprep.subr.mxu0 0.0
        %3569 = vmatpush1.msra.mxu0 %v2705
        %3570 = vmatprep.subr.mxu0 0.0
        %3571 = vmatpush1.msra.mxu0 %v2706
        %3572 = vmatprep.subr.mxu0 0.0
        %3573 = vmatpush1.msra.mxu0 %v2707
        %3574 = vmatprep.subr.mxu0 0.0
        %3575 = vmatpush1.msra.mxu0 %v2708
        %3576 = vmatprep.subr.mxu0 0.0
        %3577 = vmatpush1.msra.mxu0 %v2709
        %3578 = vmatprep.subr.mxu0 0.0
        %3579 = vmatpush1.msra.mxu0 %v2710
        %3580 = vmatprep.subr.mxu0 0.0
        %3581 = vmatpush1.msra.mxu0 %v2711
        %3582 = vmatprep.subr.mxu0 0.0
        %3583 = vmatpush1.msra.mxu0 0.0
        %3584 = vmatprep.subr.mxu0 0.0
        %3585 = vmatpush1.msra.mxu0 0.0
        %3586 = vmatprep.subr.mxu0 0.0
        %3587 = vmatpush1.msra.mxu0 0.0
        %3588 = vmatprep.subr.mxu0 0.0
        %3589 = vmatpush1.msra.mxu0 0.0
        %3590 = vmatprep.subr.mxu0 0.0
        %3591 = vmatpush1.msra.mxu0 0.0
        %3592 = vmatprep.subr.mxu0 0.0
        %3593 = vmatpush1.msra.mxu0 0.0
        %3594 = vmatprep.subr.mxu0 0.0
        %3595 = vmatpush1.msra.mxu0 0.0
        %3596 = vmatprep.subr.mxu0 0.0
        %3597 = vmatpush1.msra.mxu0 0.0
        %3598 = vmatprep.subr.mxu0 0.0
        %3599 = vmatpush1.msra.mxu0 0.0
        %3600 = vmatprep.subr.mxu0 0.0
        %3601 = vmatpush1.msra.mxu0 0.0
        %3602 = vmatprep.subr.mxu0 0.0
        %3603 = vmatpush1.msra.mxu0 0.0
        %3604 = vmatprep.subr.mxu0 0.0
        %3605 = vmatpush1.msra.mxu0 0.0
        %3606 = vmatprep.subr.mxu0 0.0
        %3607 = vmatpush1.msra.mxu0 0.0
        %3608 = vmatprep.subr.mxu0 0.0
        %3609 = vmatpush1.msra.mxu0 0.0
        %3610 = vmatprep.subr.mxu0 0.0
        %3611 = vmatpush1.msra.mxu0 0.0
        %3612 = vmatprep.subr.mxu0 0.0
        %3613 = vmatpush1.msra.mxu0 0.0
        %3614 = vmatprep.mubr.f32.mxu0 0.0
        %3615 = vmatmul.mubr.f32.gmra.mrb[0].mxu0 %v3549
        %v3616 = vpop.f32.mrb[0].mxu0
        %v3617 = vadd.f32 0.0, %v3616
        %v3618 = vpop.f32.mrb[0].mxu0
        %3619 = vdwg.mxu0
        %v3620 = vadd.f32 %v3530, %v3617
        %v3621 = vadd.f32 %v3620, %v2729
        %v3622 = vtanh.pop %v3621
        %v3623 = vsub.f32 1.0, %v3542
        %v3624 = vmul.f32 %v3623, %v3180
        %v3625 = vmul.f32 %v3542, %v3622
        %v3626 = vadd.f32 %v3624, %v3625
        %3627 = vmatprep.subr.mxu0 %v2601
        %3628 = vmatpush1.msra.mxu0 %v2600
        %3629 = vmatprep.subr.mxu0 %v2604
        %3630 = vmatpush1.msra.mxu0 %v2603
        %3631 = vmatprep.subr.mxu0 %v2607
        %3632 = vmatpush1.msra.mxu0 %v2606
        %3633 = vmatprep.subr.mxu0 %v2610
        %3634 = vmatpush1.msra.mxu0 %v2609
        %3635 = vmatprep.subr.mxu0 %v2613
        %3636 = vmatpush1.msra.mxu0 %v2612
        %3637 = vmatprep.subr.mxu0 %v2616
        %3638 = vmatpush1.msra.mxu0 %v2615
        %3639 = vmatprep.subr.mxu0 %v2619
        %3640 = vmatpush1.msra.mxu0 %v2618
        %3641 = vmatprep.subr.mxu0 %v2622
        %3642 = vmatpush1.msra.mxu0 %v2621
        %3643 = vmatprep.subr.mxu0 %v2625
        %3644 = vmatpush1.msra.mxu0 %v2624
        %3645 = vmatprep.subr.mxu0 %v2628
        %3646 = vmatpush1.msra.mxu0 %v2627
        %3647 = vmatprep.subr.mxu0 %v2631
        %3648 = vmatpush1.msra.mxu0 %v2630
        %3649 = vmatprep.subr.mxu0 %v2634
        %3650 = vmatpush1.msra.mxu0 %v2633
        %3651 = vmatprep.subr.mxu0 %v2637
        %3652 = vmatpush1.msra.mxu0 %v2636
        %3653 = vmatprep.subr.mxu0 %v2640
        %3654 = vmatpush1.msra.mxu0 %v2639
        %3655 = vmatprep.subr.mxu0 %v2643
        %3656 = vmatpush1.msra.mxu0 %v2642
        %3657 = vmatprep.subr.mxu0 %v2646
        %3658 = vmatpush1.msra.mxu0 %v2645
        %3659 = vmatprep.subr.mxu0 0.0
        %3660 = vmatpush1.msra.mxu0 0.0
        %3661 = vmatprep.subr.mxu0 0.0
        %3662 = vmatpush1.msra.mxu0 0.0
        %3663 = vmatprep.subr.mxu0 0.0
        %3664 = vmatpush1.msra.mxu0 0.0
        %3665 = vmatprep.subr.mxu0 0.0
        %3666 = vmatpush1.msra.mxu0 0.0
        %3667 = vmatprep.subr.mxu0 0.0
        %3668 = vmatpush1.msra.mxu0 0.0
        %3669 = vmatprep.subr.mxu0 0.0
        %3670 = vmatpush1.msra.mxu0 0.0
        %3671 = vmatprep.subr.mxu0 0.0
        %3672 = vmatpush1.msra.mxu0 0.0
        %3673 = vmatprep.subr.mxu0 0.0
        %3674 = vmatpush1.msra.mxu0 0.0
        %3675 = vmatprep.subr.mxu0 0.0
        %3676 = vmatpush1.msra.mxu0 0.0
        %3677 = vmatprep.subr.mxu0 0.0
        %3678 = vmatpush1.msra.mxu0 0.0
        %3679 = vmatprep.subr.mxu0 0.0
        %3680 = vmatpush1.msra.mxu0 0.0
        %3681 = vmatprep.subr.mxu0 0.0
        %3682 = vmatpush1.msra.mxu0 0.0
        %3683 = vmatprep.subr.mxu0 0.0
        %3684 = vmatpush1.msra.mxu0 0.0
        %3685 = vmatprep.subr.mxu0 0.0
        %3686 = vmatpush1.msra.mxu0 0.0
        %3687 = vmatprep.subr.mxu0 0.0
        %3688 = vmatpush1.msra.mxu0 0.0
        %3689 = vmatprep.subr.mxu0 0.0
        %3690 = vmatpush1.msra.mxu0 0.0
        %3691 = vmatprep.mubr.f32.mxu0 0.0
        %3692 = vmatmul.mubr.f32.gmra.mrb[0].mxu0 %v3626
        %v3693 = vpop.f32.mrb[0].mxu0
        %v3694 = vadd.f32 0.0, %v3693
        %v3695 = vpop.f32.mrb[0].mxu0
        %v3696 = vadd.f32 0.0, %v3695
        %3697 = vdwg.mxu0
        %3698 = vmatprep.subr.mxu0 0.0
        %3699 = vmatpush1.msra.mxu0 %v2602
        %3700 = vmatprep.subr.mxu0 0.0
        %3701 = vmatpush1.msra.mxu0 %v2605
        %3702 = vmatprep.subr.mxu0 0.0
        %3703 = vmatpush1.msra.mxu0 %v2608
        %3704 = vmatprep.subr.mxu0 0.0
        %3705 = vmatpush1.msra.mxu0 %v2611
        %3706 = vmatprep.subr.mxu0 0.0
        %3707 = vmatpush1.msra.mxu0 %v2614
        %3708 = vmatprep.subr.mxu0 0.0
        %3709 = vmatpush1.msra.mxu0 %v2617
        %3710 = vmatprep.subr.mxu0 0.0
        %3711 = vmatpush1.msra.mxu0 %v2620
        %3712 = vmatprep.subr.mxu0 0.0
        %3713 = vmatpush1.msra.mxu0 %v2623
        %3714 = vmatprep.subr.mxu0 0.0
        %3715 = vmatpush1.msra.mxu0 %v2626
        %3716 = vmatprep.subr.mxu0 0.0
        %3717 = vmatpush1.msra.mxu0 %v2629
        %3718 = vmatprep.subr.mxu0 0.0
        %3719 = vmatpush1.msra.mxu0 %v2632
        %3720 = vmatprep.subr.mxu0 0.0
        %3721 = vmatpush1.msra.mxu0 %v2635
        %3722 = vmatprep.subr.mxu0 0.0
        %3723 = vmatpush1.msra.mxu0 %v2638
        %3724 = vmatprep.subr.mxu0 0.0
        %3725 = vmatpush1.msra.mxu0 %v2641
        %3726 = vmatprep.subr.mxu0 0.0
        %3727 = vmatpush1.msra.mxu0 %v2644
        %3728 = vmatprep.subr.mxu0 0.0
        %3729 = vmatpush1.msra.mxu0 %v2647
        %3730 = vmatprep.subr.mxu0 0.0
        %3731 = vmatpush1.msra.mxu0 0.0
        %3732 = vmatprep.subr.mxu0 0.0
        %3733 = vmatpush1.msra.mxu0 0.0
        %3734 = vmatprep.subr.mxu0 0.0
        %3735 = vmatpush1.msra.mxu0 0.0
        %3736 = vmatprep.subr.mxu0 0.0
        %3737 = vmatpush1.msra.mxu0 0.0
        %3738 = vmatprep.subr.mxu0 0.0
        %3739 = vmatpush1.msra.mxu0 0.0
        %3740 = vmatprep.subr.mxu0 0.0
        %3741 = vmatpush1.msra.mxu0 0.0
        %3742 = vmatprep.subr.mxu0 0.0
        %3743 = vmatpush1.msra.mxu0 0.0
        %3744 = vmatprep.subr.mxu0 0.0
        %3745 = vmatpush1.msra.mxu0 0.0
        %3746 = vmatprep.subr.mxu0 0.0
        %3747 = vmatpush1.msra.mxu0 0.0
        %3748 = vmatprep.subr.mxu0 0.0
        %3749 = vmatpush1.msra.mxu0 0.0
        %3750 = vmatprep.subr.mxu0 0.0
        %3751 = vmatpush1.msra.mxu0 0.0
        %3752 = vmatprep.subr.mxu0 0.0
        %3753 = vmatpush1.msra.mxu0 0.0
        %3754 = vmatprep.subr.mxu0 0.0
        %3755 = vmatpush1.msra.mxu0 0.0
        %3756 = vmatprep.subr.mxu0 0.0
        %3757 = vmatpush1.msra.mxu0 0.0
        %3758 = vmatprep.subr.mxu0 0.0
        %3759 = vmatpush1.msra.mxu0 0.0
        %3760 = vmatprep.subr.mxu0 0.0
        %3761 = vmatpush1.msra.mxu0 0.0
        %3762 = vmatprep.mubr.f32.mxu0 0.0
        %3763 = vmatmul.mubr.f32.gmra.mrb[0].mxu0 %v3626
        %v3764 = vpop.f32.mrb[0].mxu0
        %v3765 = vadd.f32 0.0, %v3764
        %v3766 = vpop.f32.mrb[0].mxu0
        %3767 = vdwg.mxu0
        %3768 = vmatprep.subr.mxu0 0.0
        %3769 = vmatpush1.msra.mxu0 %v3694
        %3770 = vmatprep.subr.mxu0 0.0
        %3771 = vmatpush1.msra.mxu0 0.0
        %3772 = vmatprep.subr.mxu0 0.0
        %3773 = vmatpush1.msra.mxu0 0.0
        %3774 = vmatprep.subr.mxu0 0.0
        %3775 = vmatpush1.msra.mxu0 0.0
        %3776 = vmatprep.subr.mxu0 0.0
        %3777 = vmatpush1.msra.mxu0 0.0
        %3778 = vmatprep.subr.mxu0 0.0
        %3779 = vmatpush1.msra.mxu0 0.0
        %3780 = vmatprep.subr.mxu0 0.0
        %3781 = vmatpush1.msra.mxu0 0.0
        %3782 = vmatprep.subr.mxu0 0.0
        %3783 = vmatpush1.msra.mxu0 0.0
        %3784 = vmatprep.subr.mxu0 0.0
        %3785 = vmatpush1.msra.mxu0 0.0
        %3786 = vmatprep.subr.mxu0 0.0
        %3787 = vmatpush1.msra.mxu0 0.0
        %3788 = vmatprep.subr.mxu0 0.0
        %3789 = vmatpush1.msra.mxu0 0.0
        %3790 = vmatprep.subr.mxu0 0.0
        %3791 = vmatpush1.msra.mxu0 0.0
        %3792 = vmatprep.subr.mxu0 0.0
        %3793 = vmatpush1.msra.mxu0 0.0
        %3794 = vmatprep.subr.mxu0 0.0
        %3795 = vmatpush1.msra.mxu0 0.0
        %3796 = vmatprep.subr.mxu0 0.0
        %3797 = vmatpush1.msra.mxu0 0.0
        %3798 = vmatprep.subr.mxu0 0.0
        %3799 = vmatpush1.msra.mxu0 0.0
        %3800 = vmatprep.subr.mxu0 0.0
        %3801 = vmatpush1.msra.mxu0 0.0
        %3802 = vmatprep.subr.mxu0 0.0
        %3803 = vmatpush1.msra.mxu0 0.0
        %3804 = vmatprep.subr.mxu0 0.0
        %3805 = vmatpush1.msra.mxu0 0.0
        %3806 = vmatprep.subr.mxu0 0.0
        %3807 = vmatpush1.msra.mxu0 0.0
        %3808 = vmatprep.subr.mxu0 0.0
        %3809 = vmatpush1.msra.mxu0 0.0
        %3810 = vmatprep.subr.mxu0 0.0
        %3811 = vmatpush1.msra.mxu0 0.0
        %3812 = vmatprep.subr.mxu0 0.0
        %3813 = vmatpush1.msra.mxu0 0.0
        %3814 = vmatprep.subr.mxu0 0.0
        %3815 = vmatpush1.msra.mxu0 0.0
        %3816 = vmatprep.subr.mxu0 0.0
        %3817 = vmatpush1.msra.mxu0 0.0
        %3818 = vmatprep.subr.mxu0 0.0
        %3819 = vmatpush1.msra.mxu0 0.0
        %3820 = vmatprep.subr.mxu0 0.0
        %3821 = vmatpush1.msra.mxu0 0.0
        %3822 = vmatprep.subr.mxu0 0.0
        %3823 = vmatpush1.msra.mxu0 0.0
        %3824 = vmatprep.subr.mxu0 0.0
        %3825 = vmatpush1.msra.mxu0 0.0
        %3826 = vmatprep.subr.mxu0 0.0
        %3827 = vmatpush1.msra.mxu0 0.0
        %3828 = vmatprep.subr.mxu0 0.0
        %3829 = vmatpush1.msra.mxu0 0.0
        %3830 = vmatprep.subr.mxu0 0.0
        %3831 = vmatpush1.msra.mxu0 0.0
        %3832 = vmatprep.mubr.f32.mxu0 0.0
        %3833 = vmatmul.mubr.f32.gmra.mrb[0].mxu0 %v2874
        %v3834 = vpop.f32.mrb[0].mxu0
        %v3835 = vadd.f32 0.0, %v3834
        %v3836 = vpop.f32.mrb[0].mxu0
        %3837 = vdwg.mxu0
        %3838 = vmatprep.subr.mxu0 %v2649
        %3839 = vmatpush1.msra.mxu0 %v2648
        %3840 = vmatprep.subr.mxu0 %v2652
        %3841 = vmatpush1.msra.mxu0 %v2651
        %3842 = vmatprep.subr.mxu0 %v2655
        %3843 = vmatpush1.msra.mxu0 %v2654
        %3844 = vmatprep.subr.mxu0 %v2658
        %3845 = vmatpush1.msra.mxu0 %v2657
        %3846 = vmatprep.subr.mxu0 %v2661
        %3847 = vmatpush1.msra.mxu0 %v2660
        %3848 = vmatprep.subr.mxu0 %v2664
        %3849 = vmatpush1.msra.mxu0 %v2663
        %3850 = vmatprep.subr.mxu0 %v2667
        %3851 = vmatpush1.msra.mxu0 %v2666
        %3852 = vmatprep.subr.mxu0 %v2670
        %3853 = vmatpush1.msra.mxu0 %v2669
        %3854 = vmatprep.subr.mxu0 %v2673
        %3855 = vmatpush1.msra.mxu0 %v2672
        %3856 = vmatprep.subr.mxu0 %v2676
        %3857 = vmatpush1.msra.mxu0 %v2675
        %3858 = vmatprep.subr.mxu0 %v2679
        %3859 = vmatpush1.msra.mxu0 %v2678
        %3860 = vmatprep.subr.mxu0 %v2682
        %3861 = vmatpush1.msra.mxu0 %v2681
        %3862 = vmatprep.subr.mxu0 %v2685
        %3863 = vmatpush1.msra.mxu0 %v2684
        %3864 = vmatprep.subr.mxu0 %v2688
        %3865 = vmatpush1.msra.mxu0 %v2687
        %3866 = vmatprep.subr.mxu0 %v2691
        %3867 = vmatpush1.msra.mxu0 %v2690
        %3868 = vmatprep.subr.mxu0 %v2694
        %3869 = vmatpush1.msra.mxu0 %v2693
        %3870 = vmatprep.subr.mxu0 0.0
        %3871 = vmatpush1.msra.mxu0 0.0
        %3872 = vmatprep.subr.mxu0 0.0
        %3873 = vmatpush1.msra.mxu0 0.0
        %3874 = vmatprep.subr.mxu0 0.0
        %3875 = vmatpush1.msra.mxu0 0.0
        %3876 = vmatprep.subr.mxu0 0.0
        %3877 = vmatpush1.msra.mxu0 0.0
        %3878 = vmatprep.subr.mxu0 0.0
        %3879 = vmatpush1.msra.mxu0 0.0
        %3880 = vmatprep.subr.mxu0 0.0
        %3881 = vmatpush1.msra.mxu0 0.0
        %3882 = vmatprep.subr.mxu0 0.0
        %3883 = vmatpush1.msra.mxu0 0.0
        %3884 = vmatprep.subr.mxu0 0.0
        %3885 = vmatpush1.msra.mxu0 0.0
        %3886 = vmatprep.subr.mxu0 0.0
        %3887 = vmatpush1.msra.mxu0 0.0
        %3888 = vmatprep.subr.mxu0 0.0
        %3889 = vmatpush1.msra.mxu0 0.0
        %3890 = vmatprep.subr.mxu0 0.0
        %3891 = vmatpush1.msra.mxu0 0.0
        %3892 = vmatprep.subr.mxu0 0.0
        %3893 = vmatpush1.msra.mxu0 0.0
        %3894 = vmatprep.subr.mxu0 0.0
        %3895 = vmatpush1.msra.mxu0 0.0
        %3896 = vmatprep.subr.mxu0 0.0
        %3897 = vmatpush1.msra.mxu0 0.0
        %3898 = vmatprep.subr.mxu0 0.0
        %3899 = vmatpush1.msra.mxu0 0.0
        %3900 = vmatprep.subr.mxu0 0.0
        %3901 = vmatpush1.msra.mxu0 0.0
        %3902 = vmatprep.mubr.f32.mxu0 0.0
        %3903 = vmatmul.mubr.f32.gmra.mrb[0].mxu0 %v3835
        %v3904 = vpop.f32.mrb[0].mxu0
        %v3905 = vadd.f32 0.0, %v3904
        %v3906 = vpop.f32.mrb[0].mxu0
        %v3907 = vadd.f32 0.0, %v3906
        %3908 = vdwg.mxu0
        %3909 = vmatprep.subr.mxu0 0.0
        %3910 = vmatpush1.msra.mxu0 %v2650
        %3911 = vmatprep.subr.mxu0 0.0
        %3912 = vmatpush1.msra.mxu0 %v2653
        %3913 = vmatprep.subr.mxu0 0.0
        %3914 = vmatpush1.msra.mxu0 %v2656
        %3915 = vmatprep.subr.mxu0 0.0
        %3916 = vmatpush1.msra.mxu0 %v2659
        %3917 = vmatprep.subr.mxu0 0.0
        %3918 = vmatpush1.msra.mxu0 %v2662
        %3919 = vmatprep.subr.mxu0 0.0
        %3920 = vmatpush1.msra.mxu0 %v2665
        %3921 = vmatprep.subr.mxu0 0.0
        %3922 = vmatpush1.msra.mxu0 %v2668
        %3923 = vmatprep.subr.mxu0 0.0
        %3924 = vmatpush1.msra.mxu0 %v2671
        %3925 = vmatprep.subr.mxu0 0.0
        %3926 = vmatpush1.msra.mxu0 %v2674
        %3927 = vmatprep.subr.mxu0 0.0
        %3928 = vmatpush1.msra.mxu0 %v2677
        %3929 = vmatprep.subr.mxu0 0.0
        %3930 = vmatpush1.msra.mxu0 %v2680
        %3931 = vmatprep.subr.mxu0 0.0
        %3932 = vmatpush1.msra.mxu0 %v2683
        %3933 = vmatprep.subr.mxu0 0.0
        %3934 = vmatpush1.msra.mxu0 %v2686
        %3935 = vmatprep.subr.mxu0 0.0
        %3936 = vmatpush1.msra.mxu0 %v2689
        %3937 = vmatprep.subr.mxu0 0.0
        %3938 = vmatpush1.msra.mxu0 %v2692
        %3939 = vmatprep.subr.mxu0 0.0
        %3940 = vmatpush1.msra.mxu0 %v2695
        %3941 = vmatprep.subr.mxu0 0.0
        %3942 = vmatpush1.msra.mxu0 0.0
        %3943 = vmatprep.subr.mxu0 0.0
        %3944 = vmatpush1.msra.mxu0 0.0
        %3945 = vmatprep.subr.mxu0 0.0
        %3946 = vmatpush1.msra.mxu0 0.0
        %3947 = vmatprep.subr.mxu0 0.0
        %3948 = vmatpush1.msra.mxu0 0.0
        %3949 = vmatprep.subr.mxu0 0.0
        %3950 = vmatpush1.msra.mxu0 0.0
        %3951 = vmatprep.subr.mxu0 0.0
        %3952 = vmatpush1.msra.mxu0 0.0
        %3953 = vmatprep.subr.mxu0 0.0
        %3954 = vmatpush1.msra.mxu0 0.0
        %3955 = vmatprep.subr.mxu0 0.0
        %3956 = vmatpush1.msra.mxu0 0.0
        %3957 = vmatprep.subr.mxu0 0.0
        %3958 = vmatpush1.msra.mxu0 0.0
        %3959 = vmatprep.subr.mxu0 0.0
        %3960 = vmatpush1.msra.mxu0 0.0
        %3961 = vmatprep.subr.mxu0 0.0
        %3962 = vmatpush1.msra.mxu0 0.0
        %3963 = vmatprep.subr.mxu0 0.0
        %3964 = vmatpush1.msra.mxu0 0.0
        %3965 = vmatprep.subr.mxu0 0.0
        %3966 = vmatpush1.msra.mxu0 0.0
        %3967 = vmatprep.subr.mxu0 0.0
        %3968 = vmatpush1.msra.mxu0 0.0
        %3969 = vmatprep.subr.mxu0 0.0
        %3970 = vmatpush1.msra.mxu0 0.0
        %3971 = vmatprep.subr.mxu0 0.0
        %3972 = vmatpush1.msra.mxu0 0.0
        %3973 = vmatprep.mubr.f32.mxu0 0.0
        %3974 = vmatmul.mubr.f32.gmra.mrb[0].mxu0 %v3835
        %v3975 = vpop.f32.mrb[0].mxu0
        %v3976 = vadd.f32 0.0, %v3975
        %v3977 = vpop.f32.mrb[0].mxu0
        %3978 = vdwg.mxu0
        %v3979 = vadd.f32 %v3905, %v3696
        %v3980 = vadd.f32 %v3907, %v3765
        %v3981 = vadd.f32 %v3979, %v2717
        %v3982 = vadd.f32 %v3980, %v2721
        %v3983 = vxor.u32 %v3981, 2147483648
        %v3984 = vmul.f32 %v3983, 1.442695
        %v3985 = vpow.pop %v3984
        %v3986 = vadd.f32 %v3985, 1.0
        %v3987 = vrcp.pop %v3986
        %v3988 = vmul.f32 1.0, %v3987
        %v3989 = vxor.u32 %v3982, 2147483648
        %v3990 = vmul.f32 %v3989, 1.442695
        %v3991 = vpow.pop %v3990
        %v3992 = vadd.f32 %v3991, 1.0
        %v3993 = vrcp.pop %v3992
        %v3994 = vmul.f32 1.0, %v3993
        %v3995 = vmul.f32 %v3994, %v3626
        %3996 = vmatprep.subr.mxu0 0.0
        %3997 = vmatpush1.msra.mxu0 %v2696
        %3998 = vmatprep.subr.mxu0 0.0
        %3999 = vmatpush1.msra.mxu0 %v2697
        %4000 = vmatprep.subr.mxu0 0.0
        %4001 = vmatpush1.msra.mxu0 %v2698
        %4002 = vmatprep.subr.mxu0 0.0
        %4003 = vmatpush1.msra.mxu0 %v2699
        %4004 = vmatprep.subr.mxu0 0.0
        %4005 = vmatpush1.msra.mxu0 %v2700
        %4006 = vmatprep.subr.mxu0 0.0
        %4007 = vmatpush1.msra.mxu0 %v2701
        %4008 = vmatprep.subr.mxu0 0.0
        %4009 = vmatpush1.msra.mxu0 %v2702
        %4010 = vmatprep.subr.mxu0 0.0
        %4011 = vmatpush1.msra.mxu0 %v2703
        %4012 = vmatprep.subr.mxu0 0.0
        %4013 = vmatpush1.msra.mxu0 %v2704
        %4014 = vmatprep.subr.mxu0 0.0
        %4015 = vmatpush1.msra.mxu0 %v2705
        %4016 = vmatprep.subr.mxu0 0.0
        %4017 = vmatpush1.msra.mxu0 %v2706
        %4018 = vmatprep.subr.mxu0 0.0
        %4019 = vmatpush1.msra.mxu0 %v2707
        %4020 = vmatprep.subr.mxu0 0.0
        %4021 = vmatpush1.msra.mxu0 %v2708
        %4022 = vmatprep.subr.mxu0 0.0
        %4023 = vmatpush1.msra.mxu0 %v2709
        %4024 = vmatprep.subr.mxu0 0.0
        %4025 = vmatpush1.msra.mxu0 %v2710
        %4026 = vmatprep.subr.mxu0 0.0
        %4027 = vmatpush1.msra.mxu0 %v2711
        %4028 = vmatprep.subr.mxu0 0.0
        %4029 = vmatpush1.msra.mxu0 0.0
        %4030 = vmatprep.subr.mxu0 0.0
        %4031 = vmatpush1.msra.mxu0 0.0
        %4032 = vmatprep.subr.mxu0 0.0
        %4033 = vmatpush1.msra.mxu0 0.0
        %4034 = vmatprep.subr.mxu0 0.0
        %4035 = vmatpush1.msra.mxu0 0.0
        %4036 = vmatprep.subr.mxu0 0.0
        %4037 = vmatpush1.msra.mxu0 0.0
        %4038 = vmatprep.subr.mxu0 0.0
        %4039 = vmatpush1.msra.mxu0 0.0
        %4040 = vmatprep.subr.mxu0 0.0
        %4041 = vmatpush1.msra.mxu0 0.0
        %4042 = vmatprep.subr.mxu0 0.0
        %4043 = vmatpush1.msra.mxu0 0.0
        %4044 = vmatprep.subr.mxu0 0.0
        %4045 = vmatpush1.msra.mxu0 0.0
        %4046 = vmatprep.subr.mxu0 0.0
        %4047 = vmatpush1.msra.mxu0 0.0
        %4048 = vmatprep.subr.mxu0 0.0
        %4049 = vmatpush1.msra.mxu0 0.0
        %4050 = vmatprep.subr.mxu0 0.0
        %4051 = vmatpush1.msra.mxu0 0.0
        %4052 = vmatprep.subr.mxu0 0.0
        %4053 = vmatpush1.msra.mxu0 0.0
        %4054 = vmatprep.subr.mxu0 0.0
        %4055 = vmatpush1.msra.mxu0 0.0
        %4056 = vmatprep.subr.mxu0 0.0
        %4057 = vmatpush1.msra.mxu0 0.0
        %4058 = vmatprep.subr.mxu0 0.0
        %4059 = vmatpush1.msra.mxu0 0.0
        %4060 = vmatprep.mubr.f32.mxu0 0.0
        %4061 = vmatmul.mubr.f32.gmra.mrb[0].mxu0 %v3995
        %v4062 = vpop.f32.mrb[0].mxu0
        %v4063 = vadd.f32 0.0, %v4062
        %v4064 = vpop.f32.mrb[0].mxu0
        %4065 = vdwg.mxu0
        %v4066 = vadd.f32 %v3976, %v4063
        %v4067 = vadd.f32 %v4066, %v2729
        %v4068 = vtanh.pop %v4067
        %v4069 = vsub.f32 1.0, %v3988
        %v4070 = vmul.f32 %v4069, %v3626
        %v4071 = vmul.f32 %v3988, %v4068
        %v4072 = vadd.f32 %v4070, %v4071
        %v4073 = vld [vmem:[%s17] sm:$0xff]
        %v4074 = vld [vmem:[%s17 + $0x8] sm:$0xff]
        %v4075 = vld [vmem:[%s17 + $0x10] sm:$0xff]
        %v4076 = vld [vmem:[%s17 + $0x18] sm:$0xff]
        %v4077 = vld [vmem:[%s17 + $0x20] sm:$0xff]
        %v4078 = vld [vmem:[%s17 + $0x28] sm:$0xff]
        %v4079 = vld [vmem:[%s17 + $0x30] sm:$0xff]
        %v4080 = vld [vmem:[%s17 + $0x38] sm:$0xff]
        %v4081 = vld [vmem:[%s17 + $0x40] sm:$0xff]
        %v4082 = vld [vmem:[%s17 + $0x48] sm:$0xff]
        %v4083 = vld [vmem:[%s17 + $0x50] sm:$0xff]
        %v4084 = vld [vmem:[%s17 + $0x58] sm:$0xff]
        %v4085 = vld [vmem:[%s17 + $0x60] sm:$0xff]
        %v4086 = vld [vmem:[%s17 + $0x68] sm:$0xff]
        %v4087 = vld [vmem:[%s17 + $0x70] sm:$0xff]
        %v4088 = vld [vmem:[%s17 + $0x78] sm:$0xff]
        %v4089 = vld [vmem:[%s17 + $0x80] sm:$0xff]
        %v4090 = vld [vmem:[%s17 + $0x88] sm:$0xff]
        %v4091 = vld [vmem:[%s17 + $0x90] sm:$0xff]
        %v4092 = vld [vmem:[%s17 + $0x98] sm:$0xff]
        %v4093 = vld [vmem:[%s17 + $0xa0] sm:$0xff]
        %v4094 = vld [vmem:[%s17 + $0xa8] sm:$0xff]
        %v4095 = vld [vmem:[%s17 + $0xb0] sm:$0xff]
        %v4096 = vld [vmem:[%s17 + $0xb8] sm:$0xff]
        %v4097 = vld [vmem:[%s17 + $0xc0] sm:$0xff]
        %v4098 = vld [vmem:[%s17 + $0xc8] sm:$0xff]
        %v4099 = vld [vmem:[%s17 + $0xd0] sm:$0xff]
        %v4100 = vld [vmem:[%s17 + $0xd8] sm:$0xff]
        %v4101 = vld [vmem:[%s17 + $0xe0] sm:$0xff]
        %v4102 = vld [vmem:[%s17 + $0xe8] sm:$0xff]
        %v4103 = vld [vmem:[%s17 + $0xf0] sm:$0xff]
        %v4104 = vld [vmem:[%s17 + $0xf8] sm:$0xff]
        %4105 = vmatprep.subr.mxu0 %v4074
        %4106 = vmatpush1.msra.mxu0 %v4073
        %4107 = vmatprep.subr.mxu0 %v4076
        %4108 = vmatpush1.msra.mxu0 %v4075
        %4109 = vmatprep.subr.mxu0 %v4078
        %4110 = vmatpush1.msra.mxu0 %v4077
        %4111 = vmatprep.subr.mxu0 %v4080
        %4112 = vmatpush1.msra.mxu0 %v4079
        %4113 = vmatprep.subr.mxu0 %v4082
        %4114 = vmatpush1.msra.mxu0 %v4081
        %4115 = vmatprep.subr.mxu0 %v4084
        %4116 = vmatpush1.msra.mxu0 %v4083
        %4117 = vmatprep.subr.mxu0 %v4086
        %4118 = vmatpush1.msra.mxu0 %v4085
        %4119 = vmatprep.subr.mxu0 %v4088
        %4120 = vmatpush1.msra.mxu0 %v4087
        %4121 = vmatprep.subr.mxu0 %v4090
        %4122 = vmatpush1.msra.mxu0 %v4089
        %4123 = vmatprep.subr.mxu0 %v4092
        %4124 = vmatpush1.msra.mxu0 %v4091
        %4125 = vmatprep.subr.mxu0 %v4094
        %4126 = vmatpush1.msra.mxu0 %v4093
        %4127 = vmatprep.subr.mxu0 %v4096
        %4128 = vmatpush1.msra.mxu0 %v4095
        %4129 = vmatprep.subr.mxu0 %v4098
        %4130 = vmatpush1.msra.mxu0 %v4097
        %4131 = vmatprep.subr.mxu0 %v4100
        %4132 = vmatpush1.msra.mxu0 %v4099
        %4133 = vmatprep.subr.mxu0 %v4102
        %4134 = vmatpush1.msra.mxu0 %v4101
        %4135 = vmatprep.subr.mxu0 %v4104
        %4136 = vmatpush1.msra.mxu0 %v4103
        %4137 = vmatprep.subr.mxu0 0.0
        %4138 = vmatpush1.msra.mxu0 0.0
        %4139 = vmatprep.subr.mxu0 0.0
        %4140 = vmatpush1.msra.mxu0 0.0
        %4141 = vmatprep.subr.mxu0 0.0
        %4142 = vmatpush1.msra.mxu0 0.0
        %4143 = vmatprep.subr.mxu0 0.0
        %4144 = vmatpush1.msra.mxu0 0.0
        %4145 = vmatprep.subr.mxu0 0.0
        %4146 = vmatpush1.msra.mxu0 0.0
        %4147 = vmatprep.subr.mxu0 0.0
        %4148 = vmatpush1.msra.mxu0 0.0
        %4149 = vmatprep.subr.mxu0 0.0
        %4150 = vmatpush1.msra.mxu0 0.0
        %4151 = vmatprep.subr.mxu0 0.0
        %4152 = vmatpush1.msra.mxu0 0.0
        %4153 = vmatprep.subr.mxu0 0.0
        %4154 = vmatpush1.msra.mxu0 0.0
        %4155 = vmatprep.subr.mxu0 0.0
        %4156 = vmatpush1.msra.mxu0 0.0
        %4157 = vmatprep.subr.mxu0 0.0
        %4158 = vmatpush1.msra.mxu0 0.0
        %4159 = vmatprep.subr.mxu0 0.0
        %4160 = vmatpush1.msra.mxu0 0.0
        %4161 = vmatprep.subr.mxu0 0.0
        %4162 = vmatpush1.msra.mxu0 0.0
        %4163 = vmatprep.subr.mxu0 0.0
        %4164 = vmatpush1.msra.mxu0 0.0
        %4165 = vmatprep.subr.mxu0 0.0
        %4166 = vmatpush1.msra.mxu0 0.0
        %4167 = vmatprep.subr.mxu0 0.0
        %4168 = vmatpush1.msra.mxu0 0.0
        %4169 = vmatprep.mubr.f32.mxu0 0.0
        %4170 = vmatmul.mubr.f32.gmra.mrb[0].mxu0 %v4072
        %v4171 = vpop.f32.mrb[0].mxu0
        %v4172 = vadd.f32 0.0, %v4171
        %v4173 = vpop.f32.mrb[0].mxu0
        %v4174 = vadd.f32 0.0, %v4173
        %4175 = vdwg.mxu0
        %v4176 = vld [vmem:[%s18] sm:$0x1]
        %v4178 = vlaneseq
        %v4179 = vshrl.u32 %v4178, 7
        %v4180 = vsub.s32 0, %v4179
        %v4181 = vrot.slane %v4176, %v4180
        %v4183 = vadd.f32 %v4174, %v4181
        %v4185 = vcombine.high %v4172, %v4172
        %v4187 = vunpack.c.l.s4 1966171168
        %v4188 = vunpack.c.0.s8 %v4187
        %v4189 = vlaneseq
        %v4190 = vshrl.u32 %v4189, 7
        %v4191 = vsub.s32 %v4188, %v4190
        %v4192 = vrot.slane %v4172, %v4191
        %v4194 = vunpack.c.l.s4 1966171168
        %v4195 = vunpack.c.0.s8 %v4194
        %v4196 = vlaneseq
        %v4197 = vshrl.u32 %v4196, 7
        %v4198 = vsub.s32 %v4195, %v4197
        %v4199 = vrot.slane %v4185, %v4198
        %v4200 = vcombine.high %v4192, %v4192
        %v4201 = vcombine.high %v4199, %v4199
        %v4203 = vunpack.c.l.s4 1966171168
        %v4204 = vunpack.c.0.s8 %v4203
        %v4205 = vlaneseq
        %v4206 = vshrl.u32 %v4205, 7
        %v4207 = vsub.s32 %v4204, %v4206
        %v4208 = vrot.slane %v4192, %v4207
        %v4210 = vunpack.c.l.s4 1966171168
        %v4211 = vunpack.c.0.s8 %v4210
        %v4212 = vlaneseq
        %v4213 = vshrl.u32 %v4212, 7
        %v4214 = vsub.s32 %v4211, %v4213
        %v4215 = vrot.slane %v4199, %v4214
        %v4217 = vunpack.c.l.s4 1966171168
        %v4218 = vunpack.c.0.s8 %v4217
        %v4219 = vlaneseq
        %v4220 = vshrl.u32 %v4219, 7
        %v4221 = vsub.s32 %v4218, %v4220
        %v4222 = vrot.slane %v4200, %v4221
        %v4224 = vunpack.c.l.s4 1966171168
        %v4225 = vunpack.c.0.s8 %v4224
        %v4226 = vlaneseq
        %v4227 = vshrl.u32 %v4226, 7
        %v4228 = vsub.s32 %v4225, %v4227
        %v4229 = vrot.slane %v4201, %v4228
        %v4230 = vcombine.high %v4208, %v4208
        %v4231 = vcombine.high %v4215, %v4215
        %v4232 = vcombine.high %v4222, %v4222
        %v4233 = vcombine.high %v4229, %v4229
        %v4234 = vlaneseq
        %v4235 = vshrl.u32 %v4234, 7
        %v4236 = vsub.s32 0, %v4235
        %v4237 = vrot.slane %v4208, %v4236
        %v4238 = vlaneseq
        %v4239 = vshrl.u32 %v4238, 7
        %v4240 = vsub.s32 0, %v4239
        %v4241 = vrot.slane %v4222, %v4240
        %v4242 = vlaneseq
        %v4243 = vshrl.u32 %v4242, 7
        %v4244 = vsub.s32 0, %v4243
        %v4245 = vrot.slane %v4230, %v4244
        %v4246 = vlaneseq
        %v4247 = vshrl.u32 %v4246, 7
        %v4248 = vsub.s32 0, %v4247
        %v4249 = vrot.slane %v4232, %v4248
        %v4250 = vlaneseq
        %v4251 = vshrl.u32 %v4250, 7
        %v4252 = vsub.s32 0, %v4251
        %v4253 = vrot.slane %v4215, %v4252
        %v4254 = vlaneseq
        %v4255 = vshrl.u32 %v4254, 7
        %v4256 = vsub.s32 0, %v4255
        %v4257 = vrot.slane %v4229, %v4256
        %v4258 = vlaneseq
        %v4259 = vshrl.u32 %v4258, 7
        %v4260 = vsub.s32 0, %v4259
        %v4261 = vrot.slane %v4231, %v4260
        %v4262 = vlaneseq
        %v4263 = vshrl.u32 %v4262, 7
        %v4264 = vsub.s32 0, %v4263
        %v4265 = vrot.slane %v4233, %v4264
        %v4274 = vadd.f32 %v4237, %v4183
        %v4275 = vadd.f32 %v4241, %v4183
        %v4276 = vadd.f32 %v4245, %v4183
        %v4277 = vadd.f32 %v4249, %v4183
        %v4278 = vadd.f32 %v4253, %v4183
        %v4279 = vadd.f32 %v4257, %v4183
        %v4280 = vadd.f32 %v4261, %v4183
        %v4281 = vadd.f32 %v4265, %v4183
        %4282 = vst [vmem:[%s660] sm:$0xff] %v4274
        %4283 = vst [vmem:[%s660 + $0x8] sm:$0xff] %v4275
        %4284 = vst [vmem:[%s660 + $0x10] sm:$0xff] %v4276
        %4285 = vst [vmem:[%s660 + $0x18] sm:$0xff] %v4277
        %4286 = vst [vmem:[%s660 + $0x20] sm:$0xff] %v4278
        %4287 = vst [vmem:[%s660 + $0x28] sm:$0xff] %v4279
        %4288 = vst [vmem:[%s660 + $0x30] sm:$0xff] %v4280
        %4289 = vst [vmem:[%s660 + $0x38] sm:$0xff] %v4281
        %s4290 = sand.u32 %s470, 1
        %s4291 = scalar_lea.sflag [#allocation3], %s4290
        %s4292 = sand.u32 %s470, 1
        %s4293 = smul.addr %s4292, 64
        %s4294 = scalar_lea.vmem [#allocation2], %s4293
        // Predicated region
        $region97: #{tpu_custom_call.1} parent=95 // pred_check
          %p4295 = pneg %p480
        $region98: #{tpu_custom_call.1} parent=95 // pred_check_branch
          %4297 = sbr.rel (%p4295) target = $region100
        $region99: #{tpu_custom_call.1} parent=95 // pred_region
          %s4299 = ssub.s32 1024, 1024
          %4300 = vsyncadd %s4291, %s4299
          %s4301 = smul.addr %s33, 8
          %s4302 = smul.addr %s4301, 128
          %s4303 = scalar_lea.hbm %s19, %s4302
          %s4304 = sshll.u32 %s4294, 4
          %s4305 = int_to_ptr.vmem [resolvable:$true] %s4304
          %4310 = dma.vmem_to_hbm [thread:$0]  %s4305, 1024, %s4303, %s4291, 128, 128, 8
        $region100: #{tpu_custom_call.1} parent=95 // pred_fallthru
          _
      $region96: #{tpu_custom_call.1} parent=5 // pred_fallthru
        _
      %p4311 = scmp.le.s32.totalorder 2, %s28
      // Predicated region
      $region101: #{tpu_custom_call.1} parent=5 // pred_check
        %p4312 = pneg %p4311
      $region102: #{tpu_custom_call.1} parent=5 // pred_check_branch
        %4314 = sbr.rel (%p4312) target = $region104
      $region103: #{tpu_custom_call.1} parent=5 // pred_region
        %s4315 = ssub.s32 %s28, 2
        // Predicated region
        $region105: #{tpu_custom_call.1} parent=103 // pred_check
          %p4316 = pneg %p486
        $region106: #{tpu_custom_call.1} parent=103 // pred_check_branch
          %4318 = sbr.rel (%p4316) target = $region108
        $region107: #{tpu_custom_call.1} parent=103 // pred_region
          %s4319 = sand.u32 %s471, 1
          %s4320 = scalar_lea.sflag [#allocation3], %s4319
          %s4321 = sand.u32 %s471, 1
          %s4322 = smul.addr %s4321, 64
          %s4323 = scalar_lea.vmem [#allocation2], %s4322
          %4324 = dma.done %s4320, 1024
        $region108: #{tpu_custom_call.1} parent=103 // pred_fallthru
          _
      $region104: #{tpu_custom_call.1} parent=5 // pred_fallthru
        _
    $region6: #{tpu_custom_call.1} parent=1 // loop_footer
      %s32 = sadd.s32 1, %s28
    $region7: #{tpu_custom_call.1} parent=1 // loop_footer_branch
      %27 = sbr.rel target = $region3
    $region8: #{tpu_custom_call.1} parent=1 // loop_exit
      _
    %4325 = vsyncpa [#allocation3], 1
    %s4326 = scalar_lea.sflag [#allocation3], 1
    %4327 = vsyncpa %s4326, 1

</llo_original>
